<compile_context>
chip_gen: v7x
topology: tpu7x:2x2x1
jax: 0.10.0
libtpu: 0.0.40
codegen_flags: <defaults>
</compile_context>

<pallas_src>
import math

import jax
import jax.numpy as jnp
from jax.experimental import pallas as pl
from jax.experimental.pallas import tpu as pltpu

# Small synthetic configuration (real model: hidden=768, heads=12, MAX_LEN=350).
VOCAB = 100
SEQ = 8
HIDDEN = 32
FFN = 4 * HIDDEN            # 128
NUM_HEADS = 4
HEAD_DIM = HIDDEN // NUM_HEADS
NUM_FEATURES = 3
FEAT_PAD = 8                # pad feature dim 3 -> 8 with zero cols (exact semantics)
FEAT_HIDDEN = 256
NUM_LABELS = 5
OUT_PAD = 128               # lane-dense output slab width
ROW_PAD = 8                 # sublane-aligned row block for the per-example head path
LN_EPS = 1e-5               # PyTorch LayerNorm default eps
NEG_BIG = -1e30             # bias for padded logit lanes -> exp underflows to 0


def _gelu(x):
    # TODO(synk): PyTorch nn.GELU() is the exact erf form; tanh approximation is used
    # here (numerical diff ~1e-3).
    c = math.sqrt(2.0 / math.pi)
    return 0.5 * x * (1.0 + jnp.tanh(c * (x + 0.044715 * x * x * x)))


def _layer_norm(x, g, b):
    mu = jnp.mean(x, axis=-1, keepdims=True)
    var = jnp.mean((x - mu) ** 2, axis=-1, keepdims=True)
    return (x - mu) * jax.lax.rsqrt(var + LN_EPS) * g + b


# ---------------------------------------------------------------------------
# Single fused kernel: synthetic encoder layer -> [CLS] -> feature_encoder ->
# fusion add -> classifier -> Softmax(dim=1), whole batch in one invocation.
# ---------------------------------------------------------------------------
def _fused_kernel(x_ref, bias_ref, feat_ref,
                  emb_g, emb_b, wqkv, bqkv, wo, bo, ln1_g, ln1_b,
                  w1, b1, w2, b2, ln2_g, ln2_b,
                  wf1, bf1, gf1, bbf1, wf2, bf2, gf2, bbf2,
                  wc1, bc1, gc1, bbc1, wc2, bc2,
                  out_ref):
    B = bias_ref.shape[0]           # true batch size
    ROWS = out_ref.shape[0]         # sublane-aligned row block (>= B, multiple of 8)

    # ---- embedding layernorm over all B*SEQ rows at once --------------------
    x = _layer_norm(x_ref[...], emb_g[...], emb_b[...])            # (B*SEQ, HIDDEN)

    # ---- fused QKV projection: single MXU contraction (N = 3*HIDDEN) --------
    # attention scale 1/sqrt(head_dim) is already folded into the Q columns.
    qkv = jnp.dot(x, wqkv[...], preferred_element_type=jnp.float32) + bqkv[...]

    def to_heads(cols):
        # (B*SEQ, HIDDEN) -> (NUM_HEADS*B, SEQ, HEAD_DIM); head folded into batch dim
        m = cols.reshape(B, SEQ, HIDDEN)
        return jnp.concatenate(
            [m[:, :, h * HEAD_DIM:(h + 1) * HEAD_DIM] for h in range(NUM_HEADS)],
            axis=0)

    q = to_heads(qkv[:, 0 * HIDDEN:1 * HIDDEN])
    k = to_heads(qkv[:, 1 * HIDDEN:2 * HIDDEN])
    v = to_heads(qkv[:, 2 * HIDDEN:3 * HIDDEN])

    # ---- all heads & all batch elements in two batched contractions ---------
    # mask bias built once (hoisted), tiled over heads: (NUM_HEADS*B, 1, SEQ)
    bias = jnp.concatenate([bias_ref[...]] * NUM_HEADS, axis=0)
    s = jnp.einsum('nqd,nkd->nqk', q, k,
                   preferred_element_type=jnp.float32) + bias
    s = s - jnp.max(s, axis=-1, keepdims=True)
    p = jnp.exp(s)
    p = p * pl.reciprocal(jnp.sum(p, axis=-1, keepdims=True), approx=True)
    ctx = jnp.einsum('nqk,nkd->nqd', p, v, preferred_element_type=jnp.float32)
    ctx = jnp.concatenate(
        [ctx[h * B:(h + 1) * B] for h in range(NUM_HEADS)], axis=-1
    ).reshape(B * SEQ, HIDDEN)

    attn_out = jnp.dot(ctx, wo[...], preferred_element_type=jnp.float32) + bo[...]
    h1 = _layer_norm(x + attn_out, ln1_g[...], ln1_b[...])

    ff = _gelu(jnp.dot(h1, w1[...], preferred_element_type=jnp.float32) + b1[...])
    ff = jnp.dot(ff, w2[...], preferred_element_type=jnp.float32) + b2[...]
    h2 = _layer_norm(h1 + ff, ln2_g[...], ln2_b[...])              # (B*SEQ, HIDDEN)

    # last_hidden_state[:, 0] -> rows 0, SEQ, 2*SEQ, ...; zero-pad to ROWS rows so
    # the head matmuls and the output store are full-sublane (no 2-row partials).
    cls = jnp.concatenate([h2[b * SEQ:b * SEQ + 1, :] for b in range(B)], axis=0)
    if ROWS > B:
        cls = jnp.concatenate(
            [cls, jnp.zeros((ROWS - B, HIDDEN), jnp.float32)], axis=0)

    # ---- feature_encoder: Linear(3,256)->LN->GELU->Linear(256,H)->LN->GELU ---
    f = jnp.dot(feat_ref[...], wf1[...], preferred_element_type=jnp.float32) + bf1[...]
    f = _gelu(_layer_norm(f, gf1[...], bbf1[...]))
    f = jnp.dot(f, wf2[...], preferred_element_type=jnp.float32) + bf2[...]
    f = _gelu(_layer_norm(f, gf2[...], bbf2[...]))

    fused = cls + f                                # automodel_output + feature_encoded

    # ---- classifier: Linear(H,H)->LN->GELU->Linear(H,labels)->Softmax(dim=1) -
    c = jnp.dot(fused, wc1[...], preferred_element_type=jnp.float32) + bc1[...]
    c = _gelu(_layer_norm(c, gc1[...], bbc1[...]))
    # wc2 is lane-padded to 128 cols; padded lanes carry bias -1e30 -> exp == 0.
    logits = jnp.dot(c, wc2[...], preferred_element_type=jnp.float32) + bc2[...]
    logits = logits - jnp.max(logits, axis=-1, keepdims=True)
    e = jnp.exp(logits)
    # exact divide on the externally visible softmax (approx recip only internally)
    out_ref[...] = e / jnp.sum(e, axis=-1, keepdims=True)          # (ROWS, OUT_PAD)


def fused_forward_call(x_flat, mask_bias, feats_padded, enc_params, head_params):
    B = mask_bias.shape[0]
    rows = feats_padded.shape[0]
    vmem = pl.BlockSpec(memory_space=pltpu.MemorySpace.VMEM)
    n_in = 3 + len(enc_params) + len(head_params)
    probs_padded = pl.pallas_call(
        _fused_kernel,
        out_shape=jax.ShapeDtypeStruct((rows, OUT_PAD), jnp.float32),
        in_specs=[vmem] * n_in,
        out_specs=vmem,
    )(x_flat, mask_bias, feats_padded, *enc_params, *head_params)
    return probs_padded[:B, :NUM_LABELS]                           # (B, NUM_LABELS) probs


# ---------------------------------------------------------------------------
# Parameter init (deterministic, synthetic) and full forward.
# ---------------------------------------------------------------------------
def init_params(key):
    keys = iter(jax.random.split(key, 16))

    def dense(shape):
        return jax.random.normal(next(keys), shape, jnp.float32) * 0.02

    zeros = lambda s: jnp.zeros(s, jnp.float32)
    ones = lambda s: jnp.ones(s, jnp.float32)

    embeddings = dict(
        word=dense((VOCAB, HIDDEN)),
        type=dense((2, HIDDEN)),
        pos=dense((SEQ, HIDDEN)),
    )

    # fused QKV weight: one (HIDDEN, 3*HIDDEN) matmul instead of three.
    # Attention scale 1/sqrt(head_dim) is folded into the Q weight/bias at init
    # (mathematically identical, removes a runtime multiply on the score tensor).
    scale = 1.0 / math.sqrt(HEAD_DIM)
    wq, wk, wv = dense((HIDDEN, HIDDEN)), dense((HIDDEN, HIDDEN)), dense((HIDDEN, HIDDEN))
    bq, bk, bv = zeros((1, HIDDEN)), zeros((1, HIDDEN)), zeros((1, HIDDEN))
    wqkv = jnp.concatenate([wq * scale, wk, wv], axis=1)
    bqkv = jnp.concatenate([bq * scale, bk, bv], axis=1)
    encoder = (
        ones((1, HIDDEN)), zeros((1, HIDDEN)),            # embedding LN
        wqkv, bqkv,                                       # fused QKV (scale folded)
        dense((HIDDEN, HIDDEN)), zeros((1, HIDDEN)),      # Wo, bo
        ones((1, HIDDEN)), zeros((1, HIDDEN)),            # LN1
        dense((HIDDEN, FFN)), zeros((1, FFN)),            # FFN W1, b1
        dense((FFN, HIDDEN)), zeros((1, HIDDEN)),         # FFN W2, b2
        ones((1, HIDDEN)), zeros((1, HIDDEN)),            # LN2
    )

    # feature_encoder first Linear: (3, 256) padded to (8, 256) with zero rows.
    wf1 = jnp.zeros((FEAT_PAD, FEAT_HIDDEN), jnp.float32).at[:NUM_FEATURES].set(
        dense((NUM_FEATURES, FEAT_HIDDEN)))
    # classifier last Linear padded to a lane-dense 128-wide output; padded logit
    # lanes get bias -1e30 so they vanish under the softmax (exact semantics).
    wc2 = jnp.zeros((HIDDEN, OUT_PAD), jnp.float32).at[:, :NUM_LABELS].set(
        dense((HIDDEN, NUM_LABELS)))
    bc2 = jnp.full((1, OUT_PAD), NEG_BIG, jnp.float32).at[0, :NUM_LABELS].set(0.0)
    head = (
        wf1, zeros((1, FEAT_HIDDEN)),
        ones((1, FEAT_HIDDEN)), zeros((1, FEAT_HIDDEN)),
        dense((FEAT_HIDDEN, HIDDEN)), zeros((1, HIDDEN)),
        ones((1, HIDDEN)), zeros((1, HIDDEN)),
        dense((HIDDEN, HIDDEN)), zeros((1, HIDDEN)),
        ones((1, HIDDEN)), zeros((1, HIDDEN)),
        wc2, bc2,
    )
    return dict(embeddings=embeddings, encoder=encoder, head=head)


@jax.jit
def forward(input_ids, additional_features, attention_mask, token_type_ids, params):
    emb = params["embeddings"]
    # TODO(synk): at real scale (SEQ=350, hidden=768, 12 layers) move this gather
    # in-kernel via PrefetchScalarGridSpec-prefetched ids + per-block DMA, and
    # re-derive tiling / vmem_limit_bytes for v7x's 64 MiB VMEM.
    x = (jnp.take(emb["word"], input_ids, axis=0)
         + jnp.take(emb["type"], token_type_ids, axis=0)
         + emb["pos"][None, :, :])                                  # (B, SEQ, HIDDEN)
    B = input_ids.shape[0]
    x_flat = x.reshape(B * SEQ, HIDDEN)
    mask_bias = (1.0 - attention_mask.astype(jnp.float32))[:, None, :] * -1e9  # (B,1,SEQ)
    # features padded to a sublane-aligned (ROWS, 8) block; extra rows/cols are zero.
    rows = max(ROW_PAD, ((B + ROW_PAD - 1) // ROW_PAD) * ROW_PAD)
    feats = jnp.zeros((rows, FEAT_PAD), jnp.float32).at[:B, :NUM_FEATURES].set(
        additional_features.astype(jnp.float32))
    return fused_forward_call(x_flat, mask_bias, feats,
                              params["encoder"], params["head"])    # (B, NUM_LABELS)


if __name__ == "__main__":
    key = jax.random.PRNGKey(0)
    pkey, dkey = jax.random.split(key)
    params = init_params(pkey)

    B = 2
    k1, k2 = jax.random.split(dkey)
    input_ids = jax.random.randint(k1, (B, SEQ), 0, VOCAB, dtype=jnp.int32)
    additional_features = jax.random.normal(k2, (B, NUM_FEATURES), jnp.float32)
    attention_mask = jnp.ones((B, SEQ), jnp.int32).at[1, 6:].set(0)   # ragged mask
    token_type_ids = jnp.zeros((B, SEQ), jnp.int32)

    probs = forward(input_ids, additional_features, attention_mask, token_type_ids, params)
    probs = jax.block_until_ready(probs)

    assert probs.shape == (B, NUM_LABELS)
    assert bool(jnp.all(jnp.isfinite(probs)))
    assert bool(jnp.allclose(jnp.sum(probs, axis=-1), 1.0, atol=1e-5))
    print("KERNEL_OK")
</pallas_src>

<mosaic_0001>
module attributes {stable_mosaic.version = 11 : i64} {
  func.func @_fused_kernel(%arg0: memref<16x32xf32, #tpu.memory_space<vmem>>, %arg1: memref<2x1x8xf32, #tpu.memory_space<vmem>>, %arg2: memref<8x8xf32, #tpu.memory_space<vmem>>, %arg3: memref<1x32xf32, #tpu.memory_space<vmem>>, %arg4: memref<1x32xf32, #tpu.memory_space<vmem>>, %arg5: memref<32x96xf32, #tpu.memory_space<vmem>>, %arg6: memref<1x96xf32, #tpu.memory_space<vmem>>, %arg7: memref<32x32xf32, #tpu.memory_space<vmem>>, %arg8: memref<1x32xf32, #tpu.memory_space<vmem>>, %arg9: memref<1x32xf32, #tpu.memory_space<vmem>>, %arg10: memref<1x32xf32, #tpu.memory_space<vmem>>, %arg11: memref<32x128xf32, #tpu.memory_space<vmem>>, %arg12: memref<1x128xf32, #tpu.memory_space<vmem>>, %arg13: memref<128x32xf32, #tpu.memory_space<vmem>>, %arg14: memref<1x32xf32, #tpu.memory_space<vmem>>, %arg15: memref<1x32xf32, #tpu.memory_space<vmem>>, %arg16: memref<1x32xf32, #tpu.memory_space<vmem>>, %arg17: memref<8x256xf32, #tpu.memory_space<vmem>>, %arg18: memref<1x256xf32, #tpu.memory_space<vmem>>, %arg19: memref<1x256xf32, #tpu.memory_space<vmem>>, %arg20: memref<1x256xf32, #tpu.memory_space<vmem>>, %arg21: memref<256x32xf32, #tpu.memory_space<vmem>>, %arg22: memref<1x32xf32, #tpu.memory_space<vmem>>, %arg23: memref<1x32xf32, #tpu.memory_space<vmem>>, %arg24: memref<1x32xf32, #tpu.memory_space<vmem>>, %arg25: memref<32x32xf32, #tpu.memory_space<vmem>>, %arg26: memref<1x32xf32, #tpu.memory_space<vmem>>, %arg27: memref<1x32xf32, #tpu.memory_space<vmem>>, %arg28: memref<1x32xf32, #tpu.memory_space<vmem>>, %arg29: memref<32x128xf32, #tpu.memory_space<vmem>>, %arg30: memref<1x128xf32, #tpu.memory_space<vmem>>, %arg31: memref<8x128xf32, #tpu.memory_space<vmem>>) attributes {dimension_semantics = [], scalar_prefetch = 0 : i64, scratch_operands = 0 : i64, tpu.core_type = #tpu.core_type<tc>} {
    %c0 = arith.constant 0 : index
    %c0_0 = arith.constant 0 : index
    %0 = vector.load %arg0[%c0, %c0_0] : memref<16x32xf32, #tpu.memory_space<vmem>>, vector<16x32xf32>
    %c0_1 = arith.constant 0 : index
    %c0_2 = arith.constant 0 : index
    %1 = vector.load %arg3[%c0_1, %c0_2] : memref<1x32xf32, #tpu.memory_space<vmem>>, vector<1x32xf32>
    %c0_3 = arith.constant 0 : index
    %c0_4 = arith.constant 0 : index
    %2 = vector.load %arg4[%c0_3, %c0_4] : memref<1x32xf32, #tpu.memory_space<vmem>>, vector<1x32xf32>
    %cst = arith.constant dense<0.000000e+00> : vector<16xf32>
    %3 = vector.multi_reduction <add>, %0, %cst [1] : vector<16x32xf32> to vector<16xf32>
    %4 = vector.shape_cast %3 : vector<16xf32> to vector<16x1xf32>
    %cst_5 = arith.constant 3.200000e+01 : f32
    %5 = vector.broadcast %cst_5 : f32 to vector<16x1xf32>
    %6 = arith.divf %4, %5 : vector<16x1xf32>
    %7 = vector.broadcast %6 : vector<16x1xf32> to vector<16x32xf32>
    %8 = arith.subf %0, %7 : vector<16x32xf32>
    %9 = arith.mulf %8, %8 : vector<16x32xf32>
    %cst_6 = arith.constant dense<0.000000e+00> : vector<16xf32>
    %10 = vector.multi_reduction <add>, %9, %cst_6 [1] : vector<16x32xf32> to vector<16xf32>
    %11 = vector.shape_cast %10 : vector<16xf32> to vector<16x1xf32>
    %cst_7 = arith.constant 3.200000e+01 : f32
    %12 = vector.broadcast %cst_7 : f32 to vector<16x1xf32>
    %13 = arith.divf %11, %12 : vector<16x1xf32>
    %14 = vector.broadcast %6 : vector<16x1xf32> to vector<16x32xf32>
    %15 = arith.subf %0, %14 : vector<16x32xf32>
    %cst_8 = arith.constant 9.99999974E-6 : f32
    %16 = vector.broadcast %cst_8 : f32 to vector<16x1xf32>
    %17 = arith.addf %13, %16 : vector<16x1xf32>
    %18 = math.rsqrt %17 : vector<16x1xf32>
    %19 = vector.broadcast %18 : vector<16x1xf32> to vector<16x32xf32>
    %20 = arith.mulf %15, %19 : vector<16x32xf32>
    %21 = vector.broadcast %1 : vector<1x32xf32> to vector<16x32xf32>
    %22 = arith.mulf %20, %21 : vector<16x32xf32>
    %23 = vector.broadcast %2 : vector<1x32xf32> to vector<16x32xf32>
    %24 = arith.addf %22, %23 : vector<16x32xf32>
    %c0_9 = arith.constant 0 : index
    %c0_10 = arith.constant 0 : index
    %25 = vector.load %arg5[%c0_9, %c0_10] : memref<32x96xf32, #tpu.memory_space<vmem>>, vector<32x96xf32>
    %cst_11 = arith.constant dense<0.000000e+00> : vector<16x96xf32>
    %26 = tpu.matmul %24, %25, %cst_11 {dimension_numbers = #tpu.dot_dimension_numbers<[1], [0], [0], [1], [0, 0, 1, 1], [], []>} : vector<16x32xf32>, vector<32x96xf32>, vector<16x96xf32> -> vector<16x96xf32>
    %c0_12 = arith.constant 0 : index
    %c0_13 = arith.constant 0 : index
    %27 = vector.load %arg6[%c0_12, %c0_13] : memref<1x96xf32, #tpu.memory_space<vmem>>, vector<1x96xf32>
    %28 = vector.broadcast %27 : vector<1x96xf32> to vector<16x96xf32>
    %29 = arith.addf %26, %28 : vector<16x96xf32>
    %30 = vector.extract_strided_slice %29 {offsets = [0, 0], sizes = [16, 32], strides = [1, 1]} : vector<16x96xf32> to vector<16x32xf32>
    %31 = vector.shape_cast %30 : vector<16x32xf32> to vector<2x8x32xf32>
    %32 = vector.extract_strided_slice %31 {offsets = [0, 0, 0], sizes = [2, 8, 8], strides = [1, 1, 1]} : vector<2x8x32xf32> to vector<2x8x8xf32>
    %33 = vector.extract_strided_slice %31 {offsets = [0, 0, 8], sizes = [2, 8, 8], strides = [1, 1, 1]} : vector<2x8x32xf32> to vector<2x8x8xf32>
    %34 = vector.extract_strided_slice %31 {offsets = [0, 0, 16], sizes = [2, 8, 8], strides = [1, 1, 1]} : vector<2x8x32xf32> to vector<2x8x8xf32>
    %35 = vector.extract_strided_slice %31 {offsets = [0, 0, 24], sizes = [2, 8, 8], strides = [1, 1, 1]} : vector<2x8x32xf32> to vector<2x8x8xf32>
    %36 = tpu.concatenate %32, %33, %34, %35 in 0 : vector<2x8x8xf32>, vector<2x8x8xf32>, vector<2x8x8xf32>, vector<2x8x8xf32> -> vector<8x8x8xf32>
    %37 = vector.extract_strided_slice %29 {offsets = [0, 32], sizes = [16, 32], strides = [1, 1]} : vector<16x96xf32> to vector<16x32xf32>
    %38 = vector.shape_cast %37 : vector<16x32xf32> to vector<2x8x32xf32>
    %39 = vector.extract_strided_slice %38 {offsets = [0, 0, 0], sizes = [2, 8, 8], strides = [1, 1, 1]} : vector<2x8x32xf32> to vector<2x8x8xf32>
    %40 = vector.extract_strided_slice %38 {offsets = [0, 0, 8], sizes = [2, 8, 8], strides = [1, 1, 1]} : vector<2x8x32xf32> to vector<2x8x8xf32>
    %41 = vector.extract_strided_slice %38 {offsets = [0, 0, 16], sizes = [2, 8, 8], strides = [1, 1, 1]} : vector<2x8x32xf32> to vector<2x8x8xf32>
    %42 = vector.extract_strided_slice %38 {offsets = [0, 0, 24], sizes = [2, 8, 8], strides = [1, 1, 1]} : vector<2x8x32xf32> to vector<2x8x8xf32>
    %43 = tpu.concatenate %39, %40, %41, %42 in 0 : vector<2x8x8xf32>, vector<2x8x8xf32>, vector<2x8x8xf32>, vector<2x8x8xf32> -> vector<8x8x8xf32>
    %44 = vector.extract_strided_slice %29 {offsets = [0, 64], sizes = [16, 32], strides = [1, 1]} : vector<16x96xf32> to vector<16x32xf32>
    %45 = vector.shape_cast %44 : vector<16x32xf32> to vector<2x8x32xf32>
    %46 = vector.extract_strided_slice %45 {offsets = [0, 0, 0], sizes = [2, 8, 8], strides = [1, 1, 1]} : vector<2x8x32xf32> to vector<2x8x8xf32>
    %47 = vector.extract_strided_slice %45 {offsets = [0, 0, 8], sizes = [2, 8, 8], strides = [1, 1, 1]} : vector<2x8x32xf32> to vector<2x8x8xf32>
    %48 = vector.extract_strided_slice %45 {offsets = [0, 0, 16], sizes = [2, 8, 8], strides = [1, 1, 1]} : vector<2x8x32xf32> to vector<2x8x8xf32>
    %49 = vector.extract_strided_slice %45 {offsets = [0, 0, 24], sizes = [2, 8, 8], strides = [1, 1, 1]} : vector<2x8x32xf32> to vector<2x8x8xf32>
    %50 = tpu.concatenate %46, %47, %48, %49 in 0 : vector<2x8x8xf32>, vector<2x8x8xf32>, vector<2x8x8xf32>, vector<2x8x8xf32> -> vector<8x8x8xf32>
    %c0_14 = arith.constant 0 : index
    %c0_15 = arith.constant 0 : index
    %c0_16 = arith.constant 0 : index
    %51 = vector.load %arg1[%c0_14, %c0_15, %c0_16] : memref<2x1x8xf32, #tpu.memory_space<vmem>>, vector<2x1x8xf32>
    %52 = tpu.concatenate %51, %51, %51, %51 in 0 : vector<2x1x8xf32>, vector<2x1x8xf32>, vector<2x1x8xf32>, vector<2x1x8xf32> -> vector<8x1x8xf32>
    "tpu.trace_start"() <{level = 10 : i32, message = "nqd,nkd->nqk"}> : () -> ()
    %cst_17 = arith.constant dense<0.000000e+00> : vector<8x8x8xf32>
    %53 = tpu.matmul %36, %43, %cst_17 {dimension_numbers = #tpu.dot_dimension_numbers<[2], [2], [1], [1], [0, 0, 0, 1, 1, 1], [0], [0]>} : vector<8x8x8xf32>, vector<8x8x8xf32>, vector<8x8x8xf32> -> vector<8x8x8xf32>
    "tpu.trace_stop"() : () -> ()
    %54 = vector.broadcast %52 : vector<8x1x8xf32> to vector<8x8x8xf32>
    %55 = arith.addf %53, %54 : vector<8x8x8xf32>
    %cst_18 = arith.constant dense<0xFF800000> : vector<8x8xf32>
    %56 = vector.multi_reduction <maximumf>, %55, %cst_18 [2] : vector<8x8x8xf32> to vector<8x8xf32>
    %57 = vector.shape_cast %56 : vector<8x8xf32> to vector<8x8x1xf32>
    %58 = vector.broadcast %57 : vector<8x8x1xf32> to vector<8x8x8xf32>
    %59 = arith.subf %55, %58 : vector<8x8x8xf32>
    %60 = math.exp %59 : vector<8x8x8xf32>
    %cst_19 = arith.constant dense<0.000000e+00> : vector<8x8xf32>
    %61 = vector.multi_reduction <add>, %60, %cst_19 [2] : vector<8x8x8xf32> to vector<8x8xf32>
    %62 = vector.shape_cast %61 : vector<8x8xf32> to vector<8x8x1xf32>
    %63 = tpu.reciprocal %62 {approx = true} : vector<8x8x1xf32> -> vector<8x8x1xf32>
    %64 = vector.broadcast %63 : vector<8x8x1xf32> to vector<8x8x8xf32>
    %65 = arith.mulf %60, %64 : vector<8x8x8xf32>
    "tpu.trace_start"() <{level = 10 : i32, message = "nqk,nkd->nqd"}> : () -> ()
    %cst_20 = arith.constant dense<0.000000e+00> : vector<8x8x8xf32>
    %66 = tpu.matmul %65, %50, %cst_20 {dimension_numbers = #tpu.dot_dimension_numbers<[2], [1], [1], [2], [0, 0, 0, 1, 1, 2], [0], [0]>} : vector<8x8x8xf32>, vector<8x8x8xf32>, vector<8x8x8xf32> -> vector<8x8x8xf32>
    "tpu.trace_stop"() : () -> ()
    %67 = vector.extract_strided_slice %66 {offsets = [0, 0, 0], sizes = [2, 8, 8], strides = [1, 1, 1]} : vector<8x8x8xf32> to vector<2x8x8xf32>
    %68 = vector.extract_strided_slice %66 {offsets = [2, 0, 0], sizes = [2, 8, 8], strides = [1, 1, 1]} : vector<8x8x8xf32> to vector<2x8x8xf32>
    %69 = vector.extract_strided_slice %66 {offsets = [4, 0, 0], sizes = [2, 8, 8], strides = [1, 1, 1]} : vector<8x8x8xf32> to vector<2x8x8xf32>
    %70 = vector.extract_strided_slice %66 {offsets = [6, 0, 0], sizes = [2, 8, 8], strides = [1, 1, 1]} : vector<8x8x8xf32> to vector<2x8x8xf32>
    %71 = tpu.concatenate %67, %68, %69, %70 in 2 : vector<2x8x8xf32>, vector<2x8x8xf32>, vector<2x8x8xf32>, vector<2x8x8xf32> -> vector<2x8x32xf32>
    %72 = vector.shape_cast %71 : vector<2x8x32xf32> to vector<16x32xf32>
    %c0_21 = arith.constant 0 : index
    %c0_22 = arith.constant 0 : index
    %73 = vector.load %arg7[%c0_21, %c0_22] : memref<32x32xf32, #tpu.memory_space<vmem>>, vector<32x32xf32>
    %cst_23 = arith.constant dense<0.000000e+00> : vector<16x32xf32>
    %74 = tpu.matmul %72, %73, %cst_23 {dimension_numbers = #tpu.dot_dimension_numbers<[1], [0], [0], [1], [0, 0, 1, 1], [], []>} : vector<16x32xf32>, vector<32x32xf32>, vector<16x32xf32> -> vector<16x32xf32>
    %c0_24 = arith.constant 0 : index
    %c0_25 = arith.constant 0 : index
    %75 = vector.load %arg8[%c0_24, %c0_25] : memref<1x32xf32, #tpu.memory_space<vmem>>, vector<1x32xf32>
    %76 = vector.broadcast %75 : vector<1x32xf32> to vector<16x32xf32>
    %77 = arith.addf %74, %76 : vector<16x32xf32>
    %78 = arith.addf %24, %77 : vector<16x32xf32>
    %c0_26 = arith.constant 0 : index
    %c0_27 = arith.constant 0 : index
    %79 = vector.load %arg9[%c0_26, %c0_27] : memref<1x32xf32, #tpu.memory_space<vmem>>, vector<1x32xf32>
    %c0_28 = arith.constant 0 : index
    %c0_29 = arith.constant 0 : index
    %80 = vector.load %arg10[%c0_28, %c0_29] : memref<1x32xf32, #tpu.memory_space<vmem>>, vector<1x32xf32>
    %cst_30 = arith.constant dense<0.000000e+00> : vector<16xf32>
    %81 = vector.multi_reduction <add>, %78, %cst_30 [1] : vector<16x32xf32> to vector<16xf32>
    %82 = vector.shape_cast %81 : vector<16xf32> to vector<16x1xf32>
    %cst_31 = arith.constant 3.200000e+01 : f32
    %83 = vector.broadcast %cst_31 : f32 to vector<16x1xf32>
    %84 = arith.divf %82, %83 : vector<16x1xf32>
    %85 = vector.broadcast %84 : vector<16x1xf32> to vector<16x32xf32>
    %86 = arith.subf %78, %85 : vector<16x32xf32>
    %87 = arith.mulf %86, %86 : vector<16x32xf32>
    %cst_32 = arith.constant dense<0.000000e+00> : vector<16xf32>
    %88 = vector.multi_reduction <add>, %87, %cst_32 [1] : vector<16x32xf32> to vector<16xf32>
    %89 = vector.shape_cast %88 : vector<16xf32> to vector<16x1xf32>
    %cst_33 = arith.constant 3.200000e+01 : f32
    %90 = vector.broadcast %cst_33 : f32 to vector<16x1xf32>
    %91 = arith.divf %89, %90 : vector<16x1xf32>
    %92 = vector.broadcast %84 : vector<16x1xf32> to vector<16x32xf32>
    %93 = arith.subf %78, %92 : vector<16x32xf32>
    %cst_34 = arith.constant 9.99999974E-6 : f32
    %94 = vector.broadcast %cst_34 : f32 to vector<16x1xf32>
    %95 = arith.addf %91, %94 : vector<16x1xf32>
    %96 = math.rsqrt %95 : vector<16x1xf32>
    %97 = vector.broadcast %96 : vector<16x1xf32> to vector<16x32xf32>
    %98 = arith.mulf %93, %97 : vector<16x32xf32>
    %99 = vector.broadcast %79 : vector<1x32xf32> to vector<16x32xf32>
    %100 = arith.mulf %98, %99 : vector<16x32xf32>
    %101 = vector.broadcast %80 : vector<1x32xf32> to vector<16x32xf32>
    %102 = arith.addf %100, %101 : vector<16x32xf32>
    %c0_35 = arith.constant 0 : index
    %c0_36 = arith.constant 0 : index
    %103 = vector.load %arg11[%c0_35, %c0_36] : memref<32x128xf32, #tpu.memory_space<vmem>>, vector<32x128xf32>
    %cst_37 = arith.constant dense<0.000000e+00> : vector<16x128xf32>
    %104 = tpu.matmul %102, %103, %cst_37 {dimension_numbers = #tpu.dot_dimension_numbers<[1], [0], [0], [1], [0, 0, 1, 1], [], []>} : vector<16x32xf32>, vector<32x128xf32>, vector<16x128xf32> -> vector<16x128xf32>
    %c0_38 = arith.constant 0 : index
    %c0_39 = arith.constant 0 : index
    %105 = vector.load %arg12[%c0_38, %c0_39] : memref<1x128xf32, #tpu.memory_space<vmem>>, vector<1x128xf32>
    %106 = vector.broadcast %105 : vector<1x128xf32> to vector<16x128xf32>
    %107 = arith.addf %104, %106 : vector<16x128xf32>
    %cst_40 = arith.constant 5.000000e-01 : f32
    %108 = vector.broadcast %cst_40 : f32 to vector<16x128xf32>
    %109 = arith.mulf %108, %107 : vector<16x128xf32>
    %cst_41 = arith.constant 4.471500e-02 : f32
    %110 = vector.broadcast %cst_41 : f32 to vector<16x128xf32>
    %111 = arith.mulf %110, %107 : vector<16x128xf32>
    %112 = arith.mulf %111, %107 : vector<16x128xf32>
    %113 = arith.mulf %112, %107 : vector<16x128xf32>
    %114 = arith.addf %107, %113 : vector<16x128xf32>
    %cst_42 = arith.constant 0.797884583 : f32
    %115 = vector.broadcast %cst_42 : f32 to vector<16x128xf32>
    %116 = arith.mulf %115, %114 : vector<16x128xf32>
    %117 = math.tanh %116 : vector<16x128xf32>
    %cst_43 = arith.constant 1.000000e+00 : f32
    %118 = vector.broadcast %cst_43 : f32 to vector<16x128xf32>
    %119 = arith.addf %118, %117 : vector<16x128xf32>
    %120 = arith.mulf %109, %119 : vector<16x128xf32>
    %c0_44 = arith.constant 0 : index
    %c0_45 = arith.constant 0 : index
    %121 = vector.load %arg13[%c0_44, %c0_45] : memref<128x32xf32, #tpu.memory_space<vmem>>, vector<128x32xf32>
    %cst_46 = arith.constant dense<0.000000e+00> : vector<16x32xf32>
    %122 = tpu.matmul %120, %121, %cst_46 {dimension_numbers = #tpu.dot_dimension_numbers<[1], [0], [0], [1], [0, 0, 1, 1], [], []>} : vector<16x128xf32>, vector<128x32xf32>, vector<16x32xf32> -> vector<16x32xf32>
    %c0_47 = arith.constant 0 : index
    %c0_48 = arith.constant 0 : index
    %123 = vector.load %arg14[%c0_47, %c0_48] : memref<1x32xf32, #tpu.memory_space<vmem>>, vector<1x32xf32>
    %124 = vector.broadcast %123 : vector<1x32xf32> to vector<16x32xf32>
    %125 = arith.addf %122, %124 : vector<16x32xf32>
    %126 = arith.addf %102, %125 : vector<16x32xf32>
    %c0_49 = arith.constant 0 : index
    %c0_50 = arith.constant 0 : index
    %127 = vector.load %arg15[%c0_49, %c0_50] : memref<1x32xf32, #tpu.memory_space<vmem>>, vector<1x32xf32>
    %c0_51 = arith.constant 0 : index
    %c0_52 = arith.constant 0 : index
    %128 = vector.load %arg16[%c0_51, %c0_52] : memref<1x32xf32, #tpu.memory_space<vmem>>, vector<1x32xf32>
    %cst_53 = arith.constant dense<0.000000e+00> : vector<16xf32>
    %129 = vector.multi_reduction <add>, %126, %cst_53 [1] : vector<16x32xf32> to vector<16xf32>
    %130 = vector.shape_cast %129 : vector<16xf32> to vector<16x1xf32>
    %cst_54 = arith.constant 3.200000e+01 : f32
    %131 = vector.broadcast %cst_54 : f32 to vector<16x1xf32>
    %132 = arith.divf %130, %131 : vector<16x1xf32>
    %133 = vector.broadcast %132 : vector<16x1xf32> to vector<16x32xf32>
    %134 = arith.subf %126, %133 : vector<16x32xf32>
    %135 = arith.mulf %134, %134 : vector<16x32xf32>
    %cst_55 = arith.constant dense<0.000000e+00> : vector<16xf32>
    %136 = vector.multi_reduction <add>, %135, %cst_55 [1] : vector<16x32xf32> to vector<16xf32>
    %137 = vector.shape_cast %136 : vector<16xf32> to vector<16x1xf32>
    %cst_56 = arith.constant 3.200000e+01 : f32
    %138 = vector.broadcast %cst_56 : f32 to vector<16x1xf32>
    %139 = arith.divf %137, %138 : vector<16x1xf32>
    %140 = vector.broadcast %132 : vector<16x1xf32> to vector<16x32xf32>
    %141 = arith.subf %126, %140 : vector<16x32xf32>
    %cst_57 = arith.constant 9.99999974E-6 : f32
    %142 = vector.broadcast %cst_57 : f32 to vector<16x1xf32>
    %143 = arith.addf %139, %142 : vector<16x1xf32>
    %144 = math.rsqrt %143 : vector<16x1xf32>
    %145 = vector.broadcast %144 : vector<16x1xf32> to vector<16x32xf32>
    %146 = arith.mulf %141, %145 : vector<16x32xf32>
    %147 = vector.broadcast %127 : vector<1x32xf32> to vector<16x32xf32>
    %148 = arith.mulf %146, %147 : vector<16x32xf32>
    %149 = vector.broadcast %128 : vector<1x32xf32> to vector<16x32xf32>
    %150 = arith.addf %148, %149 : vector<16x32xf32>
    %151 = vector.extract_strided_slice %150 {offsets = [0, 0], sizes = [1, 32], strides = [1, 1]} : vector<16x32xf32> to vector<1x32xf32>
    %152 = vector.extract_strided_slice %150 {offsets = [8, 0], sizes = [1, 32], strides = [1, 1]} : vector<16x32xf32> to vector<1x32xf32>
    %153 = tpu.concatenate %151, %152 in 0 : vector<1x32xf32>, vector<1x32xf32> -> vector<2x32xf32>
    %cst_58 = arith.constant 0.000000e+00 : f32
    %154 = vector.broadcast %cst_58 : f32 to vector<6x32xf32>
    %155 = tpu.concatenate %153, %154 in 0 : vector<2x32xf32>, vector<6x32xf32> -> vector<8x32xf32>
    %c0_59 = arith.constant 0 : index
    %c0_60 = arith.constant 0 : index
    %156 = vector.load %arg2[%c0_59, %c0_60] : memref<8x8xf32, #tpu.memory_space<vmem>>, vector<8x8xf32>
    %c0_61 = arith.constant 0 : index
    %c0_62 = arith.constant 0 : index
    %157 = vector.load %arg17[%c0_61, %c0_62] : memref<8x256xf32, #tpu.memory_space<vmem>>, vector<8x256xf32>
    %cst_63 = arith.constant dense<0.000000e+00> : vector<8x256xf32>
    %158 = tpu.matmul %156, %157, %cst_63 {dimension_numbers = #tpu.dot_dimension_numbers<[1], [0], [0], [1], [0, 0, 1, 1], [], []>} : vector<8x8xf32>, vector<8x256xf32>, vector<8x256xf32> -> vector<8x256xf32>
    %c0_64 = arith.constant 0 : index
    %c0_65 = arith.constant 0 : index
    %159 = vector.load %arg18[%c0_64, %c0_65] : memref<1x256xf32, #tpu.memory_space<vmem>>, vector<1x256xf32>
    %160 = vector.broadcast %159 : vector<1x256xf32> to vector<8x256xf32>
    %161 = arith.addf %158, %160 : vector<8x256xf32>
    %c0_66 = arith.constant 0 : index
    %c0_67 = arith.constant 0 : index
    %162 = vector.load %arg19[%c0_66, %c0_67] : memref<1x256xf32, #tpu.memory_space<vmem>>, vector<1x256xf32>
    %c0_68 = arith.constant 0 : index
    %c0_69 = arith.constant 0 : index
    %163 = vector.load %arg20[%c0_68, %c0_69] : memref<1x256xf32, #tpu.memory_space<vmem>>, vector<1x256xf32>
    %cst_70 = arith.constant dense<0.000000e+00> : vector<8xf32>
    %164 = vector.multi_reduction <add>, %161, %cst_70 [1] : vector<8x256xf32> to vector<8xf32>
    %165 = vector.shape_cast %164 : vector<8xf32> to vector<8x1xf32>
    %cst_71 = arith.constant 2.560000e+02 : f32
    %166 = vector.broadcast %cst_71 : f32 to vector<8x1xf32>
    %167 = arith.divf %165, %166 : vector<8x1xf32>
    %168 = vector.broadcast %167 : vector<8x1xf32> to vector<8x256xf32>
    %169 = arith.subf %161, %168 : vector<8x256xf32>
    %170 = arith.mulf %169, %169 : vector<8x256xf32>
    %cst_72 = arith.constant dense<0.000000e+00> : vector<8xf32>
    %171 = vector.multi_reduction <add>, %170, %cst_72 [1] : vector<8x256xf32> to vector<8xf32>
    %172 = vector.shape_cast %171 : vector<8xf32> to vector<8x1xf32>
    %cst_73 = arith.constant 2.560000e+02 : f32
    %173 = vector.broadcast %cst_73 : f32 to vector<8x1xf32>
    %174 = arith.divf %172, %173 : vector<8x1xf32>
    %175 = vector.broadcast %167 : vector<8x1xf32> to vector<8x256xf32>
    %176 = arith.subf %161, %175 : vector<8x256xf32>
    %cst_74 = arith.constant 9.99999974E-6 : f32
    %177 = vector.broadcast %cst_74 : f32 to vector<8x1xf32>
    %178 = arith.addf %174, %177 : vector<8x1xf32>
    %179 = math.rsqrt %178 : vector<8x1xf32>
    %180 = vector.broadcast %179 : vector<8x1xf32> to vector<8x256xf32>
    %181 = arith.mulf %176, %180 : vector<8x256xf32>
    %182 = vector.broadcast %162 : vector<1x256xf32> to vector<8x256xf32>
    %183 = arith.mulf %181, %182 : vector<8x256xf32>
    %184 = vector.broadcast %163 : vector<1x256xf32> to vector<8x256xf32>
    %185 = arith.addf %183, %184 : vector<8x256xf32>
    %cst_75 = arith.constant 5.000000e-01 : f32
    %186 = vector.broadcast %cst_75 : f32 to vector<8x256xf32>
    %187 = arith.mulf %186, %185 : vector<8x256xf32>
    %cst_76 = arith.constant 4.471500e-02 : f32
    %188 = vector.broadcast %cst_76 : f32 to vector<8x256xf32>
    %189 = arith.mulf %188, %185 : vector<8x256xf32>
    %190 = arith.mulf %189, %185 : vector<8x256xf32>
    %191 = arith.mulf %190, %185 : vector<8x256xf32>
    %192 = arith.addf %185, %191 : vector<8x256xf32>
    %cst_77 = arith.constant 0.797884583 : f32
    %193 = vector.broadcast %cst_77 : f32 to vector<8x256xf32>
    %194 = arith.mulf %193, %192 : vector<8x256xf32>
    %195 = math.tanh %194 : vector<8x256xf32>
    %cst_78 = arith.constant 1.000000e+00 : f32
    %196 = vector.broadcast %cst_78 : f32 to vector<8x256xf32>
    %197 = arith.addf %196, %195 : vector<8x256xf32>
    %198 = arith.mulf %187, %197 : vector<8x256xf32>
    %c0_79 = arith.constant 0 : index
    %c0_80 = arith.constant 0 : index
    %199 = vector.load %arg21[%c0_79, %c0_80] : memref<256x32xf32, #tpu.memory_space<vmem>>, vector<256x32xf32>
    %cst_81 = arith.constant dense<0.000000e+00> : vector<8x32xf32>
    %200 = tpu.matmul %198, %199, %cst_81 {dimension_numbers = #tpu.dot_dimension_numbers<[1], [0], [0], [1], [0, 0, 1, 1], [], []>} : vector<8x256xf32>, vector<256x32xf32>, vector<8x32xf32> -> vector<8x32xf32>
    %c0_82 = arith.constant 0 : index
    %c0_83 = arith.constant 0 : index
    %201 = vector.load %arg22[%c0_82, %c0_83] : memref<1x32xf32, #tpu.memory_space<vmem>>, vector<1x32xf32>
    %202 = vector.broadcast %201 : vector<1x32xf32> to vector<8x32xf32>
    %203 = arith.addf %200, %202 : vector<8x32xf32>
    %c0_84 = arith.constant 0 : index
    %c0_85 = arith.constant 0 : index
    %204 = vector.load %arg23[%c0_84, %c0_85] : memref<1x32xf32, #tpu.memory_space<vmem>>, vector<1x32xf32>
    %c0_86 = arith.constant 0 : index
    %c0_87 = arith.constant 0 : index
    %205 = vector.load %arg24[%c0_86, %c0_87] : memref<1x32xf32, #tpu.memory_space<vmem>>, vector<1x32xf32>
    %cst_88 = arith.constant dense<0.000000e+00> : vector<8xf32>
    %206 = vector.multi_reduction <add>, %203, %cst_88 [1] : vector<8x32xf32> to vector<8xf32>
    %207 = vector.shape_cast %206 : vector<8xf32> to vector<8x1xf32>
    %cst_89 = arith.constant 3.200000e+01 : f32
    %208 = vector.broadcast %cst_89 : f32 to vector<8x1xf32>
    %209 = arith.divf %207, %208 : vector<8x1xf32>
    %210 = vector.broadcast %209 : vector<8x1xf32> to vector<8x32xf32>
    %211 = arith.subf %203, %210 : vector<8x32xf32>
    %212 = arith.mulf %211, %211 : vector<8x32xf32>
    %cst_90 = arith.constant dense<0.000000e+00> : vector<8xf32>
    %213 = vector.multi_reduction <add>, %212, %cst_90 [1] : vector<8x32xf32> to vector<8xf32>
    %214 = vector.shape_cast %213 : vector<8xf32> to vector<8x1xf32>
    %cst_91 = arith.constant 3.200000e+01 : f32
    %215 = vector.broadcast %cst_91 : f32 to vector<8x1xf32>
    %216 = arith.divf %214, %215 : vector<8x1xf32>
    %217 = vector.broadcast %209 : vector<8x1xf32> to vector<8x32xf32>
    %218 = arith.subf %203, %217 : vector<8x32xf32>
    %cst_92 = arith.constant 9.99999974E-6 : f32
    %219 = vector.broadcast %cst_92 : f32 to vector<8x1xf32>
    %220 = arith.addf %216, %219 : vector<8x1xf32>
    %221 = math.rsqrt %220 : vector<8x1xf32>
    %222 = vector.broadcast %221 : vector<8x1xf32> to vector<8x32xf32>
    %223 = arith.mulf %218, %222 : vector<8x32xf32>
    %224 = vector.broadcast %204 : vector<1x32xf32> to vector<8x32xf32>
    %225 = arith.mulf %223, %224 : vector<8x32xf32>
    %226 = vector.broadcast %205 : vector<1x32xf32> to vector<8x32xf32>
    %227 = arith.addf %225, %226 : vector<8x32xf32>
    %cst_93 = arith.constant 5.000000e-01 : f32
    %228 = vector.broadcast %cst_93 : f32 to vector<8x32xf32>
    %229 = arith.mulf %228, %227 : vector<8x32xf32>
    %cst_94 = arith.constant 4.471500e-02 : f32
    %230 = vector.broadcast %cst_94 : f32 to vector<8x32xf32>
    %231 = arith.mulf %230, %227 : vector<8x32xf32>
    %232 = arith.mulf %231, %227 : vector<8x32xf32>
    %233 = arith.mulf %232, %227 : vector<8x32xf32>
    %234 = arith.addf %227, %233 : vector<8x32xf32>
    %cst_95 = arith.constant 0.797884583 : f32
    %235 = vector.broadcast %cst_95 : f32 to vector<8x32xf32>
    %236 = arith.mulf %235, %234 : vector<8x32xf32>
    %237 = math.tanh %236 : vector<8x32xf32>
    %cst_96 = arith.constant 1.000000e+00 : f32
    %238 = vector.broadcast %cst_96 : f32 to vector<8x32xf32>
    %239 = arith.addf %238, %237 : vector<8x32xf32>
    %240 = arith.mulf %229, %239 : vector<8x32xf32>
    %241 = arith.addf %155, %240 : vector<8x32xf32>
    %c0_97 = arith.constant 0 : index
    %c0_98 = arith.constant 0 : index
    %242 = vector.load %arg25[%c0_97, %c0_98] : memref<32x32xf32, #tpu.memory_space<vmem>>, vector<32x32xf32>
    %cst_99 = arith.constant dense<0.000000e+00> : vector<8x32xf32>
    %243 = tpu.matmul %241, %242, %cst_99 {dimension_numbers = #tpu.dot_dimension_numbers<[1], [0], [0], [1], [0, 0, 1, 1], [], []>} : vector<8x32xf32>, vector<32x32xf32>, vector<8x32xf32> -> vector<8x32xf32>
    %c0_100 = arith.constant 0 : index
    %c0_101 = arith.constant 0 : index
    %244 = vector.load %arg26[%c0_100, %c0_101] : memref<1x32xf32, #tpu.memory_space<vmem>>, vector<1x32xf32>
    %245 = vector.broadcast %244 : vector<1x32xf32> to vector<8x32xf32>
    %246 = arith.addf %243, %245 : vector<8x32xf32>
    %c0_102 = arith.constant 0 : index
    %c0_103 = arith.constant 0 : index
    %247 = vector.load %arg27[%c0_102, %c0_103] : memref<1x32xf32, #tpu.memory_space<vmem>>, vector<1x32xf32>
    %c0_104 = arith.constant 0 : index
    %c0_105 = arith.constant 0 : index
    %248 = vector.load %arg28[%c0_104, %c0_105] : memref<1x32xf32, #tpu.memory_space<vmem>>, vector<1x32xf32>
    %cst_106 = arith.constant dense<0.000000e+00> : vector<8xf32>
    %249 = vector.multi_reduction <add>, %246, %cst_106 [1] : vector<8x32xf32> to vector<8xf32>
    %250 = vector.shape_cast %249 : vector<8xf32> to vector<8x1xf32>
    %cst_107 = arith.constant 3.200000e+01 : f32
    %251 = vector.broadcast %cst_107 : f32 to vector<8x1xf32>
    %252 = arith.divf %250, %251 : vector<8x1xf32>
    %253 = vector.broadcast %252 : vector<8x1xf32> to vector<8x32xf32>
    %254 = arith.subf %246, %253 : vector<8x32xf32>
    %255 = arith.mulf %254, %254 : vector<8x32xf32>
    %cst_108 = arith.constant dense<0.000000e+00> : vector<8xf32>
    %256 = vector.multi_reduction <add>, %255, %cst_108 [1] : vector<8x32xf32> to vector<8xf32>
    %257 = vector.shape_cast %256 : vector<8xf32> to vector<8x1xf32>
    %cst_109 = arith.constant 3.200000e+01 : f32
    %258 = vector.broadcast %cst_109 : f32 to vector<8x1xf32>
    %259 = arith.divf %257, %258 : vector<8x1xf32>
    %260 = vector.broadcast %252 : vector<8x1xf32> to vector<8x32xf32>
    %261 = arith.subf %246, %260 : vector<8x32xf32>
    %cst_110 = arith.constant 9.99999974E-6 : f32
    %262 = vector.broadcast %cst_110 : f32 to vector<8x1xf32>
    %263 = arith.addf %259, %262 : vector<8x1xf32>
    %264 = math.rsqrt %263 : vector<8x1xf32>
    %265 = vector.broadcast %264 : vector<8x1xf32> to vector<8x32xf32>
    %266 = arith.mulf %261, %265 : vector<8x32xf32>
    %267 = vector.broadcast %247 : vector<1x32xf32> to vector<8x32xf32>
    %268 = arith.mulf %266, %267 : vector<8x32xf32>
    %269 = vector.broadcast %248 : vector<1x32xf32> to vector<8x32xf32>
    %270 = arith.addf %268, %269 : vector<8x32xf32>
    %cst_111 = arith.constant 5.000000e-01 : f32
    %271 = vector.broadcast %cst_111 : f32 to vector<8x32xf32>
    %272 = arith.mulf %271, %270 : vector<8x32xf32>
    %cst_112 = arith.constant 4.471500e-02 : f32
    %273 = vector.broadcast %cst_112 : f32 to vector<8x32xf32>
    %274 = arith.mulf %273, %270 : vector<8x32xf32>
    %275 = arith.mulf %274, %270 : vector<8x32xf32>
    %276 = arith.mulf %275, %270 : vector<8x32xf32>
    %277 = arith.addf %270, %276 : vector<8x32xf32>
    %cst_113 = arith.constant 0.797884583 : f32
    %278 = vector.broadcast %cst_113 : f32 to vector<8x32xf32>
    %279 = arith.mulf %278, %277 : vector<8x32xf32>
    %280 = math.tanh %279 : vector<8x32xf32>
    %cst_114 = arith.constant 1.000000e+00 : f32
    %281 = vector.broadcast %cst_114 : f32 to vector<8x32xf32>
    %282 = arith.addf %281, %280 : vector<8x32xf32>
    %283 = arith.mulf %272, %282 : vector<8x32xf32>
    %c0_115 = arith.constant 0 : index
    %c0_116 = arith.constant 0 : index
    %284 = vector.load %arg29[%c0_115, %c0_116] : memref<32x128xf32, #tpu.memory_space<vmem>>, vector<32x128xf32>
    %cst_117 = arith.constant dense<0.000000e+00> : vector<8x128xf32>
    %285 = tpu.matmul %283, %284, %cst_117 {dimension_numbers = #tpu.dot_dimension_numbers<[1], [0], [0], [1], [0, 0, 1, 1], [], []>} : vector<8x32xf32>, vector<32x128xf32>, vector<8x128xf32> -> vector<8x128xf32>
    %c0_118 = arith.constant 0 : index
    %c0_119 = arith.constant 0 : index
    %286 = vector.load %arg30[%c0_118, %c0_119] : memref<1x128xf32, #tpu.memory_space<vmem>>, vector<1x128xf32>
    %287 = vector.broadcast %286 : vector<1x128xf32> to vector<8x128xf32>
    %288 = arith.addf %285, %287 : vector<8x128xf32>
    %cst_120 = arith.constant dense<0xFF800000> : vector<8xf32>
    %289 = vector.multi_reduction <maximumf>, %288, %cst_120 [1] : vector<8x128xf32> to vector<8xf32>
    %290 = vector.shape_cast %289 : vector<8xf32> to vector<8x1xf32>
    %291 = vector.broadcast %290 : vector<8x1xf32> to vector<8x128xf32>
    %292 = arith.subf %288, %291 : vector<8x128xf32>
    %293 = math.exp %292 : vector<8x128xf32>
    %cst_121 = arith.constant dense<0.000000e+00> : vector<8xf32>
    %294 = vector.multi_reduction <add>, %293, %cst_121 [1] : vector<8x128xf32> to vector<8xf32>
    %295 = vector.shape_cast %294 : vector<8xf32> to vector<8x1xf32>
    %296 = vector.broadcast %295 : vector<8x1xf32> to vector<8x128xf32>
    %297 = arith.divf %293, %296 : vector<8x128xf32>
    %c0_122 = arith.constant 0 : index
    %c0_123 = arith.constant 0 : index
    %298 = vector.load %arg31[%c0_122, %c0_123] : memref<8x128xf32, #tpu.memory_space<vmem>>, vector<8x128xf32>
    tpu.vector_store %arg31[%c0_122, %c0_123], %297 {strides = array<i32>} : memref<8x128xf32, #tpu.memory_space<vmem>>, vector<8x128xf32>,
    return
  }
}

</mosaic_0001>

<llo_original>
// kernel: forward.1
$region0: #{forward.1}
  #allocation0 [shape = 'u32[]', space=smem, size = 0x4, offset = 0x4, fixed_abs, tag = 'smem constant byte address 0x4 - core index']
  #allocation1 [shape = 'u32[144,128]{1,0:T(1,128)}', space=vmem, size = 0x12000, scoped, tag = 'internal scratch']
  %s0 = inlined_call_operand.smem [shape: u32[32], index: -1, kind: input, shape index: {}]
  %s1 = sld [smem:[%s0]]
  %s2 = scalar_lea.smem %s0, 1
  %s3 = sld [smem:[%s2]]
  %s4 = scalar_lea.smem %s0, 2
  %s5 = sld [smem:[%s4]]
  %s6 = scalar_lea.smem %s0, 3
  %s7 = sld [smem:[%s6]]
  %s8 = scalar_lea.smem %s0, 4
  %s9 = sld [smem:[%s8]]
  %s10 = scalar_lea.smem %s0, 5
  %s11 = sld [smem:[%s10]]
  %s12 = scalar_lea.smem %s0, 6
  %s13 = sld [smem:[%s12]]
  %s14 = scalar_lea.smem %s0, 7
  %s15 = sld [smem:[%s14]]
  %s16 = scalar_lea.smem %s0, 8
  %s17 = sld [smem:[%s16]]
  %s18 = scalar_lea.smem %s0, 9
  %s19 = sld [smem:[%s18]]
  %s20 = scalar_lea.smem %s0, 10
  %s21 = sld [smem:[%s20]]
  %s22 = scalar_lea.smem %s0, 11
  %s23 = sld [smem:[%s22]]
  %s24 = scalar_lea.smem %s0, 12
  %s25 = sld [smem:[%s24]]
  %s26 = scalar_lea.smem %s0, 13
  %s27 = sld [smem:[%s26]]
  %s28 = scalar_lea.smem %s0, 14
  %s29 = sld [smem:[%s28]]
  %s30 = scalar_lea.smem %s0, 15
  %s31 = sld [smem:[%s30]]
  %s32 = scalar_lea.smem %s0, 16
  %s33 = sld [smem:[%s32]]
  %s34 = scalar_lea.smem %s0, 17
  %s35 = sld [smem:[%s34]]
  %s36 = scalar_lea.smem %s0, 18
  %s37 = sld [smem:[%s36]]
  %s38 = scalar_lea.smem %s0, 19
  %s39 = sld [smem:[%s38]]
  %s40 = scalar_lea.smem %s0, 20
  %s41 = sld [smem:[%s40]]
  %s42 = scalar_lea.smem %s0, 21
  %s43 = sld [smem:[%s42]]
  %s44 = scalar_lea.smem %s0, 22
  %s45 = sld [smem:[%s44]]
  %s46 = scalar_lea.smem %s0, 23
  %s47 = sld [smem:[%s46]]
  %s48 = scalar_lea.smem %s0, 24
  %s49 = sld [smem:[%s48]]
  %s50 = scalar_lea.smem %s0, 25
  %s51 = sld [smem:[%s50]]
  %s52 = scalar_lea.smem %s0, 26
  %s53 = sld [smem:[%s52]]
  %s54 = scalar_lea.smem %s0, 27
  %s55 = sld [smem:[%s54]]
  %s56 = scalar_lea.smem %s0, 28
  %s57 = sld [smem:[%s56]]
  %s58 = scalar_lea.smem %s0, 29
  %s59 = sld [smem:[%s58]]
  %s60 = scalar_lea.smem %s0, 30
  %s61 = sld [smem:[%s60]]
  %s62 = scalar_lea.smem %s0, 31
  %s63 = sld [smem:[%s62]]
  %s64 = sld [smem:[#allocation0]]
  $region134: #{forward.1} parent=0
    _
  %s66 = ssub.s32 1, %s64
  %s67 = scalar_select 0, %s66, %s64
  // Predicated region
  $region2: #{forward.1} parent=0 // pred_check
    _
  $region3: #{forward.1} parent=0 // pred_check_branch
    %69 = sbr.rel (0) target = $region5
  $region4: #{forward.1} parent=0 // pred_region
    _
  $region5: #{forward.1} parent=0 // pred_fallthru
    _
  // Predicated region
  $region6: #{forward.1} parent=0 // pred_check
    _
  $region7: #{forward.1} parent=0 // pred_check_branch
    %71 = sbr.rel (0) target = $region9
  $region8: #{forward.1} parent=0 // pred_region
    _
  $region9: #{forward.1} parent=0 // pred_fallthru
    _
  // Predicated region
  $region10: #{forward.1} parent=0 // pred_check
    _
  $region11: #{forward.1} parent=0 // pred_check_branch
    %73 = sbr.rel (0) target = $region13
  $region12: #{forward.1} parent=0 // pred_region
    _
  $region13: #{forward.1} parent=0 // pred_fallthru
    _
  // Predicated region
  $region14: #{forward.1} parent=0 // pred_check
    _
  $region15: #{forward.1} parent=0 // pred_check_branch
    %75 = sbr.rel (0) target = $region17
  $region16: #{forward.1} parent=0 // pred_region
    _
  $region17: #{forward.1} parent=0 // pred_fallthru
    _
  // Predicated region
  $region18: #{forward.1} parent=0 // pred_check
    _
  $region19: #{forward.1} parent=0 // pred_check_branch
    %77 = sbr.rel (0) target = $region21
  $region20: #{forward.1} parent=0 // pred_region
    _
  $region21: #{forward.1} parent=0 // pred_fallthru
    _
  // Predicated region
  $region22: #{forward.1} parent=0 // pred_check
    _
  $region23: #{forward.1} parent=0 // pred_check_branch
    %79 = sbr.rel (0) target = $region25
  $region24: #{forward.1} parent=0 // pred_region
    _
  $region25: #{forward.1} parent=0 // pred_fallthru
    _
  // Predicated region
  $region26: #{forward.1} parent=0 // pred_check
    _
  $region27: #{forward.1} parent=0 // pred_check_branch
    %81 = sbr.rel (0) target = $region29
  $region28: #{forward.1} parent=0 // pred_region
    _
  $region29: #{forward.1} parent=0 // pred_fallthru
    _
  // Predicated region
  $region30: #{forward.1} parent=0 // pred_check
    _
  $region31: #{forward.1} parent=0 // pred_check_branch
    %83 = sbr.rel (0) target = $region33
  $region32: #{forward.1} parent=0 // pred_region
    _
  $region33: #{forward.1} parent=0 // pred_fallthru
    _
  // Predicated region
  $region34: #{forward.1} parent=0 // pred_check
    _
  $region35: #{forward.1} parent=0 // pred_check_branch
    %85 = sbr.rel (0) target = $region37
  $region36: #{forward.1} parent=0 // pred_region
    _
  $region37: #{forward.1} parent=0 // pred_fallthru
    _
  // Predicated region
  $region38: #{forward.1} parent=0 // pred_check
    _
  $region39: #{forward.1} parent=0 // pred_check_branch
    %87 = sbr.rel (0) target = $region41
  $region40: #{forward.1} parent=0 // pred_region
    _
  $region41: #{forward.1} parent=0 // pred_fallthru
    _
  // Predicated region
  $region42: #{forward.1} parent=0 // pred_check
    _
  $region43: #{forward.1} parent=0 // pred_check_branch
    %89 = sbr.rel (0) target = $region45
  $region44: #{forward.1} parent=0 // pred_region
    _
  $region45: #{forward.1} parent=0 // pred_fallthru
    _
  // Predicated region
  $region46: #{forward.1} parent=0 // pred_check
    _
  $region47: #{forward.1} parent=0 // pred_check_branch
    %91 = sbr.rel (0) target = $region49
  $region48: #{forward.1} parent=0 // pred_region
    _
  $region49: #{forward.1} parent=0 // pred_fallthru
    _
  // Predicated region
  $region50: #{forward.1} parent=0 // pred_check
    _
  $region51: #{forward.1} parent=0 // pred_check_branch
    %93 = sbr.rel (0) target = $region53
  $region52: #{forward.1} parent=0 // pred_region
    _
  $region53: #{forward.1} parent=0 // pred_fallthru
    _
  // Predicated region
  $region54: #{forward.1} parent=0 // pred_check
    _
  $region55: #{forward.1} parent=0 // pred_check_branch
    %95 = sbr.rel (0) target = $region57
  $region56: #{forward.1} parent=0 // pred_region
    _
  $region57: #{forward.1} parent=0 // pred_fallthru
    _
  // Predicated region
  $region58: #{forward.1} parent=0 // pred_check
    _
  $region59: #{forward.1} parent=0 // pred_check_branch
    %97 = sbr.rel (0) target = $region61
  $region60: #{forward.1} parent=0 // pred_region
    _
  $region61: #{forward.1} parent=0 // pred_fallthru
    _
  // Predicated region
  $region62: #{forward.1} parent=0 // pred_check
    _
  $region63: #{forward.1} parent=0 // pred_check_branch
    %99 = sbr.rel (0) target = $region65
  $region64: #{forward.1} parent=0 // pred_region
    _
  $region65: #{forward.1} parent=0 // pred_fallthru
    _
  // Predicated region
  $region66: #{forward.1} parent=0 // pred_check
    _
  $region67: #{forward.1} parent=0 // pred_check_branch
    %101 = sbr.rel (0) target = $region69
  $region68: #{forward.1} parent=0 // pred_region
    _
  $region69: #{forward.1} parent=0 // pred_fallthru
    _
  // Predicated region
  $region70: #{forward.1} parent=0 // pred_check
    _
  $region71: #{forward.1} parent=0 // pred_check_branch
    %103 = sbr.rel (0) target = $region73
  $region72: #{forward.1} parent=0 // pred_region
    _
  $region73: #{forward.1} parent=0 // pred_fallthru
    _
  // Predicated region
  $region74: #{forward.1} parent=0 // pred_check
    _
  $region75: #{forward.1} parent=0 // pred_check_branch
    %105 = sbr.rel (0) target = $region77
  $region76: #{forward.1} parent=0 // pred_region
    _
  $region77: #{forward.1} parent=0 // pred_fallthru
    _
  // Predicated region
  $region78: #{forward.1} parent=0 // pred_check
    _
  $region79: #{forward.1} parent=0 // pred_check_branch
    %107 = sbr.rel (0) target = $region81
  $region80: #{forward.1} parent=0 // pred_region
    _
  $region81: #{forward.1} parent=0 // pred_fallthru
    _
  // Predicated region
  $region82: #{forward.1} parent=0 // pred_check
    _
  $region83: #{forward.1} parent=0 // pred_check_branch
    %109 = sbr.rel (0) target = $region85
  $region84: #{forward.1} parent=0 // pred_region
    _
  $region85: #{forward.1} parent=0 // pred_fallthru
    _
  // Predicated region
  $region86: #{forward.1} parent=0 // pred_check
    _
  $region87: #{forward.1} parent=0 // pred_check_branch
    %111 = sbr.rel (0) target = $region89
  $region88: #{forward.1} parent=0 // pred_region
    _
  $region89: #{forward.1} parent=0 // pred_fallthru
    _
  // Predicated region
  $region90: #{forward.1} parent=0 // pred_check
    _
  $region91: #{forward.1} parent=0 // pred_check_branch
    %113 = sbr.rel (0) target = $region93
  $region92: #{forward.1} parent=0 // pred_region
    _
  $region93: #{forward.1} parent=0 // pred_fallthru
    _
  // Predicated region
  $region94: #{forward.1} parent=0 // pred_check
    _
  $region95: #{forward.1} parent=0 // pred_check_branch
    %115 = sbr.rel (0) target = $region97
  $region96: #{forward.1} parent=0 // pred_region
    _
  $region97: #{forward.1} parent=0 // pred_fallthru
    _
  // Predicated region
  $region98: #{forward.1} parent=0 // pred_check
    _
  $region99: #{forward.1} parent=0 // pred_check_branch
    %117 = sbr.rel (0) target = $region101
  $region100: #{forward.1} parent=0 // pred_region
    _
  $region101: #{forward.1} parent=0 // pred_fallthru
    _
  // Predicated region
  $region102: #{forward.1} parent=0 // pred_check
    _
  $region103: #{forward.1} parent=0 // pred_check_branch
    %119 = sbr.rel (0) target = $region105
  $region104: #{forward.1} parent=0 // pred_region
    _
  $region105: #{forward.1} parent=0 // pred_fallthru
    _
  // Predicated region
  $region106: #{forward.1} parent=0 // pred_check
    _
  $region107: #{forward.1} parent=0 // pred_check_branch
    %121 = sbr.rel (0) target = $region109
  $region108: #{forward.1} parent=0 // pred_region
    _
  $region109: #{forward.1} parent=0 // pred_fallthru
    _
  // Predicated region
  $region110: #{forward.1} parent=0 // pred_check
    _
  $region111: #{forward.1} parent=0 // pred_check_branch
    %123 = sbr.rel (0) target = $region113
  $region112: #{forward.1} parent=0 // pred_region
    _
  $region113: #{forward.1} parent=0 // pred_fallthru
    _
  // Predicated region
  $region114: #{forward.1} parent=0 // pred_check
    _
  $region115: #{forward.1} parent=0 // pred_check_branch
    %125 = sbr.rel (0) target = $region117
  $region116: #{forward.1} parent=0 // pred_region
    _
  $region117: #{forward.1} parent=0 // pred_fallthru
    _
  // Predicated region
  $region118: #{forward.1} parent=0 // pred_check
    _
  $region119: #{forward.1} parent=0 // pred_check_branch
    %127 = sbr.rel (0) target = $region121
  $region120: #{forward.1} parent=0 // pred_region
    _
  $region121: #{forward.1} parent=0 // pred_fallthru
    _
  // Predicated region
  $region122: #{forward.1} parent=0 // pred_check
    _
  $region123: #{forward.1} parent=0 // pred_check_branch
    %129 = sbr.rel (0) target = $region125
  $region124: #{forward.1} parent=0 // pred_region
    _
  $region125: #{forward.1} parent=0 // pred_fallthru
    _
  %v130 = vld [vmem:[%s1] sm:$0xff]
  %v131 = vld [vmem:[%s1 + $0x8] sm:$0xff]
  %v132 = vld [vmem:[%s7] sm:$0x1]
  %v133 = vld [vmem:[%s9] sm:$0x1]
  %vm134 = vcmask 261120
  %v135 = vsel %vm134, %v130, 0.0
  %136 = vadd.xlane.f32.xlu0 %v135
  %v137 = vpop.xlane.xlu0 %136
  %v138 = vsel %vm134, %v131, 0.0
  %139 = vadd.xlane.f32.xlu0 %v138
  %v140 = vpop.xlane.xlu0 %139
  %v141 = vrcp.pop 32.0
  %v142 = vmul.f32 %v137, %v141
  %v143 = vmul.f32 %v140, %v141
  %v144 = vsub.f32 %v130, %v142
  %v145 = vsub.f32 %v131, %v143
  %v146 = vmul.f32 %v144, %v144
  %v147 = vmul.f32 %v145, %v145
  %v148 = vsel %vm134, %v146, 0.0
  %149 = vadd.xlane.f32.xlu0 %v148
  %v150 = vpop.xlane.xlu0 %149
  %v151 = vsel %vm134, %v147, 0.0
  %152 = vadd.xlane.f32.xlu0 %v151
  %v153 = vpop.xlane.xlu0 %152
  %v154 = vmul.f32 %v150, %v141
  %v155 = vmul.f32 %v153, %v141
  %v156 = vadd.f32 %v154, 1e-05
  %v157 = vadd.f32 %v155, 1e-05
  %v158 = vrsqrt.pop %v156
  %v159 = vrsqrt.pop %v157
  %v160 = vmul.f32 %v144, %v158
  %v161 = vmul.f32 %v145, %v159
  %v163 = vlaneseq
  %v164 = vshrl.u32 %v163, 7
  %v165 = vsub.s32 0, %v164
  %v166 = vrot.slane %v132, %v165
  %v168 = vmul.f32 %v160, %v166
  %v169 = vmul.f32 %v161, %v166
  %v171 = vlaneseq
  %v172 = vshrl.u32 %v171, 7
  %v173 = vsub.s32 0, %v172
  %v174 = vrot.slane %v133, %v173
  %v176 = vadd.f32 %v168, %v174
  %v177 = vadd.f32 %v169, %v174
  %v178 = vld [vmem:[%s11] sm:$0xff]
  %v179 = vld [vmem:[%s11 + $0x8] sm:$0xff]
  %v180 = vld [vmem:[%s11 + $0x10] sm:$0xff]
  %v181 = vld [vmem:[%s11 + $0x18] sm:$0xff]
  %v182 = vld [vmem:[%s13] sm:$0x1]
  %v184 = vlaneseq
  %v185 = vshrl.u32 %v184, 7
  %v186 = vsub.s32 0, %v185
  %v187 = vrot.slane %v182, %v186
  %v190 = vsel %vm134, %v176, 0
  %v193 = vsel %vm134, %v177, 0
  %195 = vmatprep.subr.mxu0 0.0
  %196 = vmatpush1.msra.mxu0 %v178
  %197 = vmatprep.subr.mxu0 0.0
  %198 = vmatpush1.msra.mxu0 %v179
  %199 = vmatprep.subr.mxu0 0.0
  %200 = vmatpush1.msra.mxu0 %v180
  %201 = vmatprep.subr.mxu0 0.0
  %202 = vmatpush1.msra.mxu0 %v181
  %203 = vmatprep.subr.mxu0 0.0
  %204 = vmatpush1.msra.mxu0 0.0
  %205 = vmatprep.subr.mxu0 0.0
  %206 = vmatpush1.msra.mxu0 0.0
  %207 = vmatprep.subr.mxu0 0.0
  %208 = vmatpush1.msra.mxu0 0.0
  %209 = vmatprep.subr.mxu0 0.0
  %210 = vmatpush1.msra.mxu0 0.0
  %211 = vmatprep.subr.mxu0 0.0
  %212 = vmatpush1.msra.mxu0 0.0
  %213 = vmatprep.subr.mxu0 0.0
  %214 = vmatpush1.msra.mxu0 0.0
  %215 = vmatprep.subr.mxu0 0.0
  %216 = vmatpush1.msra.mxu0 0.0
  %217 = vmatprep.subr.mxu0 0.0
  %218 = vmatpush1.msra.mxu0 0.0
  %219 = vmatprep.subr.mxu0 0.0
  %220 = vmatpush1.msra.mxu0 0.0
  %221 = vmatprep.subr.mxu0 0.0
  %222 = vmatpush1.msra.mxu0 0.0
  %223 = vmatprep.subr.mxu0 0.0
  %224 = vmatpush1.msra.mxu0 0.0
  %225 = vmatprep.subr.mxu0 0.0
  %226 = vmatpush1.msra.mxu0 0.0
  %227 = vmatprep.subr.mxu0 0.0
  %228 = vmatpush1.msra.mxu0 0.0
  %229 = vmatprep.subr.mxu0 0.0
  %230 = vmatpush1.msra.mxu0 0.0
  %231 = vmatprep.subr.mxu0 0.0
  %232 = vmatpush1.msra.mxu0 0.0
  %233 = vmatprep.subr.mxu0 0.0
  %234 = vmatpush1.msra.mxu0 0.0
  %235 = vmatprep.subr.mxu0 0.0
  %236 = vmatpush1.msra.mxu0 0.0
  %237 = vmatprep.subr.mxu0 0.0
  %238 = vmatpush1.msra.mxu0 0.0
  %239 = vmatprep.subr.mxu0 0.0
  %240 = vmatpush1.msra.mxu0 0.0
  %241 = vmatprep.subr.mxu0 0.0
  %242 = vmatpush1.msra.mxu0 0.0
  %243 = vmatprep.subr.mxu0 0.0
  %244 = vmatpush1.msra.mxu0 0.0
  %245 = vmatprep.subr.mxu0 0.0
  %246 = vmatpush1.msra.mxu0 0.0
  %247 = vmatprep.subr.mxu0 0.0
  %248 = vmatpush1.msra.mxu0 0.0
  %249 = vmatprep.subr.mxu0 0.0
  %250 = vmatpush1.msra.mxu0 0.0
  %251 = vmatprep.subr.mxu0 0.0
  %252 = vmatpush1.msra.mxu0 0.0
  %253 = vmatprep.subr.mxu0 0.0
  %254 = vmatpush1.msra.mxu0 0.0
  %255 = vmatprep.subr.mxu0 0.0
  %256 = vmatpush1.msra.mxu0 0.0
  %257 = vmatprep.subr.mxu0 0.0
  %258 = vmatpush1.msra.mxu0 0.0
  %259 = vmatprep.mubr.f32.mxu0 0.0
  %260 = vmatmul.mubr.f32.gmra.mrb[0].mxu0 %v190
  %v261 = vpop.f32.mrb[0].mxu0
  %v262 = vadd.f32 %v187, %v261
  %v263 = vpop.f32.mrb[0].mxu0
  %264 = vmatprep.mubr.f32.mxu0 0.0
  %265 = vmatmul.mubr.f32.gmra.mrb[0].mxu0 %v193
  %v266 = vpop.f32.mrb[0].mxu0
  %v267 = vadd.f32 %v187, %v266
  %v268 = vpop.f32.mrb[0].mxu0
  %269 = vdwg.mxu0
  %272 = vrot.lane.b32.xlu0 %v262, 120
  %v273 = vpop.permute.xlu0 %272
  %274 = vrot.lane.b32.xlu0 %v267, 120
  %v275 = vpop.permute.xlu0 %274
  %276 = vrot.lane.b32.xlu0 %v262, 112
  %v277 = vpop.permute.xlu0 %276
  %278 = vrot.lane.b32.xlu0 %v267, 112
  %v279 = vpop.permute.xlu0 %278
  %280 = vrot.lane.b32.xlu0 %v262, 104
  %v281 = vpop.permute.xlu0 %280
  %282 = vrot.lane.b32.xlu0 %v267, 104
  %v283 = vpop.permute.xlu0 %282
  %v284 = vld [vmem:[%s3] sm:$0x1]
  %v285 = vld [vmem:[%s3 + $0x1] sm:$0x1]
  %v288 = vlaneseq
  %v289 = vshrl.u32 %v288, 7
  %v290 = vsub.s32 0, %v289
  %v291 = vrot.slane %v284, %v290
  %v292 = vlaneseq
  %v293 = vshrl.u32 %v292, 7
  %v294 = vsub.s32 0, %v293
  %v295 = vrot.slane %v285, %v294
  %298 = vrot.lane.b32.xlu0 %v262, 96
  %v299 = vpop.permute.xlu0 %298
  %vm300 = vcmask 64512
  %v301 = vsel %vm300, %v262, 0
  %v303 = vsel %vm300, %v299, 0
  %305 = vmatprep.subr.mxu0 0.0
  %306 = vmatpush1.xpose.msra.mxu0 %v303
  %307 = vmatprep.subr.mxu0 0.0
  %308 = vmatpush1.xpose.msra.mxu0 0.0
  %309 = vmatprep.subr.mxu0 0.0
  %310 = vmatpush1.xpose.msra.mxu0 0.0
  %311 = vmatprep.subr.mxu0 0.0
  %312 = vmatpush1.xpose.msra.mxu0 0.0
  %313 = vmatprep.subr.mxu0 0.0
  %314 = vmatpush1.xpose.msra.mxu0 0.0
  %315 = vmatprep.subr.mxu0 0.0
  %316 = vmatpush1.xpose.msra.mxu0 0.0
  %317 = vmatprep.subr.mxu0 0.0
  %318 = vmatpush1.xpose.msra.mxu0 0.0
  %319 = vmatprep.subr.mxu0 0.0
  %320 = vmatpush1.xpose.msra.mxu0 0.0
  %321 = vmatprep.subr.mxu0 0.0
  %322 = vmatpush1.xpose.msra.mxu0 0.0
  %323 = vmatprep.subr.mxu0 0.0
  %324 = vmatpush1.xpose.msra.mxu0 0.0
  %325 = vmatprep.subr.mxu0 0.0
  %326 = vmatpush1.xpose.msra.mxu0 0.0
  %327 = vmatprep.subr.mxu0 0.0
  %328 = vmatpush1.xpose.msra.mxu0 0.0
  %329 = vmatprep.subr.mxu0 0.0
  %330 = vmatpush1.xpose.msra.mxu0 0.0
  %331 = vmatprep.subr.mxu0 0.0
  %332 = vmatpush1.xpose.msra.mxu0 0.0
  %333 = vmatprep.subr.mxu0 0.0
  %334 = vmatpush1.xpose.msra.mxu0 0.0
  %335 = vmatprep.subr.mxu0 0.0
  %336 = vmatpush1.xpose.msra.mxu0 0.0
  %337 = vmatprep.subr.mxu0 0.0
  %338 = vmatpush1.xpose.msra.mxu0 0.0
  %339 = vmatprep.subr.mxu0 0.0
  %340 = vmatpush1.xpose.msra.mxu0 0.0
  %341 = vmatprep.subr.mxu0 0.0
  %342 = vmatpush1.xpose.msra.mxu0 0.0
  %343 = vmatprep.subr.mxu0 0.0
  %344 = vmatpush1.xpose.msra.mxu0 0.0
  %345 = vmatprep.subr.mxu0 0.0
  %346 = vmatpush1.xpose.msra.mxu0 0.0
  %347 = vmatprep.subr.mxu0 0.0
  %348 = vmatpush1.xpose.msra.mxu0 0.0
  %349 = vmatprep.subr.mxu0 0.0
  %350 = vmatpush1.xpose.msra.mxu0 0.0
  %351 = vmatprep.subr.mxu0 0.0
  %352 = vmatpush1.xpose.msra.mxu0 0.0
  %353 = vmatprep.subr.mxu0 0.0
  %354 = vmatpush1.xpose.msra.mxu0 0.0
  %355 = vmatprep.subr.mxu0 0.0
  %356 = vmatpush1.xpose.msra.mxu0 0.0
  %357 = vmatprep.subr.mxu0 0.0
  %358 = vmatpush1.xpose.msra.mxu0 0.0
  %359 = vmatprep.subr.mxu0 0.0
  %360 = vmatpush1.xpose.msra.mxu0 0.0
  %361 = vmatprep.subr.mxu0 0.0
  %362 = vmatpush1.xpose.msra.mxu0 0.0
  %363 = vmatprep.subr.mxu0 0.0
  %364 = vmatpush1.xpose.msra.mxu0 0.0
  %365 = vmatprep.subr.mxu0 0.0
  %366 = vmatpush1.xpose.msra.mxu0 0.0
  %367 = vmatprep.subr.mxu0 0.0
  %368 = vmatpush1.xpose.msra.mxu0 0.0
  %369 = vmatprep.mubr.f32.mxu0 0.0
  %370 = vmatmul.mubr.f32.gmra.mrb[0].mxu0 %v301
  %v371 = vpop.f32.mrb[0].mxu0
  %v372 = vadd.f32 %v291, %v371
  %v373 = vpop.f32.mrb[0].mxu0
  %374 = vdwg.mxu0
  %375 = vrot.lane.b32.xlu0 %v267, 96
  %v376 = vpop.permute.xlu0 %375
  %v377 = vsel %vm300, %v267, 0
  %v379 = vsel %vm300, %v376, 0
  %381 = vmatprep.subr.mxu0 0.0
  %382 = vmatpush1.xpose.msra.mxu0 %v379
  %383 = vmatprep.subr.mxu0 0.0
  %384 = vmatpush1.xpose.msra.mxu0 0.0
  %385 = vmatprep.subr.mxu0 0.0
  %386 = vmatpush1.xpose.msra.mxu0 0.0
  %387 = vmatprep.subr.mxu0 0.0
  %388 = vmatpush1.xpose.msra.mxu0 0.0
  %389 = vmatprep.subr.mxu0 0.0
  %390 = vmatpush1.xpose.msra.mxu0 0.0
  %391 = vmatprep.subr.mxu0 0.0
  %392 = vmatpush1.xpose.msra.mxu0 0.0
  %393 = vmatprep.subr.mxu0 0.0
  %394 = vmatpush1.xpose.msra.mxu0 0.0
  %395 = vmatprep.subr.mxu0 0.0
  %396 = vmatpush1.xpose.msra.mxu0 0.0
  %397 = vmatprep.subr.mxu0 0.0
  %398 = vmatpush1.xpose.msra.mxu0 0.0
  %399 = vmatprep.subr.mxu0 0.0
  %400 = vmatpush1.xpose.msra.mxu0 0.0
  %401 = vmatprep.subr.mxu0 0.0
  %402 = vmatpush1.xpose.msra.mxu0 0.0
  %403 = vmatprep.subr.mxu0 0.0
  %404 = vmatpush1.xpose.msra.mxu0 0.0
  %405 = vmatprep.subr.mxu0 0.0
  %406 = vmatpush1.xpose.msra.mxu0 0.0
  %407 = vmatprep.subr.mxu0 0.0
  %408 = vmatpush1.xpose.msra.mxu0 0.0
  %409 = vmatprep.subr.mxu0 0.0
  %410 = vmatpush1.xpose.msra.mxu0 0.0
  %411 = vmatprep.subr.mxu0 0.0
  %412 = vmatpush1.xpose.msra.mxu0 0.0
  %413 = vmatprep.subr.mxu0 0.0
  %414 = vmatpush1.xpose.msra.mxu0 0.0
  %415 = vmatprep.subr.mxu0 0.0
  %416 = vmatpush1.xpose.msra.mxu0 0.0
  %417 = vmatprep.subr.mxu0 0.0
  %418 = vmatpush1.xpose.msra.mxu0 0.0
  %419 = vmatprep.subr.mxu0 0.0
  %420 = vmatpush1.xpose.msra.mxu0 0.0
  %421 = vmatprep.subr.mxu0 0.0
  %422 = vmatpush1.xpose.msra.mxu0 0.0
  %423 = vmatprep.subr.mxu0 0.0
  %424 = vmatpush1.xpose.msra.mxu0 0.0
  %425 = vmatprep.subr.mxu0 0.0
  %426 = vmatpush1.xpose.msra.mxu0 0.0
  %427 = vmatprep.subr.mxu0 0.0
  %428 = vmatpush1.xpose.msra.mxu0 0.0
  %429 = vmatprep.subr.mxu0 0.0
  %430 = vmatpush1.xpose.msra.mxu0 0.0
  %431 = vmatprep.subr.mxu0 0.0
  %432 = vmatpush1.xpose.msra.mxu0 0.0
  %433 = vmatprep.subr.mxu0 0.0
  %434 = vmatpush1.xpose.msra.mxu0 0.0
  %435 = vmatprep.subr.mxu0 0.0
  %436 = vmatpush1.xpose.msra.mxu0 0.0
  %437 = vmatprep.subr.mxu0 0.0
  %438 = vmatpush1.xpose.msra.mxu0 0.0
  %439 = vmatprep.subr.mxu0 0.0
  %440 = vmatpush1.xpose.msra.mxu0 0.0
  %441 = vmatprep.subr.mxu0 0.0
  %442 = vmatpush1.xpose.msra.mxu0 0.0
  %443 = vmatprep.subr.mxu0 0.0
  %444 = vmatpush1.xpose.msra.mxu0 0.0
  %445 = vmatprep.mubr.f32.mxu0 0.0
  %446 = vmatmul.mubr.f32.gmra.mrb[0].mxu0 %v377
  %v447 = vpop.f32.mrb[0].mxu0
  %v448 = vadd.f32 %v295, %v447
  %v449 = vpop.f32.mrb[0].mxu0
  %450 = vdwg.mxu0
  %451 = vrot.lane.b32.xlu0 %v273, 96
  %v452 = vpop.permute.xlu0 %451
  %v453 = vsel %vm300, %v273, 0
  %v455 = vsel %vm300, %v452, 0
  %457 = vmatprep.subr.mxu0 0.0
  %458 = vmatpush1.xpose.msra.mxu0 %v455
  %459 = vmatprep.subr.mxu0 0.0
  %460 = vmatpush1.xpose.msra.mxu0 0.0
  %461 = vmatprep.subr.mxu0 0.0
  %462 = vmatpush1.xpose.msra.mxu0 0.0
  %463 = vmatprep.subr.mxu0 0.0
  %464 = vmatpush1.xpose.msra.mxu0 0.0
  %465 = vmatprep.subr.mxu0 0.0
  %466 = vmatpush1.xpose.msra.mxu0 0.0
  %467 = vmatprep.subr.mxu0 0.0
  %468 = vmatpush1.xpose.msra.mxu0 0.0
  %469 = vmatprep.subr.mxu0 0.0
  %470 = vmatpush1.xpose.msra.mxu0 0.0
  %471 = vmatprep.subr.mxu0 0.0
  %472 = vmatpush1.xpose.msra.mxu0 0.0
  %473 = vmatprep.subr.mxu0 0.0
  %474 = vmatpush1.xpose.msra.mxu0 0.0
  %475 = vmatprep.subr.mxu0 0.0
  %476 = vmatpush1.xpose.msra.mxu0 0.0
  %477 = vmatprep.subr.mxu0 0.0
  %478 = vmatpush1.xpose.msra.mxu0 0.0
  %479 = vmatprep.subr.mxu0 0.0
  %480 = vmatpush1.xpose.msra.mxu0 0.0
  %481 = vmatprep.subr.mxu0 0.0
  %482 = vmatpush1.xpose.msra.mxu0 0.0
  %483 = vmatprep.subr.mxu0 0.0
  %484 = vmatpush1.xpose.msra.mxu0 0.0
  %485 = vmatprep.subr.mxu0 0.0
  %486 = vmatpush1.xpose.msra.mxu0 0.0
  %487 = vmatprep.subr.mxu0 0.0
  %488 = vmatpush1.xpose.msra.mxu0 0.0
  %489 = vmatprep.subr.mxu0 0.0
  %490 = vmatpush1.xpose.msra.mxu0 0.0
  %491 = vmatprep.subr.mxu0 0.0
  %492 = vmatpush1.xpose.msra.mxu0 0.0
  %493 = vmatprep.subr.mxu0 0.0
  %494 = vmatpush1.xpose.msra.mxu0 0.0
  %495 = vmatprep.subr.mxu0 0.0
  %496 = vmatpush1.xpose.msra.mxu0 0.0
  %497 = vmatprep.subr.mxu0 0.0
  %498 = vmatpush1.xpose.msra.mxu0 0.0
  %499 = vmatprep.subr.mxu0 0.0
  %500 = vmatpush1.xpose.msra.mxu0 0.0
  %501 = vmatprep.subr.mxu0 0.0
  %502 = vmatpush1.xpose.msra.mxu0 0.0
  %503 = vmatprep.subr.mxu0 0.0
  %504 = vmatpush1.xpose.msra.mxu0 0.0
  %505 = vmatprep.subr.mxu0 0.0
  %506 = vmatpush1.xpose.msra.mxu0 0.0
  %507 = vmatprep.subr.mxu0 0.0
  %508 = vmatpush1.xpose.msra.mxu0 0.0
  %509 = vmatprep.subr.mxu0 0.0
  %510 = vmatpush1.xpose.msra.mxu0 0.0
  %511 = vmatprep.subr.mxu0 0.0
  %512 = vmatpush1.xpose.msra.mxu0 0.0
  %513 = vmatprep.subr.mxu0 0.0
  %514 = vmatpush1.xpose.msra.mxu0 0.0
  %515 = vmatprep.subr.mxu0 0.0
  %516 = vmatpush1.xpose.msra.mxu0 0.0
  %517 = vmatprep.subr.mxu0 0.0
  %518 = vmatpush1.xpose.msra.mxu0 0.0
  %519 = vmatprep.subr.mxu0 0.0
  %520 = vmatpush1.xpose.msra.mxu0 0.0
  %521 = vmatprep.mubr.f32.mxu0 0.0
  %522 = vmatmul.mubr.f32.gmra.mrb[0].mxu0 %v453
  %v523 = vpop.f32.mrb[0].mxu0
  %v524 = vadd.f32 %v291, %v523
  %v525 = vpop.f32.mrb[0].mxu0
  %526 = vdwg.mxu0
  %527 = vrot.lane.b32.xlu0 %v275, 96
  %v528 = vpop.permute.xlu0 %527
  %v529 = vsel %vm300, %v275, 0
  %v531 = vsel %vm300, %v528, 0
  %533 = vmatprep.subr.mxu0 0.0
  %534 = vmatpush1.xpose.msra.mxu0 %v531
  %535 = vmatprep.subr.mxu0 0.0
  %536 = vmatpush1.xpose.msra.mxu0 0.0
  %537 = vmatprep.subr.mxu0 0.0
  %538 = vmatpush1.xpose.msra.mxu0 0.0
  %539 = vmatprep.subr.mxu0 0.0
  %540 = vmatpush1.xpose.msra.mxu0 0.0
  %541 = vmatprep.subr.mxu0 0.0
  %542 = vmatpush1.xpose.msra.mxu0 0.0
  %543 = vmatprep.subr.mxu0 0.0
  %544 = vmatpush1.xpose.msra.mxu0 0.0
  %545 = vmatprep.subr.mxu0 0.0
  %546 = vmatpush1.xpose.msra.mxu0 0.0
  %547 = vmatprep.subr.mxu0 0.0
  %548 = vmatpush1.xpose.msra.mxu0 0.0
  %549 = vmatprep.subr.mxu0 0.0
  %550 = vmatpush1.xpose.msra.mxu0 0.0
  %551 = vmatprep.subr.mxu0 0.0
  %552 = vmatpush1.xpose.msra.mxu0 0.0
  %553 = vmatprep.subr.mxu0 0.0
  %554 = vmatpush1.xpose.msra.mxu0 0.0
  %555 = vmatprep.subr.mxu0 0.0
  %556 = vmatpush1.xpose.msra.mxu0 0.0
  %557 = vmatprep.subr.mxu0 0.0
  %558 = vmatpush1.xpose.msra.mxu0 0.0
  %559 = vmatprep.subr.mxu0 0.0
  %560 = vmatpush1.xpose.msra.mxu0 0.0
  %561 = vmatprep.subr.mxu0 0.0
  %562 = vmatpush1.xpose.msra.mxu0 0.0
  %563 = vmatprep.subr.mxu0 0.0
  %564 = vmatpush1.xpose.msra.mxu0 0.0
  %565 = vmatprep.subr.mxu0 0.0
  %566 = vmatpush1.xpose.msra.mxu0 0.0
  %567 = vmatprep.subr.mxu0 0.0
  %568 = vmatpush1.xpose.msra.mxu0 0.0
  %569 = vmatprep.subr.mxu0 0.0
  %570 = vmatpush1.xpose.msra.mxu0 0.0
  %571 = vmatprep.subr.mxu0 0.0
  %572 = vmatpush1.xpose.msra.mxu0 0.0
  %573 = vmatprep.subr.mxu0 0.0
  %574 = vmatpush1.xpose.msra.mxu0 0.0
  %575 = vmatprep.subr.mxu0 0.0
  %576 = vmatpush1.xpose.msra.mxu0 0.0
  %577 = vmatprep.subr.mxu0 0.0
  %578 = vmatpush1.xpose.msra.mxu0 0.0
  %579 = vmatprep.subr.mxu0 0.0
  %580 = vmatpush1.xpose.msra.mxu0 0.0
  %581 = vmatprep.subr.mxu0 0.0
  %582 = vmatpush1.xpose.msra.mxu0 0.0
  %583 = vmatprep.subr.mxu0 0.0
  %584 = vmatpush1.xpose.msra.mxu0 0.0
  %585 = vmatprep.subr.mxu0 0.0
  %586 = vmatpush1.xpose.msra.mxu0 0.0
  %587 = vmatprep.subr.mxu0 0.0
  %588 = vmatpush1.xpose.msra.mxu0 0.0
  %589 = vmatprep.subr.mxu0 0.0
  %590 = vmatpush1.xpose.msra.mxu0 0.0
  %591 = vmatprep.subr.mxu0 0.0
  %592 = vmatpush1.xpose.msra.mxu0 0.0
  %593 = vmatprep.subr.mxu0 0.0
  %594 = vmatpush1.xpose.msra.mxu0 0.0
  %595 = vmatprep.subr.mxu0 0.0
  %596 = vmatpush1.xpose.msra.mxu0 0.0
  %597 = vmatprep.mubr.f32.mxu0 0.0
  %598 = vmatmul.mubr.f32.gmra.mrb[0].mxu0 %v529
  %v599 = vpop.f32.mrb[0].mxu0
  %v600 = vadd.f32 %v295, %v599
  %v601 = vpop.f32.mrb[0].mxu0
  %602 = vdwg.mxu0
  %603 = vrot.lane.b32.xlu0 %v277, 96
  %v604 = vpop.permute.xlu0 %603
  %v605 = vsel %vm300, %v277, 0
  %v607 = vsel %vm300, %v604, 0
  %609 = vmatprep.subr.mxu0 0.0
  %610 = vmatpush1.xpose.msra.mxu0 %v607
  %611 = vmatprep.subr.mxu0 0.0
  %612 = vmatpush1.xpose.msra.mxu0 0.0
  %613 = vmatprep.subr.mxu0 0.0
  %614 = vmatpush1.xpose.msra.mxu0 0.0
  %615 = vmatprep.subr.mxu0 0.0
  %616 = vmatpush1.xpose.msra.mxu0 0.0
  %617 = vmatprep.subr.mxu0 0.0
  %618 = vmatpush1.xpose.msra.mxu0 0.0
  %619 = vmatprep.subr.mxu0 0.0
  %620 = vmatpush1.xpose.msra.mxu0 0.0
  %621 = vmatprep.subr.mxu0 0.0
  %622 = vmatpush1.xpose.msra.mxu0 0.0
  %623 = vmatprep.subr.mxu0 0.0
  %624 = vmatpush1.xpose.msra.mxu0 0.0
  %625 = vmatprep.subr.mxu0 0.0
  %626 = vmatpush1.xpose.msra.mxu0 0.0
  %627 = vmatprep.subr.mxu0 0.0
  %628 = vmatpush1.xpose.msra.mxu0 0.0
  %629 = vmatprep.subr.mxu0 0.0
  %630 = vmatpush1.xpose.msra.mxu0 0.0
  %631 = vmatprep.subr.mxu0 0.0
  %632 = vmatpush1.xpose.msra.mxu0 0.0
  %633 = vmatprep.subr.mxu0 0.0
  %634 = vmatpush1.xpose.msra.mxu0 0.0
  %635 = vmatprep.subr.mxu0 0.0
  %636 = vmatpush1.xpose.msra.mxu0 0.0
  %637 = vmatprep.subr.mxu0 0.0
  %638 = vmatpush1.xpose.msra.mxu0 0.0
  %639 = vmatprep.subr.mxu0 0.0
  %640 = vmatpush1.xpose.msra.mxu0 0.0
  %641 = vmatprep.subr.mxu0 0.0
  %642 = vmatpush1.xpose.msra.mxu0 0.0
  %643 = vmatprep.subr.mxu0 0.0
  %644 = vmatpush1.xpose.msra.mxu0 0.0
  %645 = vmatprep.subr.mxu0 0.0
  %646 = vmatpush1.xpose.msra.mxu0 0.0
  %647 = vmatprep.subr.mxu0 0.0
  %648 = vmatpush1.xpose.msra.mxu0 0.0
  %649 = vmatprep.subr.mxu0 0.0
  %650 = vmatpush1.xpose.msra.mxu0 0.0
  %651 = vmatprep.subr.mxu0 0.0
  %652 = vmatpush1.xpose.msra.mxu0 0.0
  %653 = vmatprep.subr.mxu0 0.0
  %654 = vmatpush1.xpose.msra.mxu0 0.0
  %655 = vmatprep.subr.mxu0 0.0
  %656 = vmatpush1.xpose.msra.mxu0 0.0
  %657 = vmatprep.subr.mxu0 0.0
  %658 = vmatpush1.xpose.msra.mxu0 0.0
  %659 = vmatprep.subr.mxu0 0.0
  %660 = vmatpush1.xpose.msra.mxu0 0.0
  %661 = vmatprep.subr.mxu0 0.0
  %662 = vmatpush1.xpose.msra.mxu0 0.0
  %663 = vmatprep.subr.mxu0 0.0
  %664 = vmatpush1.xpose.msra.mxu0 0.0
  %665 = vmatprep.subr.mxu0 0.0
  %666 = vmatpush1.xpose.msra.mxu0 0.0
  %667 = vmatprep.subr.mxu0 0.0
  %668 = vmatpush1.xpose.msra.mxu0 0.0
  %669 = vmatprep.subr.mxu0 0.0
  %670 = vmatpush1.xpose.msra.mxu0 0.0
  %671 = vmatprep.subr.mxu0 0.0
  %672 = vmatpush1.xpose.msra.mxu0 0.0
  %673 = vmatprep.mubr.f32.mxu0 0.0
  %674 = vmatmul.mubr.f32.gmra.mrb[0].mxu0 %v605
  %v675 = vpop.f32.mrb[0].mxu0
  %v676 = vadd.f32 %v291, %v675
  %v677 = vpop.f32.mrb[0].mxu0
  %678 = vdwg.mxu0
  %679 = vrot.lane.b32.xlu0 %v279, 96
  %v680 = vpop.permute.xlu0 %679
  %v681 = vsel %vm300, %v279, 0
  %v683 = vsel %vm300, %v680, 0
  %685 = vmatprep.subr.mxu0 0.0
  %686 = vmatpush1.xpose.msra.mxu0 %v683
  %687 = vmatprep.subr.mxu0 0.0
  %688 = vmatpush1.xpose.msra.mxu0 0.0
  %689 = vmatprep.subr.mxu0 0.0
  %690 = vmatpush1.xpose.msra.mxu0 0.0
  %691 = vmatprep.subr.mxu0 0.0
  %692 = vmatpush1.xpose.msra.mxu0 0.0
  %693 = vmatprep.subr.mxu0 0.0
  %694 = vmatpush1.xpose.msra.mxu0 0.0
  %695 = vmatprep.subr.mxu0 0.0
  %696 = vmatpush1.xpose.msra.mxu0 0.0
  %697 = vmatprep.subr.mxu0 0.0
  %698 = vmatpush1.xpose.msra.mxu0 0.0
  %699 = vmatprep.subr.mxu0 0.0
  %700 = vmatpush1.xpose.msra.mxu0 0.0
  %701 = vmatprep.subr.mxu0 0.0
  %702 = vmatpush1.xpose.msra.mxu0 0.0
  %703 = vmatprep.subr.mxu0 0.0
  %704 = vmatpush1.xpose.msra.mxu0 0.0
  %705 = vmatprep.subr.mxu0 0.0
  %706 = vmatpush1.xpose.msra.mxu0 0.0
  %707 = vmatprep.subr.mxu0 0.0
  %708 = vmatpush1.xpose.msra.mxu0 0.0
  %709 = vmatprep.subr.mxu0 0.0
  %710 = vmatpush1.xpose.msra.mxu0 0.0
  %711 = vmatprep.subr.mxu0 0.0
  %712 = vmatpush1.xpose.msra.mxu0 0.0
  %713 = vmatprep.subr.mxu0 0.0
  %714 = vmatpush1.xpose.msra.mxu0 0.0
  %715 = vmatprep.subr.mxu0 0.0
  %716 = vmatpush1.xpose.msra.mxu0 0.0
  %717 = vmatprep.subr.mxu0 0.0
  %718 = vmatpush1.xpose.msra.mxu0 0.0
  %719 = vmatprep.subr.mxu0 0.0
  %720 = vmatpush1.xpose.msra.mxu0 0.0
  %721 = vmatprep.subr.mxu0 0.0
  %722 = vmatpush1.xpose.msra.mxu0 0.0
  %723 = vmatprep.subr.mxu0 0.0
  %724 = vmatpush1.xpose.msra.mxu0 0.0
  %725 = vmatprep.subr.mxu0 0.0
  %726 = vmatpush1.xpose.msra.mxu0 0.0
  %727 = vmatprep.subr.mxu0 0.0
  %728 = vmatpush1.xpose.msra.mxu0 0.0
  %729 = vmatprep.subr.mxu0 0.0
  %730 = vmatpush1.xpose.msra.mxu0 0.0
  %731 = vmatprep.subr.mxu0 0.0
  %732 = vmatpush1.xpose.msra.mxu0 0.0
  %733 = vmatprep.subr.mxu0 0.0
  %734 = vmatpush1.xpose.msra.mxu0 0.0
  %735 = vmatprep.subr.mxu0 0.0
  %736 = vmatpush1.xpose.msra.mxu0 0.0
  %737 = vmatprep.subr.mxu0 0.0
  %738 = vmatpush1.xpose.msra.mxu0 0.0
  %739 = vmatprep.subr.mxu0 0.0
  %740 = vmatpush1.xpose.msra.mxu0 0.0
  %741 = vmatprep.subr.mxu0 0.0
  %742 = vmatpush1.xpose.msra.mxu0 0.0
  %743 = vmatprep.subr.mxu0 0.0
  %744 = vmatpush1.xpose.msra.mxu0 0.0
  %745 = vmatprep.subr.mxu0 0.0
  %746 = vmatpush1.xpose.msra.mxu0 0.0
  %747 = vmatprep.subr.mxu0 0.0
  %748 = vmatpush1.xpose.msra.mxu0 0.0
  %749 = vmatprep.mubr.f32.mxu0 0.0
  %750 = vmatmul.mubr.f32.gmra.mrb[0].mxu0 %v681
  %v751 = vpop.f32.mrb[0].mxu0
  %v752 = vadd.f32 %v295, %v751
  %v753 = vpop.f32.mrb[0].mxu0
  %754 = vdwg.mxu0
  %755 = vrot.lane.b32.xlu0 %v281, 96
  %v756 = vpop.permute.xlu0 %755
  %v757 = vsel %vm300, %v281, 0
  %v759 = vsel %vm300, %v756, 0
  %761 = vmatprep.subr.mxu0 0.0
  %762 = vmatpush1.xpose.msra.mxu0 %v759
  %763 = vmatprep.subr.mxu0 0.0
  %764 = vmatpush1.xpose.msra.mxu0 0.0
  %765 = vmatprep.subr.mxu0 0.0
  %766 = vmatpush1.xpose.msra.mxu0 0.0
  %767 = vmatprep.subr.mxu0 0.0
  %768 = vmatpush1.xpose.msra.mxu0 0.0
  %769 = vmatprep.subr.mxu0 0.0
  %770 = vmatpush1.xpose.msra.mxu0 0.0
  %771 = vmatprep.subr.mxu0 0.0
  %772 = vmatpush1.xpose.msra.mxu0 0.0
  %773 = vmatprep.subr.mxu0 0.0
  %774 = vmatpush1.xpose.msra.mxu0 0.0
  %775 = vmatprep.subr.mxu0 0.0
  %776 = vmatpush1.xpose.msra.mxu0 0.0
  %777 = vmatprep.subr.mxu0 0.0
  %778 = vmatpush1.xpose.msra.mxu0 0.0
  %779 = vmatprep.subr.mxu0 0.0
  %780 = vmatpush1.xpose.msra.mxu0 0.0
  %781 = vmatprep.subr.mxu0 0.0
  %782 = vmatpush1.xpose.msra.mxu0 0.0
  %783 = vmatprep.subr.mxu0 0.0
  %784 = vmatpush1.xpose.msra.mxu0 0.0
  %785 = vmatprep.subr.mxu0 0.0
  %786 = vmatpush1.xpose.msra.mxu0 0.0
  %787 = vmatprep.subr.mxu0 0.0
  %788 = vmatpush1.xpose.msra.mxu0 0.0
  %789 = vmatprep.subr.mxu0 0.0
  %790 = vmatpush1.xpose.msra.mxu0 0.0
  %791 = vmatprep.subr.mxu0 0.0
  %792 = vmatpush1.xpose.msra.mxu0 0.0
  %793 = vmatprep.subr.mxu0 0.0
  %794 = vmatpush1.xpose.msra.mxu0 0.0
  %795 = vmatprep.subr.mxu0 0.0
  %796 = vmatpush1.xpose.msra.mxu0 0.0
  %797 = vmatprep.subr.mxu0 0.0
  %798 = vmatpush1.xpose.msra.mxu0 0.0
  %799 = vmatprep.subr.mxu0 0.0
  %800 = vmatpush1.xpose.msra.mxu0 0.0
  %801 = vmatprep.subr.mxu0 0.0
  %802 = vmatpush1.xpose.msra.mxu0 0.0
  %803 = vmatprep.subr.mxu0 0.0
  %804 = vmatpush1.xpose.msra.mxu0 0.0
  %805 = vmatprep.subr.mxu0 0.0
  %806 = vmatpush1.xpose.msra.mxu0 0.0
  %807 = vmatprep.subr.mxu0 0.0
  %808 = vmatpush1.xpose.msra.mxu0 0.0
  %809 = vmatprep.subr.mxu0 0.0
  %810 = vmatpush1.xpose.msra.mxu0 0.0
  %811 = vmatprep.subr.mxu0 0.0
  %812 = vmatpush1.xpose.msra.mxu0 0.0
  %813 = vmatprep.subr.mxu0 0.0
  %814 = vmatpush1.xpose.msra.mxu0 0.0
  %815 = vmatprep.subr.mxu0 0.0
  %816 = vmatpush1.xpose.msra.mxu0 0.0
  %817 = vmatprep.subr.mxu0 0.0
  %818 = vmatpush1.xpose.msra.mxu0 0.0
  %819 = vmatprep.subr.mxu0 0.0
  %820 = vmatpush1.xpose.msra.mxu0 0.0
  %821 = vmatprep.subr.mxu0 0.0
  %822 = vmatpush1.xpose.msra.mxu0 0.0
  %823 = vmatprep.subr.mxu0 0.0
  %824 = vmatpush1.xpose.msra.mxu0 0.0
  %825 = vmatprep.mubr.f32.mxu0 0.0
  %826 = vmatmul.mubr.f32.gmra.mrb[0].mxu0 %v757
  %v827 = vpop.f32.mrb[0].mxu0
  %v828 = vadd.f32 %v291, %v827
  %v829 = vpop.f32.mrb[0].mxu0
  %830 = vdwg.mxu0
  %831 = vrot.lane.b32.xlu0 %v283, 96
  %v832 = vpop.permute.xlu0 %831
  %v833 = vsel %vm300, %v283, 0
  %v835 = vsel %vm300, %v832, 0
  %837 = vmatprep.subr.mxu0 0.0
  %838 = vmatpush1.xpose.msra.mxu0 %v835
  %839 = vmatprep.subr.mxu0 0.0
  %840 = vmatpush1.xpose.msra.mxu0 0.0
  %841 = vmatprep.subr.mxu0 0.0
  %842 = vmatpush1.xpose.msra.mxu0 0.0
  %843 = vmatprep.subr.mxu0 0.0
  %844 = vmatpush1.xpose.msra.mxu0 0.0
  %845 = vmatprep.subr.mxu0 0.0
  %846 = vmatpush1.xpose.msra.mxu0 0.0
  %847 = vmatprep.subr.mxu0 0.0
  %848 = vmatpush1.xpose.msra.mxu0 0.0
  %849 = vmatprep.subr.mxu0 0.0
  %850 = vmatpush1.xpose.msra.mxu0 0.0
  %851 = vmatprep.subr.mxu0 0.0
  %852 = vmatpush1.xpose.msra.mxu0 0.0
  %853 = vmatprep.subr.mxu0 0.0
  %854 = vmatpush1.xpose.msra.mxu0 0.0
  %855 = vmatprep.subr.mxu0 0.0
  %856 = vmatpush1.xpose.msra.mxu0 0.0
  %857 = vmatprep.subr.mxu0 0.0
  %858 = vmatpush1.xpose.msra.mxu0 0.0
  %859 = vmatprep.subr.mxu0 0.0
  %860 = vmatpush1.xpose.msra.mxu0 0.0
  %861 = vmatprep.subr.mxu0 0.0
  %862 = vmatpush1.xpose.msra.mxu0 0.0
  %863 = vmatprep.subr.mxu0 0.0
  %864 = vmatpush1.xpose.msra.mxu0 0.0
  %865 = vmatprep.subr.mxu0 0.0
  %866 = vmatpush1.xpose.msra.mxu0 0.0
  %867 = vmatprep.subr.mxu0 0.0
  %868 = vmatpush1.xpose.msra.mxu0 0.0
  %869 = vmatprep.subr.mxu0 0.0
  %870 = vmatpush1.xpose.msra.mxu0 0.0
  %871 = vmatprep.subr.mxu0 0.0
  %872 = vmatpush1.xpose.msra.mxu0 0.0
  %873 = vmatprep.subr.mxu0 0.0
  %874 = vmatpush1.xpose.msra.mxu0 0.0
  %875 = vmatprep.subr.mxu0 0.0
  %876 = vmatpush1.xpose.msra.mxu0 0.0
  %877 = vmatprep.subr.mxu0 0.0
  %878 = vmatpush1.xpose.msra.mxu0 0.0
  %879 = vmatprep.subr.mxu0 0.0
  %880 = vmatpush1.xpose.msra.mxu0 0.0
  %881 = vmatprep.subr.mxu0 0.0
  %882 = vmatpush1.xpose.msra.mxu0 0.0
  %883 = vmatprep.subr.mxu0 0.0
  %884 = vmatpush1.xpose.msra.mxu0 0.0
  %885 = vmatprep.subr.mxu0 0.0
  %886 = vmatpush1.xpose.msra.mxu0 0.0
  %887 = vmatprep.subr.mxu0 0.0
  %888 = vmatpush1.xpose.msra.mxu0 0.0
  %889 = vmatprep.subr.mxu0 0.0
  %890 = vmatpush1.xpose.msra.mxu0 0.0
  %891 = vmatprep.subr.mxu0 0.0
  %892 = vmatpush1.xpose.msra.mxu0 0.0
  %893 = vmatprep.subr.mxu0 0.0
  %894 = vmatpush1.xpose.msra.mxu0 0.0
  %895 = vmatprep.subr.mxu0 0.0
  %896 = vmatpush1.xpose.msra.mxu0 0.0
  %897 = vmatprep.subr.mxu0 0.0
  %898 = vmatpush1.xpose.msra.mxu0 0.0
  %899 = vmatprep.subr.mxu0 0.0
  %900 = vmatpush1.xpose.msra.mxu0 0.0
  %901 = vmatprep.mubr.f32.mxu0 0.0
  %902 = vmatmul.mubr.f32.gmra.mrb[0].mxu0 %v833
  %v903 = vpop.f32.mrb[0].mxu0
  %v904 = vadd.f32 %v295, %v903
  %v905 = vpop.f32.mrb[0].mxu0
  %906 = vdwg.mxu0
  %v907 = vsel %vm300, %v372, -inf
  %908 = vmax.xlane.f32.xlu0 %v907
  %v909 = vpop.xlane.xlu0 %908
  %v910 = vsel %vm300, %v448, -inf
  %911 = vmax.xlane.f32.xlu0 %v910
  %v912 = vpop.xlane.xlu0 %911
  %v913 = vsel %vm300, %v524, -inf
  %914 = vmax.xlane.f32.xlu0 %v913
  %v915 = vpop.xlane.xlu0 %914
  %v916 = vsel %vm300, %v600, -inf
  %917 = vmax.xlane.f32.xlu0 %v916
  %v918 = vpop.xlane.xlu0 %917
  %v919 = vsel %vm300, %v676, -inf
  %920 = vmax.xlane.f32.xlu0 %v919
  %v921 = vpop.xlane.xlu0 %920
  %v922 = vsel %vm300, %v752, -inf
  %923 = vmax.xlane.f32.xlu0 %v922
  %v924 = vpop.xlane.xlu0 %923
  %v925 = vsel %vm300, %v828, -inf
  %926 = vmax.xlane.f32.xlu0 %v925
  %v927 = vpop.xlane.xlu0 %926
  %v928 = vsel %vm300, %v904, -inf
  %929 = vmax.xlane.f32.xlu0 %v928
  %v930 = vpop.xlane.xlu0 %929
  %v931 = vsub.f32 %v372, %v909
  %v932 = vsub.f32 %v448, %v912
  %v933 = vsub.f32 %v524, %v915
  %v934 = vsub.f32 %v600, %v918
  %v935 = vsub.f32 %v676, %v921
  %v936 = vsub.f32 %v752, %v924
  %v937 = vsub.f32 %v828, %v927
  %v938 = vsub.f32 %v904, %v930
  %v939 = vmul.f32 %v931, 1.442695
  %v940 = vpow.pop %v939
  %v941 = vmul.f32 %v932, 1.442695
  %v942 = vpow.pop %v941
  %v943 = vmul.f32 %v933, 1.442695
  %v944 = vpow.pop %v943
  %v945 = vmul.f32 %v934, 1.442695
  %v946 = vpow.pop %v945
  %v947 = vmul.f32 %v935, 1.442695
  %v948 = vpow.pop %v947
  %v949 = vmul.f32 %v936, 1.442695
  %v950 = vpow.pop %v949
  %v951 = vmul.f32 %v937, 1.442695
  %v952 = vpow.pop %v951
  %v953 = vmul.f32 %v938, 1.442695
  %v954 = vpow.pop %v953
  %v955 = vsel %vm300, %v940, 0.0
  %956 = vadd.xlane.f32.xlu0 %v955
  %v957 = vpop.xlane.xlu0 %956
  %v958 = vsel %vm300, %v942, 0.0
  %959 = vadd.xlane.f32.xlu0 %v958
  %v960 = vpop.xlane.xlu0 %959
  %v961 = vsel %vm300, %v944, 0.0
  %962 = vadd.xlane.f32.xlu0 %v961
  %v963 = vpop.xlane.xlu0 %962
  %v964 = vsel %vm300, %v946, 0.0
  %965 = vadd.xlane.f32.xlu0 %v964
  %v966 = vpop.xlane.xlu0 %965
  %v967 = vsel %vm300, %v948, 0.0
  %968 = vadd.xlane.f32.xlu0 %v967
  %v969 = vpop.xlane.xlu0 %968
  %v970 = vsel %vm300, %v950, 0.0
  %971 = vadd.xlane.f32.xlu0 %v970
  %v972 = vpop.xlane.xlu0 %971
  %v973 = vsel %vm300, %v952, 0.0
  %974 = vadd.xlane.f32.xlu0 %v973
  %v975 = vpop.xlane.xlu0 %974
  %v976 = vsel %vm300, %v954, 0.0
  %977 = vadd.xlane.f32.xlu0 %v976
  %v978 = vpop.xlane.xlu0 %977
  %v979 = vrcp.pop %v957
  %v980 = vrcp.pop %v960
  %v981 = vrcp.pop %v963
  %v982 = vrcp.pop %v966
  %v983 = vrcp.pop %v969
  %v984 = vrcp.pop %v972
  %v985 = vrcp.pop %v975
  %v986 = vrcp.pop %v978
  %v987 = vmul.f32 %v940, %v979
  %v988 = vmul.f32 %v942, %v980
  %v989 = vmul.f32 %v944, %v981
  %v990 = vmul.f32 %v946, %v982
  %v991 = vmul.f32 %v948, %v983
  %v992 = vmul.f32 %v950, %v984
  %v993 = vmul.f32 %v952, %v985
  %v994 = vmul.f32 %v954, %v986
  %995 = vrot.lane.b32.xlu0 %v262, 64
  %v996 = vpop.permute.xlu0 %995
  %v999 = vsel %vm300, %v987, 0
  %1001 = vmatprep.subr.mxu0 0.0
  %1002 = vmatpush1.msra.mxu0 %v996
  %1003 = vmatprep.subr.mxu0 0.0
  %1004 = vmatpush1.msra.mxu0 0.0
  %1005 = vmatprep.subr.mxu0 0.0
  %1006 = vmatpush1.msra.mxu0 0.0
  %1007 = vmatprep.subr.mxu0 0.0
  %1008 = vmatpush1.msra.mxu0 0.0
  %1009 = vmatprep.subr.mxu0 0.0
  %1010 = vmatpush1.msra.mxu0 0.0
  %1011 = vmatprep.subr.mxu0 0.0
  %1012 = vmatpush1.msra.mxu0 0.0
  %1013 = vmatprep.subr.mxu0 0.0
  %1014 = vmatpush1.msra.mxu0 0.0
  %1015 = vmatprep.subr.mxu0 0.0
  %1016 = vmatpush1.msra.mxu0 0.0
  %1017 = vmatprep.subr.mxu0 0.0
  %1018 = vmatpush1.msra.mxu0 0.0
  %1019 = vmatprep.subr.mxu0 0.0
  %1020 = vmatpush1.msra.mxu0 0.0
  %1021 = vmatprep.subr.mxu0 0.0
  %1022 = vmatpush1.msra.mxu0 0.0
  %1023 = vmatprep.subr.mxu0 0.0
  %1024 = vmatpush1.msra.mxu0 0.0
  %1025 = vmatprep.subr.mxu0 0.0
  %1026 = vmatpush1.msra.mxu0 0.0
  %1027 = vmatprep.subr.mxu0 0.0
  %1028 = vmatpush1.msra.mxu0 0.0
  %1029 = vmatprep.subr.mxu0 0.0
  %1030 = vmatpush1.msra.mxu0 0.0
  %1031 = vmatprep.subr.mxu0 0.0
  %1032 = vmatpush1.msra.mxu0 0.0
  %1033 = vmatprep.subr.mxu0 0.0
  %1034 = vmatpush1.msra.mxu0 0.0
  %1035 = vmatprep.subr.mxu0 0.0
  %1036 = vmatpush1.msra.mxu0 0.0
  %1037 = vmatprep.subr.mxu0 0.0
  %1038 = vmatpush1.msra.mxu0 0.0
  %1039 = vmatprep.subr.mxu0 0.0
  %1040 = vmatpush1.msra.mxu0 0.0
  %1041 = vmatprep.subr.mxu0 0.0
  %1042 = vmatpush1.msra.mxu0 0.0
  %1043 = vmatprep.subr.mxu0 0.0
  %1044 = vmatpush1.msra.mxu0 0.0
  %1045 = vmatprep.subr.mxu0 0.0
  %1046 = vmatpush1.msra.mxu0 0.0
  %1047 = vmatprep.subr.mxu0 0.0
  %1048 = vmatpush1.msra.mxu0 0.0
  %1049 = vmatprep.subr.mxu0 0.0
  %1050 = vmatpush1.msra.mxu0 0.0
  %1051 = vmatprep.subr.mxu0 0.0
  %1052 = vmatpush1.msra.mxu0 0.0
  %1053 = vmatprep.subr.mxu0 0.0
  %1054 = vmatpush1.msra.mxu0 0.0
  %1055 = vmatprep.subr.mxu0 0.0
  %1056 = vmatpush1.msra.mxu0 0.0
  %1057 = vmatprep.subr.mxu0 0.0
  %1058 = vmatpush1.msra.mxu0 0.0
  %1059 = vmatprep.subr.mxu0 0.0
  %1060 = vmatpush1.msra.mxu0 0.0
  %1061 = vmatprep.subr.mxu0 0.0
  %1062 = vmatpush1.msra.mxu0 0.0
  %1063 = vmatprep.subr.mxu0 0.0
  %1064 = vmatpush1.msra.mxu0 0.0
  %1065 = vmatprep.mubr.f32.mxu0 0.0
  %1066 = vmatmul.mubr.f32.gmra.mrb[0].mxu0 %v999
  %v1067 = vpop.f32.mrb[0].mxu0
  %v1068 = vadd.f32 0.0, %v1067
  %v1069 = vpop.f32.mrb[0].mxu0
  %1070 = vdwg.mxu0
  %1071 = vrot.lane.b32.xlu0 %v267, 64
  %v1072 = vpop.permute.xlu0 %1071
  %v1075 = vsel %vm300, %v988, 0
  %1077 = vmatprep.subr.mxu0 0.0
  %1078 = vmatpush1.msra.mxu0 %v1072
  %1079 = vmatprep.subr.mxu0 0.0
  %1080 = vmatpush1.msra.mxu0 0.0
  %1081 = vmatprep.subr.mxu0 0.0
  %1082 = vmatpush1.msra.mxu0 0.0
  %1083 = vmatprep.subr.mxu0 0.0
  %1084 = vmatpush1.msra.mxu0 0.0
  %1085 = vmatprep.subr.mxu0 0.0
  %1086 = vmatpush1.msra.mxu0 0.0
  %1087 = vmatprep.subr.mxu0 0.0
  %1088 = vmatpush1.msra.mxu0 0.0
  %1089 = vmatprep.subr.mxu0 0.0
  %1090 = vmatpush1.msra.mxu0 0.0
  %1091 = vmatprep.subr.mxu0 0.0
  %1092 = vmatpush1.msra.mxu0 0.0
  %1093 = vmatprep.subr.mxu0 0.0
  %1094 = vmatpush1.msra.mxu0 0.0
  %1095 = vmatprep.subr.mxu0 0.0
  %1096 = vmatpush1.msra.mxu0 0.0
  %1097 = vmatprep.subr.mxu0 0.0
  %1098 = vmatpush1.msra.mxu0 0.0
  %1099 = vmatprep.subr.mxu0 0.0
  %1100 = vmatpush1.msra.mxu0 0.0
  %1101 = vmatprep.subr.mxu0 0.0
  %1102 = vmatpush1.msra.mxu0 0.0
  %1103 = vmatprep.subr.mxu0 0.0
  %1104 = vmatpush1.msra.mxu0 0.0
  %1105 = vmatprep.subr.mxu0 0.0
  %1106 = vmatpush1.msra.mxu0 0.0
  %1107 = vmatprep.subr.mxu0 0.0
  %1108 = vmatpush1.msra.mxu0 0.0
  %1109 = vmatprep.subr.mxu0 0.0
  %1110 = vmatpush1.msra.mxu0 0.0
  %1111 = vmatprep.subr.mxu0 0.0
  %1112 = vmatpush1.msra.mxu0 0.0
  %1113 = vmatprep.subr.mxu0 0.0
  %1114 = vmatpush1.msra.mxu0 0.0
  %1115 = vmatprep.subr.mxu0 0.0
  %1116 = vmatpush1.msra.mxu0 0.0
  %1117 = vmatprep.subr.mxu0 0.0
  %1118 = vmatpush1.msra.mxu0 0.0
  %1119 = vmatprep.subr.mxu0 0.0
  %1120 = vmatpush1.msra.mxu0 0.0
  %1121 = vmatprep.subr.mxu0 0.0
  %1122 = vmatpush1.msra.mxu0 0.0
  %1123 = vmatprep.subr.mxu0 0.0
  %1124 = vmatpush1.msra.mxu0 0.0
  %1125 = vmatprep.subr.mxu0 0.0
  %1126 = vmatpush1.msra.mxu0 0.0
  %1127 = vmatprep.subr.mxu0 0.0
  %1128 = vmatpush1.msra.mxu0 0.0
  %1129 = vmatprep.subr.mxu0 0.0
  %1130 = vmatpush1.msra.mxu0 0.0
  %1131 = vmatprep.subr.mxu0 0.0
  %1132 = vmatpush1.msra.mxu0 0.0
  %1133 = vmatprep.subr.mxu0 0.0
  %1134 = vmatpush1.msra.mxu0 0.0
  %1135 = vmatprep.subr.mxu0 0.0
  %1136 = vmatpush1.msra.mxu0 0.0
  %1137 = vmatprep.subr.mxu0 0.0
  %1138 = vmatpush1.msra.mxu0 0.0
  %1139 = vmatprep.subr.mxu0 0.0
  %1140 = vmatpush1.msra.mxu0 0.0
  %1141 = vmatprep.mubr.f32.mxu0 0.0
  %1142 = vmatmul.mubr.f32.gmra.mrb[0].mxu0 %v1075
  %v1143 = vpop.f32.mrb[0].mxu0
  %v1144 = vadd.f32 0.0, %v1143
  %v1145 = vpop.f32.mrb[0].mxu0
  %1146 = vdwg.mxu0
  %1147 = vrot.lane.b32.xlu0 %v273, 64
  %v1148 = vpop.permute.xlu0 %1147
  %v1151 = vsel %vm300, %v989, 0
  %1153 = vmatprep.subr.mxu0 0.0
  %1154 = vmatpush1.msra.mxu0 %v1148
  %1155 = vmatprep.subr.mxu0 0.0
  %1156 = vmatpush1.msra.mxu0 0.0
  %1157 = vmatprep.subr.mxu0 0.0
  %1158 = vmatpush1.msra.mxu0 0.0
  %1159 = vmatprep.subr.mxu0 0.0
  %1160 = vmatpush1.msra.mxu0 0.0
  %1161 = vmatprep.subr.mxu0 0.0
  %1162 = vmatpush1.msra.mxu0 0.0
  %1163 = vmatprep.subr.mxu0 0.0
  %1164 = vmatpush1.msra.mxu0 0.0
  %1165 = vmatprep.subr.mxu0 0.0
  %1166 = vmatpush1.msra.mxu0 0.0
  %1167 = vmatprep.subr.mxu0 0.0
  %1168 = vmatpush1.msra.mxu0 0.0
  %1169 = vmatprep.subr.mxu0 0.0
  %1170 = vmatpush1.msra.mxu0 0.0
  %1171 = vmatprep.subr.mxu0 0.0
  %1172 = vmatpush1.msra.mxu0 0.0
  %1173 = vmatprep.subr.mxu0 0.0
  %1174 = vmatpush1.msra.mxu0 0.0
  %1175 = vmatprep.subr.mxu0 0.0
  %1176 = vmatpush1.msra.mxu0 0.0
  %1177 = vmatprep.subr.mxu0 0.0
  %1178 = vmatpush1.msra.mxu0 0.0
  %1179 = vmatprep.subr.mxu0 0.0
  %1180 = vmatpush1.msra.mxu0 0.0
  %1181 = vmatprep.subr.mxu0 0.0
  %1182 = vmatpush1.msra.mxu0 0.0
  %1183 = vmatprep.subr.mxu0 0.0
  %1184 = vmatpush1.msra.mxu0 0.0
  %1185 = vmatprep.subr.mxu0 0.0
  %1186 = vmatpush1.msra.mxu0 0.0
  %1187 = vmatprep.subr.mxu0 0.0
  %1188 = vmatpush1.msra.mxu0 0.0
  %1189 = vmatprep.subr.mxu0 0.0
  %1190 = vmatpush1.msra.mxu0 0.0
  %1191 = vmatprep.subr.mxu0 0.0
  %1192 = vmatpush1.msra.mxu0 0.0
  %1193 = vmatprep.subr.mxu0 0.0
  %1194 = vmatpush1.msra.mxu0 0.0
  %1195 = vmatprep.subr.mxu0 0.0
  %1196 = vmatpush1.msra.mxu0 0.0
  %1197 = vmatprep.subr.mxu0 0.0
  %1198 = vmatpush1.msra.mxu0 0.0
  %1199 = vmatprep.subr.mxu0 0.0
  %1200 = vmatpush1.msra.mxu0 0.0
  %1201 = vmatprep.subr.mxu0 0.0
  %1202 = vmatpush1.msra.mxu0 0.0
  %1203 = vmatprep.subr.mxu0 0.0
  %1204 = vmatpush1.msra.mxu0 0.0
  %1205 = vmatprep.subr.mxu0 0.0
  %1206 = vmatpush1.msra.mxu0 0.0
  %1207 = vmatprep.subr.mxu0 0.0
  %1208 = vmatpush1.msra.mxu0 0.0
  %1209 = vmatprep.subr.mxu0 0.0
  %1210 = vmatpush1.msra.mxu0 0.0
  %1211 = vmatprep.subr.mxu0 0.0
  %1212 = vmatpush1.msra.mxu0 0.0
  %1213 = vmatprep.subr.mxu0 0.0
  %1214 = vmatpush1.msra.mxu0 0.0
  %1215 = vmatprep.subr.mxu0 0.0
  %1216 = vmatpush1.msra.mxu0 0.0
  %1217 = vmatprep.mubr.f32.mxu0 0.0
  %1218 = vmatmul.mubr.f32.gmra.mrb[0].mxu0 %v1151
  %v1219 = vpop.f32.mrb[0].mxu0
  %v1220 = vadd.f32 0.0, %v1219
  %v1221 = vpop.f32.mrb[0].mxu0
  %1222 = vdwg.mxu0
  %1223 = vrot.lane.b32.xlu0 %v275, 64
  %v1224 = vpop.permute.xlu0 %1223
  %v1227 = vsel %vm300, %v990, 0
  %1229 = vmatprep.subr.mxu0 0.0
  %1230 = vmatpush1.msra.mxu0 %v1224
  %1231 = vmatprep.subr.mxu0 0.0
  %1232 = vmatpush1.msra.mxu0 0.0
  %1233 = vmatprep.subr.mxu0 0.0
  %1234 = vmatpush1.msra.mxu0 0.0
  %1235 = vmatprep.subr.mxu0 0.0
  %1236 = vmatpush1.msra.mxu0 0.0
  %1237 = vmatprep.subr.mxu0 0.0
  %1238 = vmatpush1.msra.mxu0 0.0
  %1239 = vmatprep.subr.mxu0 0.0
  %1240 = vmatpush1.msra.mxu0 0.0
  %1241 = vmatprep.subr.mxu0 0.0
  %1242 = vmatpush1.msra.mxu0 0.0
  %1243 = vmatprep.subr.mxu0 0.0
  %1244 = vmatpush1.msra.mxu0 0.0
  %1245 = vmatprep.subr.mxu0 0.0
  %1246 = vmatpush1.msra.mxu0 0.0
  %1247 = vmatprep.subr.mxu0 0.0
  %1248 = vmatpush1.msra.mxu0 0.0
  %1249 = vmatprep.subr.mxu0 0.0
  %1250 = vmatpush1.msra.mxu0 0.0
  %1251 = vmatprep.subr.mxu0 0.0
  %1252 = vmatpush1.msra.mxu0 0.0
  %1253 = vmatprep.subr.mxu0 0.0
  %1254 = vmatpush1.msra.mxu0 0.0
  %1255 = vmatprep.subr.mxu0 0.0
  %1256 = vmatpush1.msra.mxu0 0.0
  %1257 = vmatprep.subr.mxu0 0.0
  %1258 = vmatpush1.msra.mxu0 0.0
  %1259 = vmatprep.subr.mxu0 0.0
  %1260 = vmatpush1.msra.mxu0 0.0
  %1261 = vmatprep.subr.mxu0 0.0
  %1262 = vmatpush1.msra.mxu0 0.0
  %1263 = vmatprep.subr.mxu0 0.0
  %1264 = vmatpush1.msra.mxu0 0.0
  %1265 = vmatprep.subr.mxu0 0.0
  %1266 = vmatpush1.msra.mxu0 0.0
  %1267 = vmatprep.subr.mxu0 0.0
  %1268 = vmatpush1.msra.mxu0 0.0
  %1269 = vmatprep.subr.mxu0 0.0
  %1270 = vmatpush1.msra.mxu0 0.0
  %1271 = vmatprep.subr.mxu0 0.0
  %1272 = vmatpush1.msra.mxu0 0.0
  %1273 = vmatprep.subr.mxu0 0.0
  %1274 = vmatpush1.msra.mxu0 0.0
  %1275 = vmatprep.subr.mxu0 0.0
  %1276 = vmatpush1.msra.mxu0 0.0
  %1277 = vmatprep.subr.mxu0 0.0
  %1278 = vmatpush1.msra.mxu0 0.0
  %1279 = vmatprep.subr.mxu0 0.0
  %1280 = vmatpush1.msra.mxu0 0.0
  %1281 = vmatprep.subr.mxu0 0.0
  %1282 = vmatpush1.msra.mxu0 0.0
  %1283 = vmatprep.subr.mxu0 0.0
  %1284 = vmatpush1.msra.mxu0 0.0
  %1285 = vmatprep.subr.mxu0 0.0
  %1286 = vmatpush1.msra.mxu0 0.0
  %1287 = vmatprep.subr.mxu0 0.0
  %1288 = vmatpush1.msra.mxu0 0.0
  %1289 = vmatprep.subr.mxu0 0.0
  %1290 = vmatpush1.msra.mxu0 0.0
  %1291 = vmatprep.subr.mxu0 0.0
  %1292 = vmatpush1.msra.mxu0 0.0
  %1293 = vmatprep.mubr.f32.mxu0 0.0
  %1294 = vmatmul.mubr.f32.gmra.mrb[0].mxu0 %v1227
  %v1295 = vpop.f32.mrb[0].mxu0
  %v1296 = vadd.f32 0.0, %v1295
  %v1297 = vpop.f32.mrb[0].mxu0
  %1298 = vdwg.mxu0
  %1299 = vrot.lane.b32.xlu0 %v277, 64
  %v1300 = vpop.permute.xlu0 %1299
  %v1303 = vsel %vm300, %v991, 0
  %1305 = vmatprep.subr.mxu0 0.0
  %1306 = vmatpush1.msra.mxu0 %v1300
  %1307 = vmatprep.subr.mxu0 0.0
  %1308 = vmatpush1.msra.mxu0 0.0
  %1309 = vmatprep.subr.mxu0 0.0
  %1310 = vmatpush1.msra.mxu0 0.0
  %1311 = vmatprep.subr.mxu0 0.0
  %1312 = vmatpush1.msra.mxu0 0.0
  %1313 = vmatprep.subr.mxu0 0.0
  %1314 = vmatpush1.msra.mxu0 0.0
  %1315 = vmatprep.subr.mxu0 0.0
  %1316 = vmatpush1.msra.mxu0 0.0
  %1317 = vmatprep.subr.mxu0 0.0
  %1318 = vmatpush1.msra.mxu0 0.0
  %1319 = vmatprep.subr.mxu0 0.0
  %1320 = vmatpush1.msra.mxu0 0.0
  %1321 = vmatprep.subr.mxu0 0.0
  %1322 = vmatpush1.msra.mxu0 0.0
  %1323 = vmatprep.subr.mxu0 0.0
  %1324 = vmatpush1.msra.mxu0 0.0
  %1325 = vmatprep.subr.mxu0 0.0
  %1326 = vmatpush1.msra.mxu0 0.0
  %1327 = vmatprep.subr.mxu0 0.0
  %1328 = vmatpush1.msra.mxu0 0.0
  %1329 = vmatprep.subr.mxu0 0.0
  %1330 = vmatpush1.msra.mxu0 0.0
  %1331 = vmatprep.subr.mxu0 0.0
  %1332 = vmatpush1.msra.mxu0 0.0
  %1333 = vmatprep.subr.mxu0 0.0
  %1334 = vmatpush1.msra.mxu0 0.0
  %1335 = vmatprep.subr.mxu0 0.0
  %1336 = vmatpush1.msra.mxu0 0.0
  %1337 = vmatprep.subr.mxu0 0.0
  %1338 = vmatpush1.msra.mxu0 0.0
  %1339 = vmatprep.subr.mxu0 0.0
  %1340 = vmatpush1.msra.mxu0 0.0
  %1341 = vmatprep.subr.mxu0 0.0
  %1342 = vmatpush1.msra.mxu0 0.0
  %1343 = vmatprep.subr.mxu0 0.0
  %1344 = vmatpush1.msra.mxu0 0.0
  %1345 = vmatprep.subr.mxu0 0.0
  %1346 = vmatpush1.msra.mxu0 0.0
  %1347 = vmatprep.subr.mxu0 0.0
  %1348 = vmatpush1.msra.mxu0 0.0
  %1349 = vmatprep.subr.mxu0 0.0
  %1350 = vmatpush1.msra.mxu0 0.0
  %1351 = vmatprep.subr.mxu0 0.0
  %1352 = vmatpush1.msra.mxu0 0.0
  %1353 = vmatprep.subr.mxu0 0.0
  %1354 = vmatpush1.msra.mxu0 0.0
  %1355 = vmatprep.subr.mxu0 0.0
  %1356 = vmatpush1.msra.mxu0 0.0
  %1357 = vmatprep.subr.mxu0 0.0
  %1358 = vmatpush1.msra.mxu0 0.0
  %1359 = vmatprep.subr.mxu0 0.0
  %1360 = vmatpush1.msra.mxu0 0.0
  %1361 = vmatprep.subr.mxu0 0.0
  %1362 = vmatpush1.msra.mxu0 0.0
  %1363 = vmatprep.subr.mxu0 0.0
  %1364 = vmatpush1.msra.mxu0 0.0
  %1365 = vmatprep.subr.mxu0 0.0
  %1366 = vmatpush1.msra.mxu0 0.0
  %1367 = vmatprep.subr.mxu0 0.0
  %1368 = vmatpush1.msra.mxu0 0.0
  %1369 = vmatprep.mubr.f32.mxu0 0.0
  %1370 = vmatmul.mubr.f32.gmra.mrb[0].mxu0 %v1303
  %v1371 = vpop.f32.mrb[0].mxu0
  %v1372 = vadd.f32 0.0, %v1371
  %v1373 = vpop.f32.mrb[0].mxu0
  %1374 = vdwg.mxu0
  %1375 = vrot.lane.b32.xlu0 %v279, 64
  %v1376 = vpop.permute.xlu0 %1375
  %v1379 = vsel %vm300, %v992, 0
  %1381 = vmatprep.subr.mxu0 0.0
  %1382 = vmatpush1.msra.mxu0 %v1376
  %1383 = vmatprep.subr.mxu0 0.0
  %1384 = vmatpush1.msra.mxu0 0.0
  %1385 = vmatprep.subr.mxu0 0.0
  %1386 = vmatpush1.msra.mxu0 0.0
  %1387 = vmatprep.subr.mxu0 0.0
  %1388 = vmatpush1.msra.mxu0 0.0
  %1389 = vmatprep.subr.mxu0 0.0
  %1390 = vmatpush1.msra.mxu0 0.0
  %1391 = vmatprep.subr.mxu0 0.0
  %1392 = vmatpush1.msra.mxu0 0.0
  %1393 = vmatprep.subr.mxu0 0.0
  %1394 = vmatpush1.msra.mxu0 0.0
  %1395 = vmatprep.subr.mxu0 0.0
  %1396 = vmatpush1.msra.mxu0 0.0
  %1397 = vmatprep.subr.mxu0 0.0
  %1398 = vmatpush1.msra.mxu0 0.0
  %1399 = vmatprep.subr.mxu0 0.0
  %1400 = vmatpush1.msra.mxu0 0.0
  %1401 = vmatprep.subr.mxu0 0.0
  %1402 = vmatpush1.msra.mxu0 0.0
  %1403 = vmatprep.subr.mxu0 0.0
  %1404 = vmatpush1.msra.mxu0 0.0
  %1405 = vmatprep.subr.mxu0 0.0
  %1406 = vmatpush1.msra.mxu0 0.0
  %1407 = vmatprep.subr.mxu0 0.0
  %1408 = vmatpush1.msra.mxu0 0.0
  %1409 = vmatprep.subr.mxu0 0.0
  %1410 = vmatpush1.msra.mxu0 0.0
  %1411 = vmatprep.subr.mxu0 0.0
  %1412 = vmatpush1.msra.mxu0 0.0
  %1413 = vmatprep.subr.mxu0 0.0
  %1414 = vmatpush1.msra.mxu0 0.0
  %1415 = vmatprep.subr.mxu0 0.0
  %1416 = vmatpush1.msra.mxu0 0.0
  %1417 = vmatprep.subr.mxu0 0.0
  %1418 = vmatpush1.msra.mxu0 0.0
  %1419 = vmatprep.subr.mxu0 0.0
  %1420 = vmatpush1.msra.mxu0 0.0
  %1421 = vmatprep.subr.mxu0 0.0
  %1422 = vmatpush1.msra.mxu0 0.0
  %1423 = vmatprep.subr.mxu0 0.0
  %1424 = vmatpush1.msra.mxu0 0.0
  %1425 = vmatprep.subr.mxu0 0.0
  %1426 = vmatpush1.msra.mxu0 0.0
  %1427 = vmatprep.subr.mxu0 0.0
  %1428 = vmatpush1.msra.mxu0 0.0
  %1429 = vmatprep.subr.mxu0 0.0
  %1430 = vmatpush1.msra.mxu0 0.0
  %1431 = vmatprep.subr.mxu0 0.0
  %1432 = vmatpush1.msra.mxu0 0.0
  %1433 = vmatprep.subr.mxu0 0.0
  %1434 = vmatpush1.msra.mxu0 0.0
  %1435 = vmatprep.subr.mxu0 0.0
  %1436 = vmatpush1.msra.mxu0 0.0
  %1437 = vmatprep.subr.mxu0 0.0
  %1438 = vmatpush1.msra.mxu0 0.0
  %1439 = vmatprep.subr.mxu0 0.0
  %1440 = vmatpush1.msra.mxu0 0.0
  %1441 = vmatprep.subr.mxu0 0.0
  %1442 = vmatpush1.msra.mxu0 0.0
  %1443 = vmatprep.subr.mxu0 0.0
  %1444 = vmatpush1.msra.mxu0 0.0
  %1445 = vmatprep.mubr.f32.mxu0 0.0
  %1446 = vmatmul.mubr.f32.gmra.mrb[0].mxu0 %v1379
  %v1447 = vpop.f32.mrb[0].mxu0
  %v1448 = vadd.f32 0.0, %v1447
  %v1449 = vpop.f32.mrb[0].mxu0
  %1450 = vdwg.mxu0
  %1451 = vrot.lane.b32.xlu0 %v281, 64
  %v1452 = vpop.permute.xlu0 %1451
  %v1455 = vsel %vm300, %v993, 0
  %1457 = vmatprep.subr.mxu0 0.0
  %1458 = vmatpush1.msra.mxu0 %v1452
  %1459 = vmatprep.subr.mxu0 0.0
  %1460 = vmatpush1.msra.mxu0 0.0
  %1461 = vmatprep.subr.mxu0 0.0
  %1462 = vmatpush1.msra.mxu0 0.0
  %1463 = vmatprep.subr.mxu0 0.0
  %1464 = vmatpush1.msra.mxu0 0.0
  %1465 = vmatprep.subr.mxu0 0.0
  %1466 = vmatpush1.msra.mxu0 0.0
  %1467 = vmatprep.subr.mxu0 0.0
  %1468 = vmatpush1.msra.mxu0 0.0
  %1469 = vmatprep.subr.mxu0 0.0
  %1470 = vmatpush1.msra.mxu0 0.0
  %1471 = vmatprep.subr.mxu0 0.0
  %1472 = vmatpush1.msra.mxu0 0.0
  %1473 = vmatprep.subr.mxu0 0.0
  %1474 = vmatpush1.msra.mxu0 0.0
  %1475 = vmatprep.subr.mxu0 0.0
  %1476 = vmatpush1.msra.mxu0 0.0
  %1477 = vmatprep.subr.mxu0 0.0
  %1478 = vmatpush1.msra.mxu0 0.0
  %1479 = vmatprep.subr.mxu0 0.0
  %1480 = vmatpush1.msra.mxu0 0.0
  %1481 = vmatprep.subr.mxu0 0.0
  %1482 = vmatpush1.msra.mxu0 0.0
  %1483 = vmatprep.subr.mxu0 0.0
  %1484 = vmatpush1.msra.mxu0 0.0
  %1485 = vmatprep.subr.mxu0 0.0
  %1486 = vmatpush1.msra.mxu0 0.0
  %1487 = vmatprep.subr.mxu0 0.0
  %1488 = vmatpush1.msra.mxu0 0.0
  %1489 = vmatprep.subr.mxu0 0.0
  %1490 = vmatpush1.msra.mxu0 0.0
  %1491 = vmatprep.subr.mxu0 0.0
  %1492 = vmatpush1.msra.mxu0 0.0
  %1493 = vmatprep.subr.mxu0 0.0
  %1494 = vmatpush1.msra.mxu0 0.0
  %1495 = vmatprep.subr.mxu0 0.0
  %1496 = vmatpush1.msra.mxu0 0.0
  %1497 = vmatprep.subr.mxu0 0.0
  %1498 = vmatpush1.msra.mxu0 0.0
  %1499 = vmatprep.subr.mxu0 0.0
  %1500 = vmatpush1.msra.mxu0 0.0
  %1501 = vmatprep.subr.mxu0 0.0
  %1502 = vmatpush1.msra.mxu0 0.0
  %1503 = vmatprep.subr.mxu0 0.0
  %1504 = vmatpush1.msra.mxu0 0.0
  %1505 = vmatprep.subr.mxu0 0.0
  %1506 = vmatpush1.msra.mxu0 0.0
  %1507 = vmatprep.subr.mxu0 0.0
  %1508 = vmatpush1.msra.mxu0 0.0
  %1509 = vmatprep.subr.mxu0 0.0
  %1510 = vmatpush1.msra.mxu0 0.0
  %1511 = vmatprep.subr.mxu0 0.0
  %1512 = vmatpush1.msra.mxu0 0.0
  %1513 = vmatprep.subr.mxu0 0.0
  %1514 = vmatpush1.msra.mxu0 0.0
  %1515 = vmatprep.subr.mxu0 0.0
  %1516 = vmatpush1.msra.mxu0 0.0
  %1517 = vmatprep.subr.mxu0 0.0
  %1518 = vmatpush1.msra.mxu0 0.0
  %1519 = vmatprep.subr.mxu0 0.0
  %1520 = vmatpush1.msra.mxu0 0.0
  %1521 = vmatprep.mubr.f32.mxu0 0.0
  %1522 = vmatmul.mubr.f32.gmra.mrb[0].mxu0 %v1455
  %v1523 = vpop.f32.mrb[0].mxu0
  %v1524 = vadd.f32 0.0, %v1523
  %v1525 = vpop.f32.mrb[0].mxu0
  %1526 = vdwg.mxu0
  %1527 = vrot.lane.b32.xlu0 %v283, 64
  %v1528 = vpop.permute.xlu0 %1527
  %v1531 = vsel %vm300, %v994, 0
  %1533 = vmatprep.subr.mxu0 0.0
  %1534 = vmatpush1.msra.mxu0 %v1528
  %1535 = vmatprep.subr.mxu0 0.0
  %1536 = vmatpush1.msra.mxu0 0.0
  %1537 = vmatprep.subr.mxu0 0.0
  %1538 = vmatpush1.msra.mxu0 0.0
  %1539 = vmatprep.subr.mxu0 0.0
  %1540 = vmatpush1.msra.mxu0 0.0
  %1541 = vmatprep.subr.mxu0 0.0
  %1542 = vmatpush1.msra.mxu0 0.0
  %1543 = vmatprep.subr.mxu0 0.0
  %1544 = vmatpush1.msra.mxu0 0.0
  %1545 = vmatprep.subr.mxu0 0.0
  %1546 = vmatpush1.msra.mxu0 0.0
  %1547 = vmatprep.subr.mxu0 0.0
  %1548 = vmatpush1.msra.mxu0 0.0
  %1549 = vmatprep.subr.mxu0 0.0
  %1550 = vmatpush1.msra.mxu0 0.0
  %1551 = vmatprep.subr.mxu0 0.0
  %1552 = vmatpush1.msra.mxu0 0.0
  %1553 = vmatprep.subr.mxu0 0.0
  %1554 = vmatpush1.msra.mxu0 0.0
  %1555 = vmatprep.subr.mxu0 0.0
  %1556 = vmatpush1.msra.mxu0 0.0
  %1557 = vmatprep.subr.mxu0 0.0
  %1558 = vmatpush1.msra.mxu0 0.0
  %1559 = vmatprep.subr.mxu0 0.0
  %1560 = vmatpush1.msra.mxu0 0.0
  %1561 = vmatprep.subr.mxu0 0.0
  %1562 = vmatpush1.msra.mxu0 0.0
  %1563 = vmatprep.subr.mxu0 0.0
  %1564 = vmatpush1.msra.mxu0 0.0
  %1565 = vmatprep.subr.mxu0 0.0
  %1566 = vmatpush1.msra.mxu0 0.0
  %1567 = vmatprep.subr.mxu0 0.0
  %1568 = vmatpush1.msra.mxu0 0.0
  %1569 = vmatprep.subr.mxu0 0.0
  %1570 = vmatpush1.msra.mxu0 0.0
  %1571 = vmatprep.subr.mxu0 0.0
  %1572 = vmatpush1.msra.mxu0 0.0
  %1573 = vmatprep.subr.mxu0 0.0
  %1574 = vmatpush1.msra.mxu0 0.0
  %1575 = vmatprep.subr.mxu0 0.0
  %1576 = vmatpush1.msra.mxu0 0.0
  %1577 = vmatprep.subr.mxu0 0.0
  %1578 = vmatpush1.msra.mxu0 0.0
  %1579 = vmatprep.subr.mxu0 0.0
  %1580 = vmatpush1.msra.mxu0 0.0
  %1581 = vmatprep.subr.mxu0 0.0
  %1582 = vmatpush1.msra.mxu0 0.0
  %1583 = vmatprep.subr.mxu0 0.0
  %1584 = vmatpush1.msra.mxu0 0.0
  %1585 = vmatprep.subr.mxu0 0.0
  %1586 = vmatpush1.msra.mxu0 0.0
  %1587 = vmatprep.subr.mxu0 0.0
  %1588 = vmatpush1.msra.mxu0 0.0
  %1589 = vmatprep.subr.mxu0 0.0
  %1590 = vmatpush1.msra.mxu0 0.0
  %1591 = vmatprep.subr.mxu0 0.0
  %1592 = vmatpush1.msra.mxu0 0.0
  %1593 = vmatprep.subr.mxu0 0.0
  %1594 = vmatpush1.msra.mxu0 0.0
  %1595 = vmatprep.subr.mxu0 0.0
  %1596 = vmatpush1.msra.mxu0 0.0
  %1597 = vmatprep.mubr.f32.mxu0 0.0
  %1598 = vmatmul.mubr.f32.gmra.mrb[0].mxu0 %v1531
  %v1599 = vpop.f32.mrb[0].mxu0
  %v1600 = vadd.f32 0.0, %v1599
  %v1601 = vpop.f32.mrb[0].mxu0
  %1602 = vdwg.mxu0
  %1605 = vrot.lane.b32.xlu0 %v1220, 8
  %v1606 = vpop.permute.xlu0 %1605
  %1607 = vrot.lane.b32.xlu0 %v1296, 8
  %v1608 = vpop.permute.xlu0 %1607
  %1613 = vrot.lane.b32.xlu0 %v1372, 16
  %v1614 = vpop.permute.xlu0 %1613
  %1615 = vrot.lane.b32.xlu0 %v1448, 16
  %v1616 = vpop.permute.xlu0 %1615
  %1621 = vrot.lane.b32.xlu0 %v1524, 24
  %v1622 = vpop.permute.xlu0 %1621
  %1623 = vrot.lane.b32.xlu0 %v1600, 24
  %v1624 = vpop.permute.xlu0 %1623
  %v1627 = vsel %vm300, %v1068, %v1606
  %v1628 = vsel %vm300, %v1144, %v1608
  %vm1629 = vcmask 130048
  %v1630 = vsel %vm1629, %v1627, %v1614
  %v1631 = vsel %vm1629, %v1628, %v1616
  %vm1632 = vcmask 195584
  %v1633 = vsel %vm1632, %v1630, %v1622
  %v1634 = vsel %vm1632, %v1631, %v1624
  %v1635 = vld [vmem:[%s15] sm:$0xff]
  %v1636 = vld [vmem:[%s15 + $0x8] sm:$0xff]
  %v1637 = vld [vmem:[%s15 + $0x10] sm:$0xff]
  %v1638 = vld [vmem:[%s15 + $0x18] sm:$0xff]
  %v1639 = vld [vmem:[%s17] sm:$0x1]
  %v1641 = vlaneseq
  %v1642 = vshrl.u32 %v1641, 7
  %v1643 = vsub.s32 0, %v1642
  %v1644 = vrot.slane %v1639, %v1643
  %v1647 = vsel %vm134, %v1633, 0
  %v1650 = vsel %vm134, %v1634, 0
  %1652 = vmatprep.subr.mxu0 0.0
  %1653 = vmatpush1.msra.mxu0 %v1635
  %1654 = vmatprep.subr.mxu0 0.0
  %1655 = vmatpush1.msra.mxu0 %v1636
  %1656 = vmatprep.subr.mxu0 0.0
  %1657 = vmatpush1.msra.mxu0 %v1637
  %1658 = vmatprep.subr.mxu0 0.0
  %1659 = vmatpush1.msra.mxu0 %v1638
  %1660 = vmatprep.subr.mxu0 0.0
  %1661 = vmatpush1.msra.mxu0 0.0
  %1662 = vmatprep.subr.mxu0 0.0
  %1663 = vmatpush1.msra.mxu0 0.0
  %1664 = vmatprep.subr.mxu0 0.0
  %1665 = vmatpush1.msra.mxu0 0.0
  %1666 = vmatprep.subr.mxu0 0.0
  %1667 = vmatpush1.msra.mxu0 0.0
  %1668 = vmatprep.subr.mxu0 0.0
  %1669 = vmatpush1.msra.mxu0 0.0
  %1670 = vmatprep.subr.mxu0 0.0
  %1671 = vmatpush1.msra.mxu0 0.0
  %1672 = vmatprep.subr.mxu0 0.0
  %1673 = vmatpush1.msra.mxu0 0.0
  %1674 = vmatprep.subr.mxu0 0.0
  %1675 = vmatpush1.msra.mxu0 0.0
  %1676 = vmatprep.subr.mxu0 0.0
  %1677 = vmatpush1.msra.mxu0 0.0
  %1678 = vmatprep.subr.mxu0 0.0
  %1679 = vmatpush1.msra.mxu0 0.0
  %1680 = vmatprep.subr.mxu0 0.0
  %1681 = vmatpush1.msra.mxu0 0.0
  %1682 = vmatprep.subr.mxu0 0.0
  %1683 = vmatpush1.msra.mxu0 0.0
  %1684 = vmatprep.subr.mxu0 0.0
  %1685 = vmatpush1.msra.mxu0 0.0
  %1686 = vmatprep.subr.mxu0 0.0
  %1687 = vmatpush1.msra.mxu0 0.0
  %1688 = vmatprep.subr.mxu0 0.0
  %1689 = vmatpush1.msra.mxu0 0.0
  %1690 = vmatprep.subr.mxu0 0.0
  %1691 = vmatpush1.msra.mxu0 0.0
  %1692 = vmatprep.subr.mxu0 0.0
  %1693 = vmatpush1.msra.mxu0 0.0
  %1694 = vmatprep.subr.mxu0 0.0
  %1695 = vmatpush1.msra.mxu0 0.0
  %1696 = vmatprep.subr.mxu0 0.0
  %1697 = vmatpush1.msra.mxu0 0.0
  %1698 = vmatprep.subr.mxu0 0.0
  %1699 = vmatpush1.msra.mxu0 0.0
  %1700 = vmatprep.subr.mxu0 0.0
  %1701 = vmatpush1.msra.mxu0 0.0
  %1702 = vmatprep.subr.mxu0 0.0
  %1703 = vmatpush1.msra.mxu0 0.0
  %1704 = vmatprep.subr.mxu0 0.0
  %1705 = vmatpush1.msra.mxu0 0.0
  %1706 = vmatprep.subr.mxu0 0.0
  %1707 = vmatpush1.msra.mxu0 0.0
  %1708 = vmatprep.subr.mxu0 0.0
  %1709 = vmatpush1.msra.mxu0 0.0
  %1710 = vmatprep.subr.mxu0 0.0
  %1711 = vmatpush1.msra.mxu0 0.0
  %1712 = vmatprep.subr.mxu0 0.0
  %1713 = vmatpush1.msra.mxu0 0.0
  %1714 = vmatprep.subr.mxu0 0.0
  %1715 = vmatpush1.msra.mxu0 0.0
  %1716 = vmatprep.mubr.f32.mxu0 0.0
  %1717 = vmatmul.mubr.f32.gmra.mrb[0].mxu0 %v1647
  %v1718 = vpop.f32.mrb[0].mxu0
  %v1719 = vadd.f32 %v1644, %v1718
  %v1720 = vpop.f32.mrb[0].mxu0
  %1721 = vmatprep.mubr.f32.mxu0 0.0
  %1722 = vmatmul.mubr.f32.gmra.mrb[0].mxu0 %v1650
  %v1723 = vpop.f32.mrb[0].mxu0
  %v1724 = vadd.f32 %v1644, %v1723
  %v1725 = vpop.f32.mrb[0].mxu0
  %1726 = vdwg.mxu0
  %v1727 = vadd.f32 %v176, %v1719
  %v1728 = vadd.f32 %v177, %v1724
  %v1729 = vld [vmem:[%s19] sm:$0x1]
  %v1730 = vld [vmem:[%s21] sm:$0x1]
  %v1731 = vsel %vm134, %v1727, 0.0
  %1732 = vadd.xlane.f32.xlu0 %v1731
  %v1733 = vpop.xlane.xlu0 %1732
  %v1734 = vsel %vm134, %v1728, 0.0
  %1735 = vadd.xlane.f32.xlu0 %v1734
  %v1736 = vpop.xlane.xlu0 %1735
  %v1737 = vmul.f32 %v1733, %v141
  %v1738 = vmul.f32 %v1736, %v141
  %v1739 = vsub.f32 %v1727, %v1737
  %v1740 = vsub.f32 %v1728, %v1738
  %v1741 = vmul.f32 %v1739, %v1739
  %v1742 = vmul.f32 %v1740, %v1740
  %v1743 = vsel %vm134, %v1741, 0.0
  %1744 = vadd.xlane.f32.xlu0 %v1743
  %v1745 = vpop.xlane.xlu0 %1744
  %v1746 = vsel %vm134, %v1742, 0.0
  %1747 = vadd.xlane.f32.xlu0 %v1746
  %v1748 = vpop.xlane.xlu0 %1747
  %v1749 = vmul.f32 %v1745, %v141
  %v1750 = vmul.f32 %v1748, %v141
  %v1751 = vadd.f32 %v1749, 1e-05
  %v1752 = vadd.f32 %v1750, 1e-05
  %v1753 = vrsqrt.pop %v1751
  %v1754 = vrsqrt.pop %v1752
  %v1755 = vmul.f32 %v1739, %v1753
  %v1756 = vmul.f32 %v1740, %v1754
  %v1758 = vlaneseq
  %v1759 = vshrl.u32 %v1758, 7
  %v1760 = vsub.s32 0, %v1759
  %v1761 = vrot.slane %v1729, %v1760
  %v1763 = vmul.f32 %v1755, %v1761
  %v1764 = vmul.f32 %v1756, %v1761
  %v1766 = vlaneseq
  %v1767 = vshrl.u32 %v1766, 7
  %v1768 = vsub.s32 0, %v1767
  %v1769 = vrot.slane %v1730, %v1768
  %v1771 = vadd.f32 %v1763, %v1769
  %v1772 = vadd.f32 %v1764, %v1769
  %v1773 = vld [vmem:[%s23] sm:$0xff]
  %v1774 = vld [vmem:[%s23 + $0x8] sm:$0xff]
  %v1775 = vld [vmem:[%s23 + $0x10] sm:$0xff]
  %v1776 = vld [vmem:[%s23 + $0x18] sm:$0xff]
  %v1777 = vld [vmem:[%s25] sm:$0x1]
  %v1779 = vlaneseq
  %v1780 = vshrl.u32 %v1779, 7
  %v1781 = vsub.s32 0, %v1780
  %v1782 = vrot.slane %v1777, %v1781
  %v1785 = vsel %vm134, %v1771, 0
  %v1788 = vsel %vm134, %v1772, 0
  %1790 = vmatprep.subr.mxu0 0.0
  %1791 = vmatpush1.msra.mxu0 %v1773
  %1792 = vmatprep.subr.mxu0 0.0
  %1793 = vmatpush1.msra.mxu0 %v1774
  %1794 = vmatprep.subr.mxu0 0.0
  %1795 = vmatpush1.msra.mxu0 %v1775
  %1796 = vmatprep.subr.mxu0 0.0
  %1797 = vmatpush1.msra.mxu0 %v1776
  %1798 = vmatprep.subr.mxu0 0.0
  %1799 = vmatpush1.msra.mxu0 0.0
  %1800 = vmatprep.subr.mxu0 0.0
  %1801 = vmatpush1.msra.mxu0 0.0
  %1802 = vmatprep.subr.mxu0 0.0
  %1803 = vmatpush1.msra.mxu0 0.0
  %1804 = vmatprep.subr.mxu0 0.0
  %1805 = vmatpush1.msra.mxu0 0.0
  %1806 = vmatprep.subr.mxu0 0.0
  %1807 = vmatpush1.msra.mxu0 0.0
  %1808 = vmatprep.subr.mxu0 0.0
  %1809 = vmatpush1.msra.mxu0 0.0
  %1810 = vmatprep.subr.mxu0 0.0
  %1811 = vmatpush1.msra.mxu0 0.0
  %1812 = vmatprep.subr.mxu0 0.0
  %1813 = vmatpush1.msra.mxu0 0.0
  %1814 = vmatprep.subr.mxu0 0.0
  %1815 = vmatpush1.msra.mxu0 0.0
  %1816 = vmatprep.subr.mxu0 0.0
  %1817 = vmatpush1.msra.mxu0 0.0
  %1818 = vmatprep.subr.mxu0 0.0
  %1819 = vmatpush1.msra.mxu0 0.0
  %1820 = vmatprep.subr.mxu0 0.0
  %1821 = vmatpush1.msra.mxu0 0.0
  %1822 = vmatprep.subr.mxu0 0.0
  %1823 = vmatpush1.msra.mxu0 0.0
  %1824 = vmatprep.subr.mxu0 0.0
  %1825 = vmatpush1.msra.mxu0 0.0
  %1826 = vmatprep.subr.mxu0 0.0
  %1827 = vmatpush1.msra.mxu0 0.0
  %1828 = vmatprep.subr.mxu0 0.0
  %1829 = vmatpush1.msra.mxu0 0.0
  %1830 = vmatprep.subr.mxu0 0.0
  %1831 = vmatpush1.msra.mxu0 0.0
  %1832 = vmatprep.subr.mxu0 0.0
  %1833 = vmatpush1.msra.mxu0 0.0
  %1834 = vmatprep.subr.mxu0 0.0
  %1835 = vmatpush1.msra.mxu0 0.0
  %1836 = vmatprep.subr.mxu0 0.0
  %1837 = vmatpush1.msra.mxu0 0.0
  %1838 = vmatprep.subr.mxu0 0.0
  %1839 = vmatpush1.msra.mxu0 0.0
  %1840 = vmatprep.subr.mxu0 0.0
  %1841 = vmatpush1.msra.mxu0 0.0
  %1842 = vmatprep.subr.mxu0 0.0
  %1843 = vmatpush1.msra.mxu0 0.0
  %1844 = vmatprep.subr.mxu0 0.0
  %1845 = vmatpush1.msra.mxu0 0.0
  %1846 = vmatprep.subr.mxu0 0.0
  %1847 = vmatpush1.msra.mxu0 0.0
  %1848 = vmatprep.subr.mxu0 0.0
  %1849 = vmatpush1.msra.mxu0 0.0
  %1850 = vmatprep.subr.mxu0 0.0
  %1851 = vmatpush1.msra.mxu0 0.0
  %1852 = vmatprep.subr.mxu0 0.0
  %1853 = vmatpush1.msra.mxu0 0.0
  %1854 = vmatprep.mubr.f32.mxu0 0.0
  %1855 = vmatmul.mubr.f32.gmra.mrb[0].mxu0 %v1785
  %v1856 = vpop.f32.mrb[0].mxu0
  %v1857 = vadd.f32 %v1782, %v1856
  %v1858 = vpop.f32.mrb[0].mxu0
  %1859 = vmatprep.mubr.f32.mxu0 0.0
  %1860 = vmatmul.mubr.f32.gmra.mrb[0].mxu0 %v1788
  %v1861 = vpop.f32.mrb[0].mxu0
  %v1862 = vadd.f32 %v1782, %v1861
  %v1863 = vpop.f32.mrb[0].mxu0
  %1864 = vdwg.mxu0
  %v1865 = vmul.f32 %v1857, 0.5
  %v1866 = vmul.f32 %v1862, 0.5
  %v1867 = vmul.f32 %v1857, 0.044715
  %v1868 = vmul.f32 %v1862, 0.044715
  %v1869 = vmul.f32 %v1867, %v1857
  %v1870 = vmul.f32 %v1868, %v1862
  %v1871 = vmul.f32 %v1869, %v1857
  %v1872 = vmul.f32 %v1870, %v1862
  %v1873 = vadd.f32 %v1857, %v1871
  %v1874 = vadd.f32 %v1862, %v1872
  %v1875 = vmul.f32 %v1873, 0.7978846
  %v1876 = vmul.f32 %v1874, 0.7978846
  %v1877 = vtanh.pop %v1875
  %v1878 = vtanh.pop %v1876
  %v1879 = vadd.f32 %v1877, 1.0
  %v1880 = vadd.f32 %v1878, 1.0
  %v1881 = vmul.f32 %v1865, %v1879
  %v1882 = vmul.f32 %v1866, %v1880
  %v1883 = vld [vmem:[%s27] sm:$0xff]
  %v1884 = vld [vmem:[%s27 + $0x8] sm:$0xff]
  %v1885 = vld [vmem:[%s27 + $0x10] sm:$0xff]
  %v1886 = vld [vmem:[%s27 + $0x18] sm:$0xff]
  %v1887 = vld [vmem:[%s27 + $0x20] sm:$0xff]
  %v1888 = vld [vmem:[%s27 + $0x28] sm:$0xff]
  %v1889 = vld [vmem:[%s27 + $0x30] sm:$0xff]
  %v1890 = vld [vmem:[%s27 + $0x38] sm:$0xff]
  %v1891 = vld [vmem:[%s27 + $0x40] sm:$0xff]
  %v1892 = vld [vmem:[%s27 + $0x48] sm:$0xff]
  %v1893 = vld [vmem:[%s27 + $0x50] sm:$0xff]
  %v1894 = vld [vmem:[%s27 + $0x58] sm:$0xff]
  %v1895 = vld [vmem:[%s27 + $0x60] sm:$0xff]
  %v1896 = vld [vmem:[%s27 + $0x68] sm:$0xff]
  %v1897 = vld [vmem:[%s27 + $0x70] sm:$0xff]
  %v1898 = vld [vmem:[%s27 + $0x78] sm:$0xff]
  %v1899 = vld [vmem:[%s29] sm:$0x1]
  %v1901 = vlaneseq
  %v1902 = vshrl.u32 %v1901, 7
  %v1903 = vsub.s32 0, %v1902
  %v1904 = vrot.slane %v1899, %v1903
  %1906 = vmatprep.subr.mxu0 0.0
  %1907 = vmatpush1.msra.mxu0 %v1883
  %1908 = vmatprep.subr.mxu0 0.0
  %1909 = vmatpush1.msra.mxu0 %v1884
  %1910 = vmatprep.subr.mxu0 0.0
  %1911 = vmatpush1.msra.mxu0 %v1885
  %1912 = vmatprep.subr.mxu0 0.0
  %1913 = vmatpush1.msra.mxu0 %v1886
  %1914 = vmatprep.subr.mxu0 0.0
  %1915 = vmatpush1.msra.mxu0 %v1887
  %1916 = vmatprep.subr.mxu0 0.0
  %1917 = vmatpush1.msra.mxu0 %v1888
  %1918 = vmatprep.subr.mxu0 0.0
  %1919 = vmatpush1.msra.mxu0 %v1889
  %1920 = vmatprep.subr.mxu0 0.0
  %1921 = vmatpush1.msra.mxu0 %v1890
  %1922 = vmatprep.subr.mxu0 0.0
  %1923 = vmatpush1.msra.mxu0 %v1891
  %1924 = vmatprep.subr.mxu0 0.0
  %1925 = vmatpush1.msra.mxu0 %v1892
  %1926 = vmatprep.subr.mxu0 0.0
  %1927 = vmatpush1.msra.mxu0 %v1893
  %1928 = vmatprep.subr.mxu0 0.0
  %1929 = vmatpush1.msra.mxu0 %v1894
  %1930 = vmatprep.subr.mxu0 0.0
  %1931 = vmatpush1.msra.mxu0 %v1895
  %1932 = vmatprep.subr.mxu0 0.0
  %1933 = vmatpush1.msra.mxu0 %v1896
  %1934 = vmatprep.subr.mxu0 0.0
  %1935 = vmatpush1.msra.mxu0 %v1897
  %1936 = vmatprep.subr.mxu0 0.0
  %1937 = vmatpush1.msra.mxu0 %v1898
  %1938 = vmatprep.subr.mxu0 0.0
  %1939 = vmatpush1.msra.mxu0 0.0
  %1940 = vmatprep.subr.mxu0 0.0
  %1941 = vmatpush1.msra.mxu0 0.0
  %1942 = vmatprep.subr.mxu0 0.0
  %1943 = vmatpush1.msra.mxu0 0.0
  %1944 = vmatprep.subr.mxu0 0.0
  %1945 = vmatpush1.msra.mxu0 0.0
  %1946 = vmatprep.subr.mxu0 0.0
  %1947 = vmatpush1.msra.mxu0 0.0
  %1948 = vmatprep.subr.mxu0 0.0
  %1949 = vmatpush1.msra.mxu0 0.0
  %1950 = vmatprep.subr.mxu0 0.0
  %1951 = vmatpush1.msra.mxu0 0.0
  %1952 = vmatprep.subr.mxu0 0.0
  %1953 = vmatpush1.msra.mxu0 0.0
  %1954 = vmatprep.subr.mxu0 0.0
  %1955 = vmatpush1.msra.mxu0 0.0
  %1956 = vmatprep.subr.mxu0 0.0
  %1957 = vmatpush1.msra.mxu0 0.0
  %1958 = vmatprep.subr.mxu0 0.0
  %1959 = vmatpush1.msra.mxu0 0.0
  %1960 = vmatprep.subr.mxu0 0.0
  %1961 = vmatpush1.msra.mxu0 0.0
  %1962 = vmatprep.subr.mxu0 0.0
  %1963 = vmatpush1.msra.mxu0 0.0
  %1964 = vmatprep.subr.mxu0 0.0
  %1965 = vmatpush1.msra.mxu0 0.0
  %1966 = vmatprep.subr.mxu0 0.0
  %1967 = vmatpush1.msra.mxu0 0.0
  %1968 = vmatprep.subr.mxu0 0.0
  %1969 = vmatpush1.msra.mxu0 0.0
  %1970 = vmatprep.mubr.f32.mxu0 0.0
  %1971 = vmatmul.mubr.f32.gmra.mrb[0].mxu0 %v1881
  %v1972 = vpop.f32.mrb[0].mxu0
  %v1973 = vadd.f32 %v1904, %v1972
  %v1974 = vpop.f32.mrb[0].mxu0
  %1975 = vmatprep.mubr.f32.mxu0 0.0
  %1976 = vmatmul.mubr.f32.gmra.mrb[0].mxu0 %v1882
  %v1977 = vpop.f32.mrb[0].mxu0
  %v1978 = vadd.f32 %v1904, %v1977
  %v1979 = vpop.f32.mrb[0].mxu0
  %1980 = vdwg.mxu0
  %v1981 = vadd.f32 %v1771, %v1973
  %v1982 = vadd.f32 %v1772, %v1978
  %v1983 = vld [vmem:[%s31] sm:$0x1]
  %v1984 = vld [vmem:[%s33] sm:$0x1]
  %v1985 = vsel %vm134, %v1981, 0.0
  %1986 = vadd.xlane.f32.xlu0 %v1985
  %v1987 = vpop.xlane.xlu0 %1986
  %v1988 = vsel %vm134, %v1982, 0.0
  %1989 = vadd.xlane.f32.xlu0 %v1988
  %v1990 = vpop.xlane.xlu0 %1989
  %v1991 = vmul.f32 %v1987, %v141
  %v1992 = vmul.f32 %v1990, %v141
  %v1993 = vsub.f32 %v1981, %v1991
  %v1994 = vsub.f32 %v1982, %v1992
  %v1995 = vmul.f32 %v1993, %v1993
  %v1996 = vmul.f32 %v1994, %v1994
  %v1997 = vsel %vm134, %v1995, 0.0
  %1998 = vadd.xlane.f32.xlu0 %v1997
  %v1999 = vpop.xlane.xlu0 %1998
  %v2000 = vsel %vm134, %v1996, 0.0
  %2001 = vadd.xlane.f32.xlu0 %v2000
  %v2002 = vpop.xlane.xlu0 %2001
  %v2003 = vmul.f32 %v1999, %v141
  %v2004 = vmul.f32 %v2002, %v141
  %v2005 = vadd.f32 %v2003, 1e-05
  %v2006 = vadd.f32 %v2004, 1e-05
  %v2007 = vrsqrt.pop %v2005
  %v2008 = vrsqrt.pop %v2006
  %v2009 = vmul.f32 %v1993, %v2007
  %v2010 = vmul.f32 %v1994, %v2008
  %v2012 = vlaneseq
  %v2013 = vshrl.u32 %v2012, 7
  %v2014 = vsub.s32 0, %v2013
  %v2015 = vrot.slane %v1983, %v2014
  %v2017 = vmul.f32 %v2009, %v2015
  %v2018 = vmul.f32 %v2010, %v2015
  %v2020 = vlaneseq
  %v2021 = vshrl.u32 %v2020, 7
  %v2022 = vsub.s32 0, %v2021
  %v2023 = vrot.slane %v1984, %v2022
  %v2025 = vadd.f32 %v2017, %v2023
  %v2026 = vadd.f32 %v2018, %v2023
  %v2028 = vrot.slane %v2026, 7
  %vm2030 = vcmask 1040384
  %v2031 = vsel %vm2030, %v2025, %v2028
  %vm2032 = vcmask 1041408
  %v2033 = vsel %vm2032, %v2031, 0.0
  %v2034 = vld [vmem:[%s5] sm:$0xff]
  %v2035 = vld [vmem:[%s35] sm:$0xff]
  %v2036 = vld [vmem:[%s35 + $0x8] sm:$0xff]
  %v2037 = vld [vmem:[%s37] sm:$0x3]
  %v2039 = vlaneseq
  %v2040 = vshrl.u32 %v2039, 7
  %v2041 = vsub.s32 0, %v2040
  %v2042 = vrot.slane %v2037, %v2041
  %v2043 = vlaneseq
  %v2044 = vshrl.u32 %v2043, 7
  %v2045 = vsub.s32 1, %v2044
  %v2046 = vrot.slane %v2037, %v2045
  %v2050 = vsel %vm300, %v2034, 0
  %2052 = vmatprep.subr.mxu0 %v2036
  %2053 = vmatpush1.msra.mxu0 %v2035
  %2054 = vmatprep.subr.mxu0 0.0
  %2055 = vmatpush1.msra.mxu0 0.0
  %2056 = vmatprep.subr.mxu0 0.0
  %2057 = vmatpush1.msra.mxu0 0.0
  %2058 = vmatprep.subr.mxu0 0.0
  %2059 = vmatpush1.msra.mxu0 0.0
  %2060 = vmatprep.subr.mxu0 0.0
  %2061 = vmatpush1.msra.mxu0 0.0
  %2062 = vmatprep.subr.mxu0 0.0
  %2063 = vmatpush1.msra.mxu0 0.0
  %2064 = vmatprep.subr.mxu0 0.0
  %2065 = vmatpush1.msra.mxu0 0.0
  %2066 = vmatprep.subr.mxu0 0.0
  %2067 = vmatpush1.msra.mxu0 0.0
  %2068 = vmatprep.subr.mxu0 0.0
  %2069 = vmatpush1.msra.mxu0 0.0
  %2070 = vmatprep.subr.mxu0 0.0
  %2071 = vmatpush1.msra.mxu0 0.0
  %2072 = vmatprep.subr.mxu0 0.0
  %2073 = vmatpush1.msra.mxu0 0.0
  %2074 = vmatprep.subr.mxu0 0.0
  %2075 = vmatpush1.msra.mxu0 0.0
  %2076 = vmatprep.subr.mxu0 0.0
  %2077 = vmatpush1.msra.mxu0 0.0
  %2078 = vmatprep.subr.mxu0 0.0
  %2079 = vmatpush1.msra.mxu0 0.0
  %2080 = vmatprep.subr.mxu0 0.0
  %2081 = vmatpush1.msra.mxu0 0.0
  %2082 = vmatprep.subr.mxu0 0.0
  %2083 = vmatpush1.msra.mxu0 0.0
  %2084 = vmatprep.subr.mxu0 0.0
  %2085 = vmatpush1.msra.mxu0 0.0
  %2086 = vmatprep.subr.mxu0 0.0
  %2087 = vmatpush1.msra.mxu0 0.0
  %2088 = vmatprep.subr.mxu0 0.0
  %2089 = vmatpush1.msra.mxu0 0.0
  %2090 = vmatprep.subr.mxu0 0.0
  %2091 = vmatpush1.msra.mxu0 0.0
  %2092 = vmatprep.subr.mxu0 0.0
  %2093 = vmatpush1.msra.mxu0 0.0
  %2094 = vmatprep.subr.mxu0 0.0
  %2095 = vmatpush1.msra.mxu0 0.0
  %2096 = vmatprep.subr.mxu0 0.0
  %2097 = vmatpush1.msra.mxu0 0.0
  %2098 = vmatprep.subr.mxu0 0.0
  %2099 = vmatpush1.msra.mxu0 0.0
  %2100 = vmatprep.subr.mxu0 0.0
  %2101 = vmatpush1.msra.mxu0 0.0
  %2102 = vmatprep.subr.mxu0 0.0
  %2103 = vmatpush1.msra.mxu0 0.0
  %2104 = vmatprep.subr.mxu0 0.0
  %2105 = vmatpush1.msra.mxu0 0.0
  %2106 = vmatprep.subr.mxu0 0.0
  %2107 = vmatpush1.msra.mxu0 0.0
  %2108 = vmatprep.subr.mxu0 0.0
  %2109 = vmatpush1.msra.mxu0 0.0
  %2110 = vmatprep.subr.mxu0 0.0
  %2111 = vmatpush1.msra.mxu0 0.0
  %2112 = vmatprep.subr.mxu0 0.0
  %2113 = vmatpush1.msra.mxu0 0.0
  %2114 = vmatprep.subr.mxu0 0.0
  %2115 = vmatpush1.msra.mxu0 0.0
  %2116 = vmatprep.mubr.f32.mxu0 0.0
  %2117 = vmatmul.mubr.f32.gmra.mrb[0].mxu0 %v2050
  %v2118 = vpop.f32.mrb[0].mxu0
  %v2119 = vadd.f32 %v2042, %v2118
  %v2120 = vpop.f32.mrb[0].mxu0
  %v2121 = vadd.f32 %v2046, %v2120
  %2122 = vdwg.mxu0
  %v2123 = vld [vmem:[%s39] sm:$0x3]
  %v2124 = vld [vmem:[%s41] sm:$0x3]
  %v2125 = vadd.f32 %v2119, %v2121
  %2126 = vadd.xlane.f32.xlu0 %v2125
  %v2127 = vpop.xlane.xlu0 %2126
  %v2128 = vrcp.pop 256.0
  %v2129 = vmul.f32 %v2127, %v2128
  %v2130 = vsub.f32 %v2119, %v2129
  %v2131 = vsub.f32 %v2121, %v2129
  %v2132 = vmul.f32 %v2130, %v2130
  %v2133 = vmul.f32 %v2131, %v2131
  %v2134 = vadd.f32 %v2132, %v2133
  %2135 = vadd.xlane.f32.xlu0 %v2134
  %v2136 = vpop.xlane.xlu0 %2135
  %v2137 = vmul.f32 %v2136, %v2128
  %v2138 = vadd.f32 %v2137, 1e-05
  %v2139 = vrsqrt.pop %v2138
  %v2140 = vmul.f32 %v2130, %v2139
  %v2141 = vmul.f32 %v2131, %v2139
  %v2143 = vlaneseq
  %v2144 = vshrl.u32 %v2143, 7
  %v2145 = vsub.s32 0, %v2144
  %v2146 = vrot.slane %v2123, %v2145
  %v2147 = vlaneseq
  %v2148 = vshrl.u32 %v2147, 7
  %v2149 = vsub.s32 1, %v2148
  %v2150 = vrot.slane %v2123, %v2149
  %v2153 = vmul.f32 %v2140, %v2146
  %v2154 = vmul.f32 %v2141, %v2150
  %v2156 = vlaneseq
  %v2157 = vshrl.u32 %v2156, 7
  %v2158 = vsub.s32 0, %v2157
  %v2159 = vrot.slane %v2124, %v2158
  %v2160 = vlaneseq
  %v2161 = vshrl.u32 %v2160, 7
  %v2162 = vsub.s32 1, %v2161
  %v2163 = vrot.slane %v2124, %v2162
  %v2166 = vadd.f32 %v2153, %v2159
  %v2167 = vadd.f32 %v2154, %v2163
  %v2168 = vmul.f32 %v2166, 0.5
  %v2169 = vmul.f32 %v2167, 0.5
  %v2170 = vmul.f32 %v2166, 0.044715
  %v2171 = vmul.f32 %v2167, 0.044715
  %v2172 = vmul.f32 %v2170, %v2166
  %v2173 = vmul.f32 %v2171, %v2167
  %v2174 = vmul.f32 %v2172, %v2166
  %v2175 = vmul.f32 %v2173, %v2167
  %v2176 = vadd.f32 %v2166, %v2174
  %v2177 = vadd.f32 %v2167, %v2175
  %v2178 = vmul.f32 %v2176, 0.7978846
  %v2179 = vmul.f32 %v2177, 0.7978846
  %v2180 = vtanh.pop %v2178
  %v2181 = vtanh.pop %v2179
  %v2182 = vadd.f32 %v2180, 1.0
  %v2183 = vadd.f32 %v2181, 1.0
  %v2184 = vmul.f32 %v2168, %v2182
  %v2185 = vmul.f32 %v2169, %v2183
  %v2186 = vld [vmem:[%s43] sm:$0xff]
  %v2187 = vld [vmem:[%s43 + $0x8] sm:$0xff]
  %v2188 = vld [vmem:[%s43 + $0x10] sm:$0xff]
  %v2189 = vld [vmem:[%s43 + $0x18] sm:$0xff]
  %v2190 = vld [vmem:[%s43 + $0x20] sm:$0xff]
  %v2191 = vld [vmem:[%s43 + $0x28] sm:$0xff]
  %v2192 = vld [vmem:[%s43 + $0x30] sm:$0xff]
  %v2193 = vld [vmem:[%s43 + $0x38] sm:$0xff]
  %v2194 = vld [vmem:[%s43 + $0x40] sm:$0xff]
  %v2195 = vld [vmem:[%s43 + $0x48] sm:$0xff]
  %v2196 = vld [vmem:[%s43 + $0x50] sm:$0xff]
  %v2197 = vld [vmem:[%s43 + $0x58] sm:$0xff]
  %v2198 = vld [vmem:[%s43 + $0x60] sm:$0xff]
  %v2199 = vld [vmem:[%s43 + $0x68] sm:$0xff]
  %v2200 = vld [vmem:[%s43 + $0x70] sm:$0xff]
  %v2201 = vld [vmem:[%s43 + $0x78] sm:$0xff]
  %v2202 = vld [vmem:[%s43 + $0x80] sm:$0xff]
  %v2203 = vld [vmem:[%s43 + $0x88] sm:$0xff]
  %v2204 = vld [vmem:[%s43 + $0x90] sm:$0xff]
  %v2205 = vld [vmem:[%s43 + $0x98] sm:$0xff]
  %v2206 = vld [vmem:[%s43 + $0xa0] sm:$0xff]
  %v2207 = vld [vmem:[%s43 + $0xa8] sm:$0xff]
  %v2208 = vld [vmem:[%s43 + $0xb0] sm:$0xff]
  %v2209 = vld [vmem:[%s43 + $0xb8] sm:$0xff]
  %v2210 = vld [vmem:[%s43 + $0xc0] sm:$0xff]
  %v2211 = vld [vmem:[%s43 + $0xc8] sm:$0xff]
  %v2212 = vld [vmem:[%s43 + $0xd0] sm:$0xff]
  %v2213 = vld [vmem:[%s43 + $0xd8] sm:$0xff]
  %v2214 = vld [vmem:[%s43 + $0xe0] sm:$0xff]
  %v2215 = vld [vmem:[%s43 + $0xe8] sm:$0xff]
  %v2216 = vld [vmem:[%s43 + $0xf0] sm:$0xff]
  %v2217 = vld [vmem:[%s43 + $0xf8] sm:$0xff]
  %v2218 = vld [vmem:[%s45] sm:$0x1]
  %v2220 = vlaneseq
  %v2221 = vshrl.u32 %v2220, 7
  %v2222 = vsub.s32 0, %v2221
  %v2223 = vrot.slane %v2218, %v2222
  %2225 = vmatprep.subr.mxu0 0.0
  %2226 = vmatpush1.msra.mxu0 %v2186
  %2227 = vmatprep.subr.mxu0 0.0
  %2228 = vmatpush1.msra.mxu0 %v2187
  %2229 = vmatprep.subr.mxu0 0.0
  %2230 = vmatpush1.msra.mxu0 %v2188
  %2231 = vmatprep.subr.mxu0 0.0
  %2232 = vmatpush1.msra.mxu0 %v2189
  %2233 = vmatprep.subr.mxu0 0.0
  %2234 = vmatpush1.msra.mxu0 %v2190
  %2235 = vmatprep.subr.mxu0 0.0
  %2236 = vmatpush1.msra.mxu0 %v2191
  %2237 = vmatprep.subr.mxu0 0.0
  %2238 = vmatpush1.msra.mxu0 %v2192
  %2239 = vmatprep.subr.mxu0 0.0
  %2240 = vmatpush1.msra.mxu0 %v2193
  %2241 = vmatprep.subr.mxu0 0.0
  %2242 = vmatpush1.msra.mxu0 %v2194
  %2243 = vmatprep.subr.mxu0 0.0
  %2244 = vmatpush1.msra.mxu0 %v2195
  %2245 = vmatprep.subr.mxu0 0.0
  %2246 = vmatpush1.msra.mxu0 %v2196
  %2247 = vmatprep.subr.mxu0 0.0
  %2248 = vmatpush1.msra.mxu0 %v2197
  %2249 = vmatprep.subr.mxu0 0.0
  %2250 = vmatpush1.msra.mxu0 %v2198
  %2251 = vmatprep.subr.mxu0 0.0
  %2252 = vmatpush1.msra.mxu0 %v2199
  %2253 = vmatprep.subr.mxu0 0.0
  %2254 = vmatpush1.msra.mxu0 %v2200
  %2255 = vmatprep.subr.mxu0 0.0
  %2256 = vmatpush1.msra.mxu0 %v2201
  %2257 = vmatprep.subr.mxu0 0.0
  %2258 = vmatpush1.msra.mxu0 %v2202
  %2259 = vmatprep.subr.mxu0 0.0
  %2260 = vmatpush1.msra.mxu0 %v2203
  %2261 = vmatprep.subr.mxu0 0.0
  %2262 = vmatpush1.msra.mxu0 %v2204
  %2263 = vmatprep.subr.mxu0 0.0
  %2264 = vmatpush1.msra.mxu0 %v2205
  %2265 = vmatprep.subr.mxu0 0.0
  %2266 = vmatpush1.msra.mxu0 %v2206
  %2267 = vmatprep.subr.mxu0 0.0
  %2268 = vmatpush1.msra.mxu0 %v2207
  %2269 = vmatprep.subr.mxu0 0.0
  %2270 = vmatpush1.msra.mxu0 %v2208
  %2271 = vmatprep.subr.mxu0 0.0
  %2272 = vmatpush1.msra.mxu0 %v2209
  %2273 = vmatprep.subr.mxu0 0.0
  %2274 = vmatpush1.msra.mxu0 %v2210
  %2275 = vmatprep.subr.mxu0 0.0
  %2276 = vmatpush1.msra.mxu0 %v2211
  %2277 = vmatprep.subr.mxu0 0.0
  %2278 = vmatpush1.msra.mxu0 %v2212
  %2279 = vmatprep.subr.mxu0 0.0
  %2280 = vmatpush1.msra.mxu0 %v2213
  %2281 = vmatprep.subr.mxu0 0.0
  %2282 = vmatpush1.msra.mxu0 %v2214
  %2283 = vmatprep.subr.mxu0 0.0
  %2284 = vmatpush1.msra.mxu0 %v2215
  %2285 = vmatprep.subr.mxu0 0.0
  %2286 = vmatpush1.msra.mxu0 %v2216
  %2287 = vmatprep.subr.mxu0 0.0
  %2288 = vmatpush1.msra.mxu0 %v2217
  %2289 = vmatprep.mubr.f32.mxu0 %v2185
  %2290 = vmatmul.mubr.f32.gmra.mrb[0].mxu0 %v2184
  %v2291 = vpop.f32.mrb[0].mxu0
  %v2292 = vadd.f32 %v2223, %v2291
  %v2293 = vpop.f32.mrb[0].mxu0
  %2294 = vdwg.mxu0
  %v2295 = vld [vmem:[%s47] sm:$0x1]
  %v2296 = vld [vmem:[%s49] sm:$0x1]
  %v2297 = vsel %vm134, %v2292, 0.0
  %2298 = vadd.xlane.f32.xlu0 %v2297
  %v2299 = vpop.xlane.xlu0 %2298
  %v2300 = vmul.f32 %v2299, %v141
  %v2301 = vsub.f32 %v2292, %v2300
  %v2302 = vmul.f32 %v2301, %v2301
  %v2303 = vsel %vm134, %v2302, 0.0
  %2304 = vadd.xlane.f32.xlu0 %v2303
  %v2305 = vpop.xlane.xlu0 %2304
  %v2306 = vmul.f32 %v2305, %v141
  %v2307 = vadd.f32 %v2306, 1e-05
  %v2308 = vrsqrt.pop %v2307
  %v2309 = vmul.f32 %v2301, %v2308
  %v2311 = vlaneseq
  %v2312 = vshrl.u32 %v2311, 7
  %v2313 = vsub.s32 0, %v2312
  %v2314 = vrot.slane %v2295, %v2313
  %v2316 = vmul.f32 %v2309, %v2314
  %v2318 = vlaneseq
  %v2319 = vshrl.u32 %v2318, 7
  %v2320 = vsub.s32 0, %v2319
  %v2321 = vrot.slane %v2296, %v2320
  %v2323 = vadd.f32 %v2316, %v2321
  %v2324 = vmul.f32 %v2323, 0.5
  %v2325 = vmul.f32 %v2323, 0.044715
  %v2326 = vmul.f32 %v2325, %v2323
  %v2327 = vmul.f32 %v2326, %v2323
  %v2328 = vadd.f32 %v2323, %v2327
  %v2329 = vmul.f32 %v2328, 0.7978846
  %v2330 = vtanh.pop %v2329
  %v2331 = vadd.f32 %v2330, 1.0
  %v2332 = vmul.f32 %v2324, %v2331
  %v2333 = vadd.f32 %v2033, %v2332
  %v2334 = vld [vmem:[%s51] sm:$0xff]
  %v2335 = vld [vmem:[%s51 + $0x8] sm:$0xff]
  %v2336 = vld [vmem:[%s51 + $0x10] sm:$0xff]
  %v2337 = vld [vmem:[%s51 + $0x18] sm:$0xff]
  %v2338 = vld [vmem:[%s53] sm:$0x1]
  %v2340 = vlaneseq
  %v2341 = vshrl.u32 %v2340, 7
  %v2342 = vsub.s32 0, %v2341
  %v2343 = vrot.slane %v2338, %v2342
  %v2346 = vsel %vm134, %v2333, 0
  %2348 = vmatprep.subr.mxu0 0.0
  %2349 = vmatpush1.msra.mxu0 %v2334
  %2350 = vmatprep.subr.mxu0 0.0
  %2351 = vmatpush1.msra.mxu0 %v2335
  %2352 = vmatprep.subr.mxu0 0.0
  %2353 = vmatpush1.msra.mxu0 %v2336
  %2354 = vmatprep.subr.mxu0 0.0
  %2355 = vmatpush1.msra.mxu0 %v2337
  %2356 = vmatprep.subr.mxu0 0.0
  %2357 = vmatpush1.msra.mxu0 0.0
  %2358 = vmatprep.subr.mxu0 0.0
  %2359 = vmatpush1.msra.mxu0 0.0
  %2360 = vmatprep.subr.mxu0 0.0
  %2361 = vmatpush1.msra.mxu0 0.0
  %2362 = vmatprep.subr.mxu0 0.0
  %2363 = vmatpush1.msra.mxu0 0.0
  %2364 = vmatprep.subr.mxu0 0.0
  %2365 = vmatpush1.msra.mxu0 0.0
  %2366 = vmatprep.subr.mxu0 0.0
  %2367 = vmatpush1.msra.mxu0 0.0
  %2368 = vmatprep.subr.mxu0 0.0
  %2369 = vmatpush1.msra.mxu0 0.0
  %2370 = vmatprep.subr.mxu0 0.0
  %2371 = vmatpush1.msra.mxu0 0.0
  %2372 = vmatprep.subr.mxu0 0.0
  %2373 = vmatpush1.msra.mxu0 0.0
  %2374 = vmatprep.subr.mxu0 0.0
  %2375 = vmatpush1.msra.mxu0 0.0
  %2376 = vmatprep.subr.mxu0 0.0
  %2377 = vmatpush1.msra.mxu0 0.0
  %2378 = vmatprep.subr.mxu0 0.0
  %2379 = vmatpush1.msra.mxu0 0.0
  %2380 = vmatprep.subr.mxu0 0.0
  %2381 = vmatpush1.msra.mxu0 0.0
  %2382 = vmatprep.subr.mxu0 0.0
  %2383 = vmatpush1.msra.mxu0 0.0
  %2384 = vmatprep.subr.mxu0 0.0
  %2385 = vmatpush1.msra.mxu0 0.0
  %2386 = vmatprep.subr.mxu0 0.0
  %2387 = vmatpush1.msra.mxu0 0.0
  %2388 = vmatprep.subr.mxu0 0.0
  %2389 = vmatpush1.msra.mxu0 0.0
  %2390 = vmatprep.subr.mxu0 0.0
  %2391 = vmatpush1.msra.mxu0 0.0
  %2392 = vmatprep.subr.mxu0 0.0
  %2393 = vmatpush1.msra.mxu0 0.0
  %2394 = vmatprep.subr.mxu0 0.0
  %2395 = vmatpush1.msra.mxu0 0.0
  %2396 = vmatprep.subr.mxu0 0.0
  %2397 = vmatpush1.msra.mxu0 0.0
  %2398 = vmatprep.subr.mxu0 0.0
  %2399 = vmatpush1.msra.mxu0 0.0
  %2400 = vmatprep.subr.mxu0 0.0
  %2401 = vmatpush1.msra.mxu0 0.0
  %2402 = vmatprep.subr.mxu0 0.0
  %2403 = vmatpush1.msra.mxu0 0.0
  %2404 = vmatprep.subr.mxu0 0.0
  %2405 = vmatpush1.msra.mxu0 0.0
  %2406 = vmatprep.subr.mxu0 0.0
  %2407 = vmatpush1.msra.mxu0 0.0
  %2408 = vmatprep.subr.mxu0 0.0
  %2409 = vmatpush1.msra.mxu0 0.0
  %2410 = vmatprep.subr.mxu0 0.0
  %2411 = vmatpush1.msra.mxu0 0.0
  %2412 = vmatprep.mubr.f32.mxu0 0.0
  %2413 = vmatmul.mubr.f32.gmra.mrb[0].mxu0 %v2346
  %v2414 = vpop.f32.mrb[0].mxu0
  %v2415 = vadd.f32 %v2343, %v2414
  %v2416 = vpop.f32.mrb[0].mxu0
  %2417 = vdwg.mxu0
  %v2418 = vld [vmem:[%s55] sm:$0x1]
  %v2419 = vld [vmem:[%s57] sm:$0x1]
  %v2420 = vsel %vm134, %v2415, 0.0
  %2421 = vadd.xlane.f32.xlu0 %v2420
  %v2422 = vpop.xlane.xlu0 %2421
  %v2423 = vmul.f32 %v2422, %v141
  %v2424 = vsub.f32 %v2415, %v2423
  %v2425 = vmul.f32 %v2424, %v2424
  %v2426 = vsel %vm134, %v2425, 0.0
  %2427 = vadd.xlane.f32.xlu0 %v2426
  %v2428 = vpop.xlane.xlu0 %2427
  %v2429 = vmul.f32 %v2428, %v141
  %v2430 = vadd.f32 %v2429, 1e-05
  %v2431 = vrsqrt.pop %v2430
  %v2432 = vmul.f32 %v2424, %v2431
  %v2434 = vlaneseq
  %v2435 = vshrl.u32 %v2434, 7
  %v2436 = vsub.s32 0, %v2435
  %v2437 = vrot.slane %v2418, %v2436
  %v2439 = vmul.f32 %v2432, %v2437
  %v2441 = vlaneseq
  %v2442 = vshrl.u32 %v2441, 7
  %v2443 = vsub.s32 0, %v2442
  %v2444 = vrot.slane %v2419, %v2443
  %v2446 = vadd.f32 %v2439, %v2444
  %v2447 = vmul.f32 %v2446, 0.5
  %v2448 = vmul.f32 %v2446, 0.044715
  %v2449 = vmul.f32 %v2448, %v2446
  %v2450 = vmul.f32 %v2449, %v2446
  %v2451 = vadd.f32 %v2446, %v2450
  %v2452 = vmul.f32 %v2451, 0.7978846
  %v2453 = vtanh.pop %v2452
  %v2454 = vadd.f32 %v2453, 1.0
  %v2455 = vmul.f32 %v2447, %v2454
  %v2456 = vld [vmem:[%s59] sm:$0xff]
  %v2457 = vld [vmem:[%s59 + $0x8] sm:$0xff]
  %v2458 = vld [vmem:[%s59 + $0x10] sm:$0xff]
  %v2459 = vld [vmem:[%s59 + $0x18] sm:$0xff]
  %v2460 = vld [vmem:[%s61] sm:$0x1]
  %v2462 = vlaneseq
  %v2463 = vshrl.u32 %v2462, 7
  %v2464 = vsub.s32 0, %v2463
  %v2465 = vrot.slane %v2460, %v2464
  %v2468 = vsel %vm134, %v2455, 0
  %2470 = vmatprep.subr.mxu0 0.0
  %2471 = vmatpush1.msra.mxu0 %v2456
  %2472 = vmatprep.subr.mxu0 0.0
  %2473 = vmatpush1.msra.mxu0 %v2457
  %2474 = vmatprep.subr.mxu0 0.0
  %2475 = vmatpush1.msra.mxu0 %v2458
  %2476 = vmatprep.subr.mxu0 0.0
  %2477 = vmatpush1.msra.mxu0 %v2459
  %2478 = vmatprep.subr.mxu0 0.0
  %2479 = vmatpush1.msra.mxu0 0.0
  %2480 = vmatprep.subr.mxu0 0.0
  %2481 = vmatpush1.msra.mxu0 0.0
  %2482 = vmatprep.subr.mxu0 0.0
  %2483 = vmatpush1.msra.mxu0 0.0
  %2484 = vmatprep.subr.mxu0 0.0
  %2485 = vmatpush1.msra.mxu0 0.0
  %2486 = vmatprep.subr.mxu0 0.0
  %2487 = vmatpush1.msra.mxu0 0.0
  %2488 = vmatprep.subr.mxu0 0.0
  %2489 = vmatpush1.msra.mxu0 0.0
  %2490 = vmatprep.subr.mxu0 0.0
  %2491 = vmatpush1.msra.mxu0 0.0
  %2492 = vmatprep.subr.mxu0 0.0
  %2493 = vmatpush1.msra.mxu0 0.0
  %2494 = vmatprep.subr.mxu0 0.0
  %2495 = vmatpush1.msra.mxu0 0.0
  %2496 = vmatprep.subr.mxu0 0.0
  %2497 = vmatpush1.msra.mxu0 0.0
  %2498 = vmatprep.subr.mxu0 0.0
  %2499 = vmatpush1.msra.mxu0 0.0
  %2500 = vmatprep.subr.mxu0 0.0
  %2501 = vmatpush1.msra.mxu0 0.0
  %2502 = vmatprep.subr.mxu0 0.0
  %2503 = vmatpush1.msra.mxu0 0.0
  %2504 = vmatprep.subr.mxu0 0.0
  %2505 = vmatpush1.msra.mxu0 0.0
  %2506 = vmatprep.subr.mxu0 0.0
  %2507 = vmatpush1.msra.mxu0 0.0
  %2508 = vmatprep.subr.mxu0 0.0
  %2509 = vmatpush1.msra.mxu0 0.0
  %2510 = vmatprep.subr.mxu0 0.0
  %2511 = vmatpush1.msra.mxu0 0.0
  %2512 = vmatprep.subr.mxu0 0.0
  %2513 = vmatpush1.msra.mxu0 0.0
  %2514 = vmatprep.subr.mxu0 0.0
  %2515 = vmatpush1.msra.mxu0 0.0
  %2516 = vmatprep.subr.mxu0 0.0
  %2517 = vmatpush1.msra.mxu0 0.0
  %2518 = vmatprep.subr.mxu0 0.0
  %2519 = vmatpush1.msra.mxu0 0.0
  %2520 = vmatprep.subr.mxu0 0.0
  %2521 = vmatpush1.msra.mxu0 0.0
  %2522 = vmatprep.subr.mxu0 0.0
  %2523 = vmatpush1.msra.mxu0 0.0
  %2524 = vmatprep.subr.mxu0 0.0
  %2525 = vmatpush1.msra.mxu0 0.0
  %2526 = vmatprep.subr.mxu0 0.0
  %2527 = vmatpush1.msra.mxu0 0.0
  %2528 = vmatprep.subr.mxu0 0.0
  %2529 = vmatpush1.msra.mxu0 0.0
  %2530 = vmatprep.subr.mxu0 0.0
  %2531 = vmatpush1.msra.mxu0 0.0
  %2532 = vmatprep.subr.mxu0 0.0
  %2533 = vmatpush1.msra.mxu0 0.0
  %2534 = vmatprep.mubr.f32.mxu0 0.0
  %2535 = vmatmul.mubr.f32.gmra.mrb[0].mxu0 %v2468
  %v2536 = vpop.f32.mrb[0].mxu0
  %v2537 = vadd.f32 %v2465, %v2536
  %v2538 = vpop.f32.mrb[0].mxu0
  %2539 = vdwg.mxu0
  %2540 = vmax.xlane.f32.xlu0 %v2537
  %v2541 = vpop.xlane.xlu0 %2540
  %v2542 = vsub.f32 %v2537, %v2541
  %v2543 = vmul.f32 %v2542, 1.442695
  %v2544 = vpow.pop %v2543
  %2545 = vadd.xlane.f32.xlu0 %v2544
  %v2546 = vpop.xlane.xlu0 %2545
  %v2547 = vrcp.pop %v2546
  %v2548 = vmul.f32 %v2544, %v2547
  %2549 = vst [vmem:[%s63] sm:$0xff] %v2548
  // Predicated region
  $region126: #{forward.1} parent=0 // pred_check
    _
  $region127: #{forward.1} parent=0 // pred_check_branch
    %2551 = sbr.rel (0) target = $region129
  $region128: #{forward.1} parent=0 // pred_region
    _
  $region129: #{forward.1} parent=0 // pred_fallthru
    _
  // Predicated region
  $region130: #{forward.1} parent=0 // pred_check
    _
  $region131: #{forward.1} parent=0 // pred_check_branch
    %2553 = sbr.rel (0) target = $region133
  $region132: #{forward.1} parent=0 // pred_region
    _
  $region133: #{forward.1} parent=0 // pred_fallthru
    _

</llo_original>
